<compile_context>
chip_gen: v7x
topology: tpu7x:2x2x1
jax: 0.10.0
libtpu: 0.0.40
codegen_flags: <defaults>
</compile_context>

<pallas_src>
import functools

import jax
import jax.numpy as jnp
from jax.experimental import pallas as pl
from jax.experimental.pallas import tpu as pltpu


def _round_up(n, m):
    return ((n + m - 1) // m) * m


def _sigmoid(x):
    # tanh-form sigmoid: transcendental goes to the EUP slot, no VALU divide.
    return 0.5 * jnp.tanh(0.5 * x) + 0.5


# ----------------------------------------------------------------------------
# Fused kernel: 2 LSTM layers (unrolled time loop) + fc1/relu/fc2 head.
# ----------------------------------------------------------------------------
def _fused_lstm_kernel(x2d_ref, wih1_ref, whh1_ref, wih2_ref, b2_ref, whh2_ref,
                       wf1_ref, bf1_ref, wf2_ref, bf2_ref,
                       out_ref, xp1_sc, *, T, Hp):
    B = out_ref.shape[0]
    G = 4 * Hp

    # (1) All layer-1 input projections as ONE off-chain MXU dot.  The layer-1
    #     bias is folded in via the constant-1 augmentation column of x2d.
    #     Stores complete before the loop; per-step loads are static-address
    #     and independent of h, so they sit off the recurrence chain.
    xp1_sc[...] = jnp.dot(x2d_ref[...], wih1_ref[...],
                          preferred_element_type=jnp.float32)

    # (2) Hoist the layer-2 bias broadcast out of the unrolled loop.
    b2b = jnp.broadcast_to(b2_ref[...], (B, G))

    def act(z):
        # Gate blocks are 128-lane aligned -> whole-vreg slices (order i,f,g,o).
        i = _sigmoid(z[:, 0 * Hp:1 * Hp])
        f = _sigmoid(z[:, 1 * Hp:2 * Hp])
        g = jnp.tanh(z[:, 2 * Hp:3 * Hp])
        o = _sigmoid(z[:, 3 * Hp:4 * Hp])
        return i, f, g, o

    zero = jnp.zeros((B, Hp), jnp.float32)
    h1, c1, h2, c2 = zero, zero, zero, zero

    # Fully unrolled static time loop (T is a Python int) -> LLO can overlap
    # the off-chain dots / loads of adjacent steps with the recurrences.
    for t in range(T):
        # ---- layer 1: only h1 @ W_hh1 sits on the recurrence chain ----
        z1 = xp1_sc[t * B:(t + 1) * B, :] + jnp.dot(
            h1, whh1_ref[...], preferred_element_type=jnp.float32)
        i1, f1, g1, o1 = act(z1)
        c1 = f1 * c1 + i1 * g1
        h1 = o1 * jnp.tanh(c1)

        # ---- layer 2 input projection: off the h2 chain (depends on h1_t
        #      only, overlaps with layer-1's step t+1) ----
        xp2 = jnp.dot(h1, wih2_ref[...],
                      preferred_element_type=jnp.float32) + b2b

        # ---- layer 2: only h2 @ W_hh2 sits on the recurrence chain ----
        # (inter-layer dropout p=0.4 is identity in eval mode)
        z2 = xp2 + jnp.dot(h2, whh2_ref[...],
                           preferred_element_type=jnp.float32)
        i2, f2, g2, o2 = act(z2)
        c2 = f2 * c2 + i2 * g2
        h2 = o2 * jnp.tanh(c2)

    # ---- FC head on the last hidden state (dropout p=0.3 = identity, eval) --
    zf = jnp.dot(h2, wf1_ref[...], preferred_element_type=jnp.float32) + bf1_ref[...]
    zf = jnp.maximum(zf, 0.0)
    # (F -> 1) projection as VPU multiply + lane reduce (avoids N=1 MXU dot).
    out_ref[...] = (jnp.sum(zf * wf2_ref[...], axis=-1, keepdims=True)
                    + bf2_ref[...])


# ----------------------------------------------------------------------------
# Weight packing: PyTorch layout -> lane-padded, pre-transposed, gate-blocked.
# ----------------------------------------------------------------------------
def _pack_input_proj(w_ih, bias_or_none, in_size, in_pad, H, Hp):
    """(4H, in_size) PyTorch weight -> (in_pad, 4*Hp).  Gate g occupies its own
    128-lane-aligned block; optional bias is folded into row `in_size` (pairs
    with a constant-1 column in the operand).  Unused rows/cols are zero."""
    w_ih = jnp.asarray(w_ih, jnp.float32)
    W = jnp.zeros((in_pad, 4 * Hp), jnp.float32)
    for g in range(4):
        W = W.at[:in_size, g * Hp:g * Hp + H].set(w_ih[g * H:(g + 1) * H, :].T)
    if bias_or_none is not None:
        b = jnp.asarray(bias_or_none, jnp.float32)
        for g in range(4):
            W = W.at[in_size, g * Hp:g * Hp + H].set(b[g * H:(g + 1) * H])
    return W


def _pack_recurrent(w_hh, H, Hp):
    """(4H, H) PyTorch recurrent weight -> (Hp, 4*Hp), gate-blocked."""
    w_hh = jnp.asarray(w_hh, jnp.float32)
    W = jnp.zeros((Hp, 4 * Hp), jnp.float32)
    for g in range(4):
        W = W.at[:H, g * Hp:g * Hp + H].set(w_hh[g * H:(g + 1) * H, :].T)
    return W


def _pack_gate_bias(bias, H, Hp):
    bias = jnp.asarray(bias, jnp.float32)
    b = jnp.zeros((1, 4 * Hp), jnp.float32)
    for g in range(4):
        b = b.at[0, g * Hp:g * Hp + H].set(bias[g * H:(g + 1) * H])
    return b


# ----------------------------------------------------------------------------
# Full SingleLSTM forward (eval mode)
# ----------------------------------------------------------------------------
def single_lstm_forward(x_bti, params):
    """x_bti: (B, T, I) batch_first, like the PyTorch module.  Returns (B, 1)."""
    B, T, I = x_bti.shape
    H = params["w_hh0"].shape[1]
    F = params["w_fc1"].shape[0]
    Hp = _round_up(H, 128)
    Fp = _round_up(F, 128)
    Ip = _round_up(I + 1, 128)          # +1 for the constant-1 bias column
    G = 4 * Hp

    # batch_first -> time-major 2-D operand (rows t*B..t*B+B-1 = step t), with
    # a constant-1 column so the layer-1 bias folds into the precomputed dot.
    x_tb = jnp.transpose(x_bti.astype(jnp.float32), (1, 0, 2)).reshape(T * B, I)
    x2d = jnp.zeros((T * B, Ip), jnp.float32)
    x2d = x2d.at[:, :I].set(x_tb).at[:, I].set(1.0)

    wih1 = _pack_input_proj(params["w_ih0"],
                            params["b_ih0"] + params["b_hh0"], I, Ip, H, Hp)
    whh1 = _pack_recurrent(params["w_hh0"], H, Hp)
    wih2 = _pack_input_proj(params["w_ih1"], None, H, Hp, H, Hp)
    b2 = _pack_gate_bias(params["b_ih1"] + params["b_hh1"], H, Hp)
    whh2 = _pack_recurrent(params["w_hh1"], H, Hp)

    wf1 = jnp.zeros((Hp, Fp), jnp.float32).at[:H, :F].set(
        jnp.asarray(params["w_fc1"], jnp.float32).T)
    bf1 = jnp.zeros((1, Fp), jnp.float32).at[0, :F].set(
        jnp.asarray(params["b_fc1"], jnp.float32))
    wf2 = jnp.zeros((1, Fp), jnp.float32).at[0, :F].set(
        jnp.asarray(params["w_fc2"], jnp.float32)[0])
    bf2 = jnp.asarray(params["b_fc2"], jnp.float32).reshape(1, 1)

    kernel = functools.partial(_fused_lstm_kernel, T=T, Hp=Hp)
    full2d = lambda i: (0, 0)

    return pl.pallas_call(
        kernel,
        out_shape=jax.ShapeDtypeStruct((B, 1), jnp.float32),
        grid_spec=pltpu.PrefetchScalarGridSpec(
            num_scalar_prefetch=0,
            grid=(1,),
            in_specs=[
                pl.BlockSpec((T * B, Ip), full2d),   # x2d (time-major, aug col)
                pl.BlockSpec((Ip, G), full2d),       # W_ih1 (+bias row)
                pl.BlockSpec((Hp, G), full2d),       # W_hh1
                pl.BlockSpec((Hp, G), full2d),       # W_ih2
                pl.BlockSpec((1, G), full2d),        # bias layer 2
                pl.BlockSpec((Hp, G), full2d),       # W_hh2
                pl.BlockSpec((Hp, Fp), full2d),      # fc1 weight (H,F)
                pl.BlockSpec((1, Fp), full2d),       # fc1 bias
                pl.BlockSpec((1, Fp), full2d),       # fc2 weight row
                pl.BlockSpec((1, 1), full2d),        # fc2 bias
            ],
            out_specs=pl.BlockSpec((B, 1), full2d),
            scratch_shapes=[
                pltpu.VMEM((T * B, G), jnp.float32),  # precomputed x-projections
            ],
        ),
        compiler_params=pltpu.CompilerParams(
            dimension_semantics=("arbitrary",)),
    )(x2d, wih1, whh1, wih2, b2, whh2, wf1, bf1, wf2, bf2)


# ----------------------------------------------------------------------------
# Pure-JAX reference (correctness check of the Pallas path)
# ----------------------------------------------------------------------------
def _lstm_layer_ref(x_tbi, w_ih, w_hh, b_ih, b_hh):
    T, B, _ = x_tbi.shape
    H = w_hh.shape[1]

    def step(carry, x_t):
        h, c = carry
        g = x_t @ w_ih.T + b_ih + h @ w_hh.T + b_hh
        i, f, gg, o = jnp.split(g, 4, axis=-1)
        i, f, o = jax.nn.sigmoid(i), jax.nn.sigmoid(f), jax.nn.sigmoid(o)
        gg = jnp.tanh(gg)
        c = f * c + i * gg
        h = o * jnp.tanh(c)
        return (h, c), h

    init = (jnp.zeros((B, H), jnp.float32), jnp.zeros((B, H), jnp.float32))
    _, hs = jax.lax.scan(step, init, x_tbi)
    return hs


def single_lstm_forward_ref(x_bti, p):
    x_tbi = jnp.transpose(x_bti, (1, 0, 2)).astype(jnp.float32)
    h1 = _lstm_layer_ref(x_tbi, p["w_ih0"], p["w_hh0"], p["b_ih0"], p["b_hh0"])
    h2 = _lstm_layer_ref(h1, p["w_ih1"], p["w_hh1"], p["b_ih1"], p["b_hh1"])
    z = jnp.maximum(h2[-1] @ p["w_fc1"].T + p["b_fc1"], 0.0)
    return z @ p["w_fc2"].T + p["b_fc2"]


# ----------------------------------------------------------------------------
def make_params(key, input_size, hidden_size):
    k = 1.0 / jnp.sqrt(hidden_size)
    names_shapes = [
        ("w_ih0", (4 * hidden_size, input_size)),
        ("w_hh0", (4 * hidden_size, hidden_size)),
        ("b_ih0", (4 * hidden_size,)),
        ("b_hh0", (4 * hidden_size,)),
        ("w_ih1", (4 * hidden_size, hidden_size)),
        ("w_hh1", (4 * hidden_size, hidden_size)),
        ("b_ih1", (4 * hidden_size,)),
        ("b_hh1", (4 * hidden_size,)),
        ("w_fc1", (hidden_size // 2, hidden_size)),
        ("b_fc1", (hidden_size // 2,)),
        ("w_fc2", (1, hidden_size // 2)),
        ("b_fc2", (1,)),
    ]
    keys = jax.random.split(key, len(names_shapes))
    return {
        name: jax.random.uniform(kk, shape, jnp.float32, minval=-k, maxval=k)
        for kk, (name, shape) in zip(keys, names_shapes)
    }


if __name__ == "__main__":
    # Batch raised to 8 (fills the f32 sublanes of every vreg; per-step cost is
    # identical to B=2 — review item).
    INPUT_SIZE, HIDDEN, B, T = 16, 32, 8, 8

    root = jax.random.PRNGKey(0)
    k_x, k_p = jax.random.split(root)
    x = jax.random.normal(k_x, (B, T, INPUT_SIZE), jnp.float32)  # batch_first
    params = make_params(k_p, INPUT_SIZE, HIDDEN)

    fwd = jax.jit(single_lstm_forward)
    out = jax.block_until_ready(fwd(x, params))
    assert out.shape == (B, 1), out.shape

    ref = jax.block_until_ready(single_lstm_forward_ref(x, params))
    assert jnp.allclose(out, ref, atol=2e-3, rtol=2e-3), (out, ref)

    print("KERNEL_OK")
</pallas_src>

<mosaic_0001>
module attributes {stable_mosaic.version = 11 : i64} {
  func.func @_fused_lstm_kernel(%arg0: i32, %arg1: memref<64x128xf32, #tpu.memory_space<vmem>>, %arg2: memref<128x512xf32, #tpu.memory_space<vmem>>, %arg3: memref<128x512xf32, #tpu.memory_space<vmem>>, %arg4: memref<128x512xf32, #tpu.memory_space<vmem>>, %arg5: memref<1x512xf32, #tpu.memory_space<vmem>>, %arg6: memref<128x512xf32, #tpu.memory_space<vmem>>, %arg7: memref<128x128xf32, #tpu.memory_space<vmem>>, %arg8: memref<1x128xf32, #tpu.memory_space<vmem>>, %arg9: memref<1x128xf32, #tpu.memory_space<vmem>>, %arg10: memref<1x1xf32, #tpu.memory_space<vmem>>, %arg11: memref<8x1xf32, #tpu.memory_space<vmem>>, %arg12: memref<64x512xf32, #tpu.memory_space<vmem>>) attributes {dimension_semantics = [#tpu.dimension_semantics<arbitrary>], iteration_bounds = array<i64: 1>, scalar_prefetch = 0 : i64, scratch_operands = 1 : i64, tpu.core_type = #tpu.core_type<tc>, window_params = [{pipeline_mode = #tpu.pipeline_mode<synchronous>, transform_indices = @transform_0, window_bounds = array<i64: 64, 128>}, {pipeline_mode = #tpu.pipeline_mode<synchronous>, transform_indices = @transform_1, window_bounds = array<i64: 128, 512>}, {pipeline_mode = #tpu.pipeline_mode<synchronous>, transform_indices = @transform_2, window_bounds = array<i64: 128, 512>}, {pipeline_mode = #tpu.pipeline_mode<synchronous>, transform_indices = @transform_3, window_bounds = array<i64: 128, 512>}, {pipeline_mode = #tpu.pipeline_mode<synchronous>, transform_indices = @transform_4, window_bounds = array<i64: 1, 512>}, {pipeline_mode = #tpu.pipeline_mode<synchronous>, transform_indices = @transform_5, window_bounds = array<i64: 128, 512>}, {pipeline_mode = #tpu.pipeline_mode<synchronous>, transform_indices = @transform_6, window_bounds = array<i64: 128, 128>}, {pipeline_mode = #tpu.pipeline_mode<synchronous>, transform_indices = @transform_7, window_bounds = array<i64: 1, 128>}, {pipeline_mode = #tpu.pipeline_mode<synchronous>, transform_indices = @transform_8, window_bounds = array<i64: 1, 128>}, {pipeline_mode = #tpu.pipeline_mode<synchronous>, transform_indices = @transform_9, window_bounds = array<i64: 1, 1>}, {pipeline_mode = #tpu.pipeline_mode<synchronous>, transform_indices = @transform_10, window_bounds = array<i64: 8, 1>}]} {
    %c0 = arith.constant 0 : index
    %c0_0 = arith.constant 0 : index
    %0 = vector.load %arg1[%c0, %c0_0] : memref<64x128xf32, #tpu.memory_space<vmem>>, vector<64x128xf32>
    %c0_1 = arith.constant 0 : index
    %c0_2 = arith.constant 0 : index
    %1 = vector.load %arg2[%c0_1, %c0_2] : memref<128x512xf32, #tpu.memory_space<vmem>>, vector<128x512xf32>
    %cst = arith.constant dense<0.000000e+00> : vector<64x512xf32>
    %2 = tpu.matmul %0, %1, %cst {dimension_numbers = #tpu.dot_dimension_numbers<[1], [0], [0], [1], [0, 0, 1, 1], [], []>} : vector<64x128xf32>, vector<128x512xf32>, vector<64x512xf32> -> vector<64x512xf32>
    %c0_3 = arith.constant 0 : index
    %c0_4 = arith.constant 0 : index
    %3 = vector.load %arg12[%c0_3, %c0_4] : memref<64x512xf32, #tpu.memory_space<vmem>>, vector<64x512xf32>
    tpu.vector_store %arg12[%c0_3, %c0_4], %2 {strides = array<i32>} : memref<64x512xf32, #tpu.memory_space<vmem>>, vector<64x512xf32>,
    %c0_5 = arith.constant 0 : index
    %c0_6 = arith.constant 0 : index
    %4 = vector.load %arg5[%c0_5, %c0_6] : memref<1x512xf32, #tpu.memory_space<vmem>>, vector<1x512xf32>
    %5 = vector.shape_cast %4 : vector<1x512xf32> to vector<1x512xf32>
    %6 = vector.broadcast %5 : vector<1x512xf32> to vector<8x512xf32>
    %cst_7 = arith.constant 0.000000e+00 : f32
    %7 = vector.broadcast %cst_7 : f32 to vector<8x128xf32>
    %c0_8 = arith.constant 0 : index
    %c0_9 = arith.constant 0 : index
    %8 = vector.load %arg12[%c0_8, %c0_9] : memref<64x512xf32, #tpu.memory_space<vmem>>, vector<8x512xf32>
    %c0_10 = arith.constant 0 : index
    %c0_11 = arith.constant 0 : index
    %9 = vector.load %arg3[%c0_10, %c0_11] : memref<128x512xf32, #tpu.memory_space<vmem>>, vector<128x512xf32>
    %cst_12 = arith.constant dense<0.000000e+00> : vector<8x512xf32>
    %10 = tpu.matmul %7, %9, %cst_12 {dimension_numbers = #tpu.dot_dimension_numbers<[1], [0], [0], [1], [0, 0, 1, 1], [], []>} : vector<8x128xf32>, vector<128x512xf32>, vector<8x512xf32> -> vector<8x512xf32>
    %11 = arith.addf %8, %10 : vector<8x512xf32>
    %12 = vector.extract_strided_slice %11 {offsets = [0, 0], sizes = [8, 128], strides = [1, 1]} : vector<8x512xf32> to vector<8x128xf32>
    %cst_13 = arith.constant 5.000000e-01 : f32
    %13 = vector.broadcast %cst_13 : f32 to vector<8x128xf32>
    %14 = arith.mulf %13, %12 : vector<8x128xf32>
    %15 = math.tanh %14 : vector<8x128xf32>
    %cst_14 = arith.constant 5.000000e-01 : f32
    %16 = vector.broadcast %cst_14 : f32 to vector<8x128xf32>
    %17 = arith.mulf %16, %15 : vector<8x128xf32>
    %cst_15 = arith.constant 5.000000e-01 : f32
    %18 = vector.broadcast %cst_15 : f32 to vector<8x128xf32>
    %19 = arith.addf %17, %18 : vector<8x128xf32>
    %20 = vector.extract_strided_slice %11 {offsets = [0, 128], sizes = [8, 128], strides = [1, 1]} : vector<8x512xf32> to vector<8x128xf32>
    %cst_16 = arith.constant 5.000000e-01 : f32
    %21 = vector.broadcast %cst_16 : f32 to vector<8x128xf32>
    %22 = arith.mulf %21, %20 : vector<8x128xf32>
    %23 = math.tanh %22 : vector<8x128xf32>
    %cst_17 = arith.constant 5.000000e-01 : f32
    %24 = vector.broadcast %cst_17 : f32 to vector<8x128xf32>
    %25 = arith.mulf %24, %23 : vector<8x128xf32>
    %cst_18 = arith.constant 5.000000e-01 : f32
    %26 = vector.broadcast %cst_18 : f32 to vector<8x128xf32>
    %27 = arith.addf %25, %26 : vector<8x128xf32>
    %28 = vector.extract_strided_slice %11 {offsets = [0, 256], sizes = [8, 128], strides = [1, 1]} : vector<8x512xf32> to vector<8x128xf32>
    %29 = math.tanh %28 : vector<8x128xf32>
    %30 = vector.extract_strided_slice %11 {offsets = [0, 384], sizes = [8, 128], strides = [1, 1]} : vector<8x512xf32> to vector<8x128xf32>
    %cst_19 = arith.constant 5.000000e-01 : f32
    %31 = vector.broadcast %cst_19 : f32 to vector<8x128xf32>
    %32 = arith.mulf %31, %30 : vector<8x128xf32>
    %33 = math.tanh %32 : vector<8x128xf32>
    %cst_20 = arith.constant 5.000000e-01 : f32
    %34 = vector.broadcast %cst_20 : f32 to vector<8x128xf32>
    %35 = arith.mulf %34, %33 : vector<8x128xf32>
    %cst_21 = arith.constant 5.000000e-01 : f32
    %36 = vector.broadcast %cst_21 : f32 to vector<8x128xf32>
    %37 = arith.addf %35, %36 : vector<8x128xf32>
    %38 = arith.mulf %27, %7 : vector<8x128xf32>
    %39 = arith.mulf %19, %29 : vector<8x128xf32>
    %40 = arith.addf %38, %39 : vector<8x128xf32>
    %41 = math.tanh %40 : vector<8x128xf32>
    %42 = arith.mulf %37, %41 : vector<8x128xf32>
    %c0_22 = arith.constant 0 : index
    %c0_23 = arith.constant 0 : index
    %43 = vector.load %arg4[%c0_22, %c0_23] : memref<128x512xf32, #tpu.memory_space<vmem>>, vector<128x512xf32>
    %cst_24 = arith.constant dense<0.000000e+00> : vector<8x512xf32>
    %44 = tpu.matmul %42, %43, %cst_24 {dimension_numbers = #tpu.dot_dimension_numbers<[1], [0], [0], [1], [0, 0, 1, 1], [], []>} : vector<8x128xf32>, vector<128x512xf32>, vector<8x512xf32> -> vector<8x512xf32>
    %45 = arith.addf %44, %6 : vector<8x512xf32>
    %c0_25 = arith.constant 0 : index
    %c0_26 = arith.constant 0 : index
    %46 = vector.load %arg6[%c0_25, %c0_26] : memref<128x512xf32, #tpu.memory_space<vmem>>, vector<128x512xf32>
    %cst_27 = arith.constant dense<0.000000e+00> : vector<8x512xf32>
    %47 = tpu.matmul %7, %46, %cst_27 {dimension_numbers = #tpu.dot_dimension_numbers<[1], [0], [0], [1], [0, 0, 1, 1], [], []>} : vector<8x128xf32>, vector<128x512xf32>, vector<8x512xf32> -> vector<8x512xf32>
    %48 = arith.addf %45, %47 : vector<8x512xf32>
    %49 = vector.extract_strided_slice %48 {offsets = [0, 0], sizes = [8, 128], strides = [1, 1]} : vector<8x512xf32> to vector<8x128xf32>
    %cst_28 = arith.constant 5.000000e-01 : f32
    %50 = vector.broadcast %cst_28 : f32 to vector<8x128xf32>
    %51 = arith.mulf %50, %49 : vector<8x128xf32>
    %52 = math.tanh %51 : vector<8x128xf32>
    %cst_29 = arith.constant 5.000000e-01 : f32
    %53 = vector.broadcast %cst_29 : f32 to vector<8x128xf32>
    %54 = arith.mulf %53, %52 : vector<8x128xf32>
    %cst_30 = arith.constant 5.000000e-01 : f32
    %55 = vector.broadcast %cst_30 : f32 to vector<8x128xf32>
    %56 = arith.addf %54, %55 : vector<8x128xf32>
    %57 = vector.extract_strided_slice %48 {offsets = [0, 128], sizes = [8, 128], strides = [1, 1]} : vector<8x512xf32> to vector<8x128xf32>
    %cst_31 = arith.constant 5.000000e-01 : f32
    %58 = vector.broadcast %cst_31 : f32 to vector<8x128xf32>
    %59 = arith.mulf %58, %57 : vector<8x128xf32>
    %60 = math.tanh %59 : vector<8x128xf32>
    %cst_32 = arith.constant 5.000000e-01 : f32
    %61 = vector.broadcast %cst_32 : f32 to vector<8x128xf32>
    %62 = arith.mulf %61, %60 : vector<8x128xf32>
    %cst_33 = arith.constant 5.000000e-01 : f32
    %63 = vector.broadcast %cst_33 : f32 to vector<8x128xf32>
    %64 = arith.addf %62, %63 : vector<8x128xf32>
    %65 = vector.extract_strided_slice %48 {offsets = [0, 256], sizes = [8, 128], strides = [1, 1]} : vector<8x512xf32> to vector<8x128xf32>
    %66 = math.tanh %65 : vector<8x128xf32>
    %67 = vector.extract_strided_slice %48 {offsets = [0, 384], sizes = [8, 128], strides = [1, 1]} : vector<8x512xf32> to vector<8x128xf32>
    %cst_34 = arith.constant 5.000000e-01 : f32
    %68 = vector.broadcast %cst_34 : f32 to vector<8x128xf32>
    %69 = arith.mulf %68, %67 : vector<8x128xf32>
    %70 = math.tanh %69 : vector<8x128xf32>
    %cst_35 = arith.constant 5.000000e-01 : f32
    %71 = vector.broadcast %cst_35 : f32 to vector<8x128xf32>
    %72 = arith.mulf %71, %70 : vector<8x128xf32>
    %cst_36 = arith.constant 5.000000e-01 : f32
    %73 = vector.broadcast %cst_36 : f32 to vector<8x128xf32>
    %74 = arith.addf %72, %73 : vector<8x128xf32>
    %75 = arith.mulf %64, %7 : vector<8x128xf32>
    %76 = arith.mulf %56, %66 : vector<8x128xf32>
    %77 = arith.addf %75, %76 : vector<8x128xf32>
    %78 = math.tanh %77 : vector<8x128xf32>
    %79 = arith.mulf %74, %78 : vector<8x128xf32>
    %c8 = arith.constant 8 : index
    %c0_37 = arith.constant 0 : index
    %80 = vector.load %arg12[%c8, %c0_37] : memref<64x512xf32, #tpu.memory_space<vmem>>, vector<8x512xf32>
    %c0_38 = arith.constant 0 : index
    %c0_39 = arith.constant 0 : index
    %81 = vector.load %arg3[%c0_38, %c0_39] : memref<128x512xf32, #tpu.memory_space<vmem>>, vector<128x512xf32>
    %cst_40 = arith.constant dense<0.000000e+00> : vector<8x512xf32>
    %82 = tpu.matmul %42, %81, %cst_40 {dimension_numbers = #tpu.dot_dimension_numbers<[1], [0], [0], [1], [0, 0, 1, 1], [], []>} : vector<8x128xf32>, vector<128x512xf32>, vector<8x512xf32> -> vector<8x512xf32>
    %83 = arith.addf %80, %82 : vector<8x512xf32>
    %84 = vector.extract_strided_slice %83 {offsets = [0, 0], sizes = [8, 128], strides = [1, 1]} : vector<8x512xf32> to vector<8x128xf32>
    %cst_41 = arith.constant 5.000000e-01 : f32
    %85 = vector.broadcast %cst_41 : f32 to vector<8x128xf32>
    %86 = arith.mulf %85, %84 : vector<8x128xf32>
    %87 = math.tanh %86 : vector<8x128xf32>
    %cst_42 = arith.constant 5.000000e-01 : f32
    %88 = vector.broadcast %cst_42 : f32 to vector<8x128xf32>
    %89 = arith.mulf %88, %87 : vector<8x128xf32>
    %cst_43 = arith.constant 5.000000e-01 : f32
    %90 = vector.broadcast %cst_43 : f32 to vector<8x128xf32>
    %91 = arith.addf %89, %90 : vector<8x128xf32>
    %92 = vector.extract_strided_slice %83 {offsets = [0, 128], sizes = [8, 128], strides = [1, 1]} : vector<8x512xf32> to vector<8x128xf32>
    %cst_44 = arith.constant 5.000000e-01 : f32
    %93 = vector.broadcast %cst_44 : f32 to vector<8x128xf32>
    %94 = arith.mulf %93, %92 : vector<8x128xf32>
    %95 = math.tanh %94 : vector<8x128xf32>
    %cst_45 = arith.constant 5.000000e-01 : f32
    %96 = vector.broadcast %cst_45 : f32 to vector<8x128xf32>
    %97 = arith.mulf %96, %95 : vector<8x128xf32>
    %cst_46 = arith.constant 5.000000e-01 : f32
    %98 = vector.broadcast %cst_46 : f32 to vector<8x128xf32>
    %99 = arith.addf %97, %98 : vector<8x128xf32>
    %100 = vector.extract_strided_slice %83 {offsets = [0, 256], sizes = [8, 128], strides = [1, 1]} : vector<8x512xf32> to vector<8x128xf32>
    %101 = math.tanh %100 : vector<8x128xf32>
    %102 = vector.extract_strided_slice %83 {offsets = [0, 384], sizes = [8, 128], strides = [1, 1]} : vector<8x512xf32> to vector<8x128xf32>
    %cst_47 = arith.constant 5.000000e-01 : f32
    %103 = vector.broadcast %cst_47 : f32 to vector<8x128xf32>
    %104 = arith.mulf %103, %102 : vector<8x128xf32>
    %105 = math.tanh %104 : vector<8x128xf32>
    %cst_48 = arith.constant 5.000000e-01 : f32
    %106 = vector.broadcast %cst_48 : f32 to vector<8x128xf32>
    %107 = arith.mulf %106, %105 : vector<8x128xf32>
    %cst_49 = arith.constant 5.000000e-01 : f32
    %108 = vector.broadcast %cst_49 : f32 to vector<8x128xf32>
    %109 = arith.addf %107, %108 : vector<8x128xf32>
    %110 = arith.mulf %99, %40 : vector<8x128xf32>
    %111 = arith.mulf %91, %101 : vector<8x128xf32>
    %112 = arith.addf %110, %111 : vector<8x128xf32>
    %113 = math.tanh %112 : vector<8x128xf32>
    %114 = arith.mulf %109, %113 : vector<8x128xf32>
    %c0_50 = arith.constant 0 : index
    %c0_51 = arith.constant 0 : index
    %115 = vector.load %arg4[%c0_50, %c0_51] : memref<128x512xf32, #tpu.memory_space<vmem>>, vector<128x512xf32>
    %cst_52 = arith.constant dense<0.000000e+00> : vector<8x512xf32>
    %116 = tpu.matmul %114, %115, %cst_52 {dimension_numbers = #tpu.dot_dimension_numbers<[1], [0], [0], [1], [0, 0, 1, 1], [], []>} : vector<8x128xf32>, vector<128x512xf32>, vector<8x512xf32> -> vector<8x512xf32>
    %117 = arith.addf %116, %6 : vector<8x512xf32>
    %c0_53 = arith.constant 0 : index
    %c0_54 = arith.constant 0 : index
    %118 = vector.load %arg6[%c0_53, %c0_54] : memref<128x512xf32, #tpu.memory_space<vmem>>, vector<128x512xf32>
    %cst_55 = arith.constant dense<0.000000e+00> : vector<8x512xf32>
    %119 = tpu.matmul %79, %118, %cst_55 {dimension_numbers = #tpu.dot_dimension_numbers<[1], [0], [0], [1], [0, 0, 1, 1], [], []>} : vector<8x128xf32>, vector<128x512xf32>, vector<8x512xf32> -> vector<8x512xf32>
    %120 = arith.addf %117, %119 : vector<8x512xf32>
    %121 = vector.extract_strided_slice %120 {offsets = [0, 0], sizes = [8, 128], strides = [1, 1]} : vector<8x512xf32> to vector<8x128xf32>
    %cst_56 = arith.constant 5.000000e-01 : f32
    %122 = vector.broadcast %cst_56 : f32 to vector<8x128xf32>
    %123 = arith.mulf %122, %121 : vector<8x128xf32>
    %124 = math.tanh %123 : vector<8x128xf32>
    %cst_57 = arith.constant 5.000000e-01 : f32
    %125 = vector.broadcast %cst_57 : f32 to vector<8x128xf32>
    %126 = arith.mulf %125, %124 : vector<8x128xf32>
    %cst_58 = arith.constant 5.000000e-01 : f32
    %127 = vector.broadcast %cst_58 : f32 to vector<8x128xf32>
    %128 = arith.addf %126, %127 : vector<8x128xf32>
    %129 = vector.extract_strided_slice %120 {offsets = [0, 128], sizes = [8, 128], strides = [1, 1]} : vector<8x512xf32> to vector<8x128xf32>
    %cst_59 = arith.constant 5.000000e-01 : f32
    %130 = vector.broadcast %cst_59 : f32 to vector<8x128xf32>
    %131 = arith.mulf %130, %129 : vector<8x128xf32>
    %132 = math.tanh %131 : vector<8x128xf32>
    %cst_60 = arith.constant 5.000000e-01 : f32
    %133 = vector.broadcast %cst_60 : f32 to vector<8x128xf32>
    %134 = arith.mulf %133, %132 : vector<8x128xf32>
    %cst_61 = arith.constant 5.000000e-01 : f32
    %135 = vector.broadcast %cst_61 : f32 to vector<8x128xf32>
    %136 = arith.addf %134, %135 : vector<8x128xf32>
    %137 = vector.extract_strided_slice %120 {offsets = [0, 256], sizes = [8, 128], strides = [1, 1]} : vector<8x512xf32> to vector<8x128xf32>
    %138 = math.tanh %137 : vector<8x128xf32>
    %139 = vector.extract_strided_slice %120 {offsets = [0, 384], sizes = [8, 128], strides = [1, 1]} : vector<8x512xf32> to vector<8x128xf32>
    %cst_62 = arith.constant 5.000000e-01 : f32
    %140 = vector.broadcast %cst_62 : f32 to vector<8x128xf32>
    %141 = arith.mulf %140, %139 : vector<8x128xf32>
    %142 = math.tanh %141 : vector<8x128xf32>
    %cst_63 = arith.constant 5.000000e-01 : f32
    %143 = vector.broadcast %cst_63 : f32 to vector<8x128xf32>
    %144 = arith.mulf %143, %142 : vector<8x128xf32>
    %cst_64 = arith.constant 5.000000e-01 : f32
    %145 = vector.broadcast %cst_64 : f32 to vector<8x128xf32>
    %146 = arith.addf %144, %145 : vector<8x128xf32>
    %147 = arith.mulf %136, %77 : vector<8x128xf32>
    %148 = arith.mulf %128, %138 : vector<8x128xf32>
    %149 = arith.addf %147, %148 : vector<8x128xf32>
    %150 = math.tanh %149 : vector<8x128xf32>
    %151 = arith.mulf %146, %150 : vector<8x128xf32>
    %c16 = arith.constant 16 : index
    %c0_65 = arith.constant 0 : index
    %152 = vector.load %arg12[%c16, %c0_65] : memref<64x512xf32, #tpu.memory_space<vmem>>, vector<8x512xf32>
    %c0_66 = arith.constant 0 : index
    %c0_67 = arith.constant 0 : index
    %153 = vector.load %arg3[%c0_66, %c0_67] : memref<128x512xf32, #tpu.memory_space<vmem>>, vector<128x512xf32>
    %cst_68 = arith.constant dense<0.000000e+00> : vector<8x512xf32>
    %154 = tpu.matmul %114, %153, %cst_68 {dimension_numbers = #tpu.dot_dimension_numbers<[1], [0], [0], [1], [0, 0, 1, 1], [], []>} : vector<8x128xf32>, vector<128x512xf32>, vector<8x512xf32> -> vector<8x512xf32>
    %155 = arith.addf %152, %154 : vector<8x512xf32>
    %156 = vector.extract_strided_slice %155 {offsets = [0, 0], sizes = [8, 128], strides = [1, 1]} : vector<8x512xf32> to vector<8x128xf32>
    %cst_69 = arith.constant 5.000000e-01 : f32
    %157 = vector.broadcast %cst_69 : f32 to vector<8x128xf32>
    %158 = arith.mulf %157, %156 : vector<8x128xf32>
    %159 = math.tanh %158 : vector<8x128xf32>
    %cst_70 = arith.constant 5.000000e-01 : f32
    %160 = vector.broadcast %cst_70 : f32 to vector<8x128xf32>
    %161 = arith.mulf %160, %159 : vector<8x128xf32>
    %cst_71 = arith.constant 5.000000e-01 : f32
    %162 = vector.broadcast %cst_71 : f32 to vector<8x128xf32>
    %163 = arith.addf %161, %162 : vector<8x128xf32>
    %164 = vector.extract_strided_slice %155 {offsets = [0, 128], sizes = [8, 128], strides = [1, 1]} : vector<8x512xf32> to vector<8x128xf32>
    %cst_72 = arith.constant 5.000000e-01 : f32
    %165 = vector.broadcast %cst_72 : f32 to vector<8x128xf32>
    %166 = arith.mulf %165, %164 : vector<8x128xf32>
    %167 = math.tanh %166 : vector<8x128xf32>
    %cst_73 = arith.constant 5.000000e-01 : f32
    %168 = vector.broadcast %cst_73 : f32 to vector<8x128xf32>
    %169 = arith.mulf %168, %167 : vector<8x128xf32>
    %cst_74 = arith.constant 5.000000e-01 : f32
    %170 = vector.broadcast %cst_74 : f32 to vector<8x128xf32>
    %171 = arith.addf %169, %170 : vector<8x128xf32>
    %172 = vector.extract_strided_slice %155 {offsets = [0, 256], sizes = [8, 128], strides = [1, 1]} : vector<8x512xf32> to vector<8x128xf32>
    %173 = math.tanh %172 : vector<8x128xf32>
    %174 = vector.extract_strided_slice %155 {offsets = [0, 384], sizes = [8, 128], strides = [1, 1]} : vector<8x512xf32> to vector<8x128xf32>
    %cst_75 = arith.constant 5.000000e-01 : f32
    %175 = vector.broadcast %cst_75 : f32 to vector<8x128xf32>
    %176 = arith.mulf %175, %174 : vector<8x128xf32>
    %177 = math.tanh %176 : vector<8x128xf32>
    %cst_76 = arith.constant 5.000000e-01 : f32
    %178 = vector.broadcast %cst_76 : f32 to vector<8x128xf32>
    %179 = arith.mulf %178, %177 : vector<8x128xf32>
    %cst_77 = arith.constant 5.000000e-01 : f32
    %180 = vector.broadcast %cst_77 : f32 to vector<8x128xf32>
    %181 = arith.addf %179, %180 : vector<8x128xf32>
    %182 = arith.mulf %171, %112 : vector<8x128xf32>
    %183 = arith.mulf %163, %173 : vector<8x128xf32>
    %184 = arith.addf %182, %183 : vector<8x128xf32>
    %185 = math.tanh %184 : vector<8x128xf32>
    %186 = arith.mulf %181, %185 : vector<8x128xf32>
    %c0_78 = arith.constant 0 : index
    %c0_79 = arith.constant 0 : index
    %187 = vector.load %arg4[%c0_78, %c0_79] : memref<128x512xf32, #tpu.memory_space<vmem>>, vector<128x512xf32>
    %cst_80 = arith.constant dense<0.000000e+00> : vector<8x512xf32>
    %188 = tpu.matmul %186, %187, %cst_80 {dimension_numbers = #tpu.dot_dimension_numbers<[1], [0], [0], [1], [0, 0, 1, 1], [], []>} : vector<8x128xf32>, vector<128x512xf32>, vector<8x512xf32> -> vector<8x512xf32>
    %189 = arith.addf %188, %6 : vector<8x512xf32>
    %c0_81 = arith.constant 0 : index
    %c0_82 = arith.constant 0 : index
    %190 = vector.load %arg6[%c0_81, %c0_82] : memref<128x512xf32, #tpu.memory_space<vmem>>, vector<128x512xf32>
    %cst_83 = arith.constant dense<0.000000e+00> : vector<8x512xf32>
    %191 = tpu.matmul %151, %190, %cst_83 {dimension_numbers = #tpu.dot_dimension_numbers<[1], [0], [0], [1], [0, 0, 1, 1], [], []>} : vector<8x128xf32>, vector<128x512xf32>, vector<8x512xf32> -> vector<8x512xf32>
    %192 = arith.addf %189, %191 : vector<8x512xf32>
    %193 = vector.extract_strided_slice %192 {offsets = [0, 0], sizes = [8, 128], strides = [1, 1]} : vector<8x512xf32> to vector<8x128xf32>
    %cst_84 = arith.constant 5.000000e-01 : f32
    %194 = vector.broadcast %cst_84 : f32 to vector<8x128xf32>
    %195 = arith.mulf %194, %193 : vector<8x128xf32>
    %196 = math.tanh %195 : vector<8x128xf32>
    %cst_85 = arith.constant 5.000000e-01 : f32
    %197 = vector.broadcast %cst_85 : f32 to vector<8x128xf32>
    %198 = arith.mulf %197, %196 : vector<8x128xf32>
    %cst_86 = arith.constant 5.000000e-01 : f32
    %199 = vector.broadcast %cst_86 : f32 to vector<8x128xf32>
    %200 = arith.addf %198, %199 : vector<8x128xf32>
    %201 = vector.extract_strided_slice %192 {offsets = [0, 128], sizes = [8, 128], strides = [1, 1]} : vector<8x512xf32> to vector<8x128xf32>
    %cst_87 = arith.constant 5.000000e-01 : f32
    %202 = vector.broadcast %cst_87 : f32 to vector<8x128xf32>
    %203 = arith.mulf %202, %201 : vector<8x128xf32>
    %204 = math.tanh %203 : vector<8x128xf32>
    %cst_88 = arith.constant 5.000000e-01 : f32
    %205 = vector.broadcast %cst_88 : f32 to vector<8x128xf32>
    %206 = arith.mulf %205, %204 : vector<8x128xf32>
    %cst_89 = arith.constant 5.000000e-01 : f32
    %207 = vector.broadcast %cst_89 : f32 to vector<8x128xf32>
    %208 = arith.addf %206, %207 : vector<8x128xf32>
    %209 = vector.extract_strided_slice %192 {offsets = [0, 256], sizes = [8, 128], strides = [1, 1]} : vector<8x512xf32> to vector<8x128xf32>
    %210 = math.tanh %209 : vector<8x128xf32>
    %211 = vector.extract_strided_slice %192 {offsets = [0, 384], sizes = [8, 128], strides = [1, 1]} : vector<8x512xf32> to vector<8x128xf32>
    %cst_90 = arith.constant 5.000000e-01 : f32
    %212 = vector.broadcast %cst_90 : f32 to vector<8x128xf32>
    %213 = arith.mulf %212, %211 : vector<8x128xf32>
    %214 = math.tanh %213 : vector<8x128xf32>
    %cst_91 = arith.constant 5.000000e-01 : f32
    %215 = vector.broadcast %cst_91 : f32 to vector<8x128xf32>
    %216 = arith.mulf %215, %214 : vector<8x128xf32>
    %cst_92 = arith.constant 5.000000e-01 : f32
    %217 = vector.broadcast %cst_92 : f32 to vector<8x128xf32>
    %218 = arith.addf %216, %217 : vector<8x128xf32>
    %219 = arith.mulf %208, %149 : vector<8x128xf32>
    %220 = arith.mulf %200, %210 : vector<8x128xf32>
    %221 = arith.addf %219, %220 : vector<8x128xf32>
    %222 = math.tanh %221 : vector<8x128xf32>
    %223 = arith.mulf %218, %222 : vector<8x128xf32>
    %c24 = arith.constant 24 : index
    %c0_93 = arith.constant 0 : index
    %224 = vector.load %arg12[%c24, %c0_93] : memref<64x512xf32, #tpu.memory_space<vmem>>, vector<8x512xf32>
    %c0_94 = arith.constant 0 : index
    %c0_95 = arith.constant 0 : index
    %225 = vector.load %arg3[%c0_94, %c0_95] : memref<128x512xf32, #tpu.memory_space<vmem>>, vector<128x512xf32>
    %cst_96 = arith.constant dense<0.000000e+00> : vector<8x512xf32>
    %226 = tpu.matmul %186, %225, %cst_96 {dimension_numbers = #tpu.dot_dimension_numbers<[1], [0], [0], [1], [0, 0, 1, 1], [], []>} : vector<8x128xf32>, vector<128x512xf32>, vector<8x512xf32> -> vector<8x512xf32>
    %227 = arith.addf %224, %226 : vector<8x512xf32>
    %228 = vector.extract_strided_slice %227 {offsets = [0, 0], sizes = [8, 128], strides = [1, 1]} : vector<8x512xf32> to vector<8x128xf32>
    %cst_97 = arith.constant 5.000000e-01 : f32
    %229 = vector.broadcast %cst_97 : f32 to vector<8x128xf32>
    %230 = arith.mulf %229, %228 : vector<8x128xf32>
    %231 = math.tanh %230 : vector<8x128xf32>
    %cst_98 = arith.constant 5.000000e-01 : f32
    %232 = vector.broadcast %cst_98 : f32 to vector<8x128xf32>
    %233 = arith.mulf %232, %231 : vector<8x128xf32>
    %cst_99 = arith.constant 5.000000e-01 : f32
    %234 = vector.broadcast %cst_99 : f32 to vector<8x128xf32>
    %235 = arith.addf %233, %234 : vector<8x128xf32>
    %236 = vector.extract_strided_slice %227 {offsets = [0, 128], sizes = [8, 128], strides = [1, 1]} : vector<8x512xf32> to vector<8x128xf32>
    %cst_100 = arith.constant 5.000000e-01 : f32
    %237 = vector.broadcast %cst_100 : f32 to vector<8x128xf32>
    %238 = arith.mulf %237, %236 : vector<8x128xf32>
    %239 = math.tanh %238 : vector<8x128xf32>
    %cst_101 = arith.constant 5.000000e-01 : f32
    %240 = vector.broadcast %cst_101 : f32 to vector<8x128xf32>
    %241 = arith.mulf %240, %239 : vector<8x128xf32>
    %cst_102 = arith.constant 5.000000e-01 : f32
    %242 = vector.broadcast %cst_102 : f32 to vector<8x128xf32>
    %243 = arith.addf %241, %242 : vector<8x128xf32>
    %244 = vector.extract_strided_slice %227 {offsets = [0, 256], sizes = [8, 128], strides = [1, 1]} : vector<8x512xf32> to vector<8x128xf32>
    %245 = math.tanh %244 : vector<8x128xf32>
    %246 = vector.extract_strided_slice %227 {offsets = [0, 384], sizes = [8, 128], strides = [1, 1]} : vector<8x512xf32> to vector<8x128xf32>
    %cst_103 = arith.constant 5.000000e-01 : f32
    %247 = vector.broadcast %cst_103 : f32 to vector<8x128xf32>
    %248 = arith.mulf %247, %246 : vector<8x128xf32>
    %249 = math.tanh %248 : vector<8x128xf32>
    %cst_104 = arith.constant 5.000000e-01 : f32
    %250 = vector.broadcast %cst_104 : f32 to vector<8x128xf32>
    %251 = arith.mulf %250, %249 : vector<8x128xf32>
    %cst_105 = arith.constant 5.000000e-01 : f32
    %252 = vector.broadcast %cst_105 : f32 to vector<8x128xf32>
    %253 = arith.addf %251, %252 : vector<8x128xf32>
    %254 = arith.mulf %243, %184 : vector<8x128xf32>
    %255 = arith.mulf %235, %245 : vector<8x128xf32>
    %256 = arith.addf %254, %255 : vector<8x128xf32>
    %257 = math.tanh %256 : vector<8x128xf32>
    %258 = arith.mulf %253, %257 : vector<8x128xf32>
    %c0_106 = arith.constant 0 : index
    %c0_107 = arith.constant 0 : index
    %259 = vector.load %arg4[%c0_106, %c0_107] : memref<128x512xf32, #tpu.memory_space<vmem>>, vector<128x512xf32>
    %cst_108 = arith.constant dense<0.000000e+00> : vector<8x512xf32>
    %260 = tpu.matmul %258, %259, %cst_108 {dimension_numbers = #tpu.dot_dimension_numbers<[1], [0], [0], [1], [0, 0, 1, 1], [], []>} : vector<8x128xf32>, vector<128x512xf32>, vector<8x512xf32> -> vector<8x512xf32>
    %261 = arith.addf %260, %6 : vector<8x512xf32>
    %c0_109 = arith.constant 0 : index
    %c0_110 = arith.constant 0 : index
    %262 = vector.load %arg6[%c0_109, %c0_110] : memref<128x512xf32, #tpu.memory_space<vmem>>, vector<128x512xf32>
    %cst_111 = arith.constant dense<0.000000e+00> : vector<8x512xf32>
    %263 = tpu.matmul %223, %262, %cst_111 {dimension_numbers = #tpu.dot_dimension_numbers<[1], [0], [0], [1], [0, 0, 1, 1], [], []>} : vector<8x128xf32>, vector<128x512xf32>, vector<8x512xf32> -> vector<8x512xf32>
    %264 = arith.addf %261, %263 : vector<8x512xf32>
    %265 = vector.extract_strided_slice %264 {offsets = [0, 0], sizes = [8, 128], strides = [1, 1]} : vector<8x512xf32> to vector<8x128xf32>
    %cst_112 = arith.constant 5.000000e-01 : f32
    %266 = vector.broadcast %cst_112 : f32 to vector<8x128xf32>
    %267 = arith.mulf %266, %265 : vector<8x128xf32>
    %268 = math.tanh %267 : vector<8x128xf32>
    %cst_113 = arith.constant 5.000000e-01 : f32
    %269 = vector.broadcast %cst_113 : f32 to vector<8x128xf32>
    %270 = arith.mulf %269, %268 : vector<8x128xf32>
    %cst_114 = arith.constant 5.000000e-01 : f32
    %271 = vector.broadcast %cst_114 : f32 to vector<8x128xf32>
    %272 = arith.addf %270, %271 : vector<8x128xf32>
    %273 = vector.extract_strided_slice %264 {offsets = [0, 128], sizes = [8, 128], strides = [1, 1]} : vector<8x512xf32> to vector<8x128xf32>
    %cst_115 = arith.constant 5.000000e-01 : f32
    %274 = vector.broadcast %cst_115 : f32 to vector<8x128xf32>
    %275 = arith.mulf %274, %273 : vector<8x128xf32>
    %276 = math.tanh %275 : vector<8x128xf32>
    %cst_116 = arith.constant 5.000000e-01 : f32
    %277 = vector.broadcast %cst_116 : f32 to vector<8x128xf32>
    %278 = arith.mulf %277, %276 : vector<8x128xf32>
    %cst_117 = arith.constant 5.000000e-01 : f32
    %279 = vector.broadcast %cst_117 : f32 to vector<8x128xf32>
    %280 = arith.addf %278, %279 : vector<8x128xf32>
    %281 = vector.extract_strided_slice %264 {offsets = [0, 256], sizes = [8, 128], strides = [1, 1]} : vector<8x512xf32> to vector<8x128xf32>
    %282 = math.tanh %281 : vector<8x128xf32>
    %283 = vector.extract_strided_slice %264 {offsets = [0, 384], sizes = [8, 128], strides = [1, 1]} : vector<8x512xf32> to vector<8x128xf32>
    %cst_118 = arith.constant 5.000000e-01 : f32
    %284 = vector.broadcast %cst_118 : f32 to vector<8x128xf32>
    %285 = arith.mulf %284, %283 : vector<8x128xf32>
    %286 = math.tanh %285 : vector<8x128xf32>
    %cst_119 = arith.constant 5.000000e-01 : f32
    %287 = vector.broadcast %cst_119 : f32 to vector<8x128xf32>
    %288 = arith.mulf %287, %286 : vector<8x128xf32>
    %cst_120 = arith.constant 5.000000e-01 : f32
    %289 = vector.broadcast %cst_120 : f32 to vector<8x128xf32>
    %290 = arith.addf %288, %289 : vector<8x128xf32>
    %291 = arith.mulf %280, %221 : vector<8x128xf32>
    %292 = arith.mulf %272, %282 : vector<8x128xf32>
    %293 = arith.addf %291, %292 : vector<8x128xf32>
    %294 = math.tanh %293 : vector<8x128xf32>
    %295 = arith.mulf %290, %294 : vector<8x128xf32>
    %c32 = arith.constant 32 : index
    %c0_121 = arith.constant 0 : index
    %296 = vector.load %arg12[%c32, %c0_121] : memref<64x512xf32, #tpu.memory_space<vmem>>, vector<8x512xf32>
    %c0_122 = arith.constant 0 : index
    %c0_123 = arith.constant 0 : index
    %297 = vector.load %arg3[%c0_122, %c0_123] : memref<128x512xf32, #tpu.memory_space<vmem>>, vector<128x512xf32>
    %cst_124 = arith.constant dense<0.000000e+00> : vector<8x512xf32>
    %298 = tpu.matmul %258, %297, %cst_124 {dimension_numbers = #tpu.dot_dimension_numbers<[1], [0], [0], [1], [0, 0, 1, 1], [], []>} : vector<8x128xf32>, vector<128x512xf32>, vector<8x512xf32> -> vector<8x512xf32>
    %299 = arith.addf %296, %298 : vector<8x512xf32>
    %300 = vector.extract_strided_slice %299 {offsets = [0, 0], sizes = [8, 128], strides = [1, 1]} : vector<8x512xf32> to vector<8x128xf32>
    %cst_125 = arith.constant 5.000000e-01 : f32
    %301 = vector.broadcast %cst_125 : f32 to vector<8x128xf32>
    %302 = arith.mulf %301, %300 : vector<8x128xf32>
    %303 = math.tanh %302 : vector<8x128xf32>
    %cst_126 = arith.constant 5.000000e-01 : f32
    %304 = vector.broadcast %cst_126 : f32 to vector<8x128xf32>
    %305 = arith.mulf %304, %303 : vector<8x128xf32>
    %cst_127 = arith.constant 5.000000e-01 : f32
    %306 = vector.broadcast %cst_127 : f32 to vector<8x128xf32>
    %307 = arith.addf %305, %306 : vector<8x128xf32>
    %308 = vector.extract_strided_slice %299 {offsets = [0, 128], sizes = [8, 128], strides = [1, 1]} : vector<8x512xf32> to vector<8x128xf32>
    %cst_128 = arith.constant 5.000000e-01 : f32
    %309 = vector.broadcast %cst_128 : f32 to vector<8x128xf32>
    %310 = arith.mulf %309, %308 : vector<8x128xf32>
    %311 = math.tanh %310 : vector<8x128xf32>
    %cst_129 = arith.constant 5.000000e-01 : f32
    %312 = vector.broadcast %cst_129 : f32 to vector<8x128xf32>
    %313 = arith.mulf %312, %311 : vector<8x128xf32>
    %cst_130 = arith.constant 5.000000e-01 : f32
    %314 = vector.broadcast %cst_130 : f32 to vector<8x128xf32>
    %315 = arith.addf %313, %314 : vector<8x128xf32>
    %316 = vector.extract_strided_slice %299 {offsets = [0, 256], sizes = [8, 128], strides = [1, 1]} : vector<8x512xf32> to vector<8x128xf32>
    %317 = math.tanh %316 : vector<8x128xf32>
    %318 = vector.extract_strided_slice %299 {offsets = [0, 384], sizes = [8, 128], strides = [1, 1]} : vector<8x512xf32> to vector<8x128xf32>
    %cst_131 = arith.constant 5.000000e-01 : f32
    %319 = vector.broadcast %cst_131 : f32 to vector<8x128xf32>
    %320 = arith.mulf %319, %318 : vector<8x128xf32>
    %321 = math.tanh %320 : vector<8x128xf32>
    %cst_132 = arith.constant 5.000000e-01 : f32
    %322 = vector.broadcast %cst_132 : f32 to vector<8x128xf32>
    %323 = arith.mulf %322, %321 : vector<8x128xf32>
    %cst_133 = arith.constant 5.000000e-01 : f32
    %324 = vector.broadcast %cst_133 : f32 to vector<8x128xf32>
    %325 = arith.addf %323, %324 : vector<8x128xf32>
    %326 = arith.mulf %315, %256 : vector<8x128xf32>
    %327 = arith.mulf %307, %317 : vector<8x128xf32>
    %328 = arith.addf %326, %327 : vector<8x128xf32>
    %329 = math.tanh %328 : vector<8x128xf32>
    %330 = arith.mulf %325, %329 : vector<8x128xf32>
    %c0_134 = arith.constant 0 : index
    %c0_135 = arith.constant 0 : index
    %331 = vector.load %arg4[%c0_134, %c0_135] : memref<128x512xf32, #tpu.memory_space<vmem>>, vector<128x512xf32>
    %cst_136 = arith.constant dense<0.000000e+00> : vector<8x512xf32>
    %332 = tpu.matmul %330, %331, %cst_136 {dimension_numbers = #tpu.dot_dimension_numbers<[1], [0], [0], [1], [0, 0, 1, 1], [], []>} : vector<8x128xf32>, vector<128x512xf32>, vector<8x512xf32> -> vector<8x512xf32>
    %333 = arith.addf %332, %6 : vector<8x512xf32>
    %c0_137 = arith.constant 0 : index
    %c0_138 = arith.constant 0 : index
    %334 = vector.load %arg6[%c0_137, %c0_138] : memref<128x512xf32, #tpu.memory_space<vmem>>, vector<128x512xf32>
    %cst_139 = arith.constant dense<0.000000e+00> : vector<8x512xf32>
    %335 = tpu.matmul %295, %334, %cst_139 {dimension_numbers = #tpu.dot_dimension_numbers<[1], [0], [0], [1], [0, 0, 1, 1], [], []>} : vector<8x128xf32>, vector<128x512xf32>, vector<8x512xf32> -> vector<8x512xf32>
    %336 = arith.addf %333, %335 : vector<8x512xf32>
    %337 = vector.extract_strided_slice %336 {offsets = [0, 0], sizes = [8, 128], strides = [1, 1]} : vector<8x512xf32> to vector<8x128xf32>
    %cst_140 = arith.constant 5.000000e-01 : f32
    %338 = vector.broadcast %cst_140 : f32 to vector<8x128xf32>
    %339 = arith.mulf %338, %337 : vector<8x128xf32>
    %340 = math.tanh %339 : vector<8x128xf32>
    %cst_141 = arith.constant 5.000000e-01 : f32
    %341 = vector.broadcast %cst_141 : f32 to vector<8x128xf32>
    %342 = arith.mulf %341, %340 : vector<8x128xf32>
    %cst_142 = arith.constant 5.000000e-01 : f32
    %343 = vector.broadcast %cst_142 : f32 to vector<8x128xf32>
    %344 = arith.addf %342, %343 : vector<8x128xf32>
    %345 = vector.extract_strided_slice %336 {offsets = [0, 128], sizes = [8, 128], strides = [1, 1]} : vector<8x512xf32> to vector<8x128xf32>
    %cst_143 = arith.constant 5.000000e-01 : f32
    %346 = vector.broadcast %cst_143 : f32 to vector<8x128xf32>
    %347 = arith.mulf %346, %345 : vector<8x128xf32>
    %348 = math.tanh %347 : vector<8x128xf32>
    %cst_144 = arith.constant 5.000000e-01 : f32
    %349 = vector.broadcast %cst_144 : f32 to vector<8x128xf32>
    %350 = arith.mulf %349, %348 : vector<8x128xf32>
    %cst_145 = arith.constant 5.000000e-01 : f32
    %351 = vector.broadcast %cst_145 : f32 to vector<8x128xf32>
    %352 = arith.addf %350, %351 : vector<8x128xf32>
    %353 = vector.extract_strided_slice %336 {offsets = [0, 256], sizes = [8, 128], strides = [1, 1]} : vector<8x512xf32> to vector<8x128xf32>
    %354 = math.tanh %353 : vector<8x128xf32>
    %355 = vector.extract_strided_slice %336 {offsets = [0, 384], sizes = [8, 128], strides = [1, 1]} : vector<8x512xf32> to vector<8x128xf32>
    %cst_146 = arith.constant 5.000000e-01 : f32
    %356 = vector.broadcast %cst_146 : f32 to vector<8x128xf32>
    %357 = arith.mulf %356, %355 : vector<8x128xf32>
    %358 = math.tanh %357 : vector<8x128xf32>
    %cst_147 = arith.constant 5.000000e-01 : f32
    %359 = vector.broadcast %cst_147 : f32 to vector<8x128xf32>
    %360 = arith.mulf %359, %358 : vector<8x128xf32>
    %cst_148 = arith.constant 5.000000e-01 : f32
    %361 = vector.broadcast %cst_148 : f32 to vector<8x128xf32>
    %362 = arith.addf %360, %361 : vector<8x128xf32>
    %363 = arith.mulf %352, %293 : vector<8x128xf32>
    %364 = arith.mulf %344, %354 : vector<8x128xf32>
    %365 = arith.addf %363, %364 : vector<8x128xf32>
    %366 = math.tanh %365 : vector<8x128xf32>
    %367 = arith.mulf %362, %366 : vector<8x128xf32>
    %c40 = arith.constant 40 : index
    %c0_149 = arith.constant 0 : index
    %368 = vector.load %arg12[%c40, %c0_149] : memref<64x512xf32, #tpu.memory_space<vmem>>, vector<8x512xf32>
    %c0_150 = arith.constant 0 : index
    %c0_151 = arith.constant 0 : index
    %369 = vector.load %arg3[%c0_150, %c0_151] : memref<128x512xf32, #tpu.memory_space<vmem>>, vector<128x512xf32>
    %cst_152 = arith.constant dense<0.000000e+00> : vector<8x512xf32>
    %370 = tpu.matmul %330, %369, %cst_152 {dimension_numbers = #tpu.dot_dimension_numbers<[1], [0], [0], [1], [0, 0, 1, 1], [], []>} : vector<8x128xf32>, vector<128x512xf32>, vector<8x512xf32> -> vector<8x512xf32>
    %371 = arith.addf %368, %370 : vector<8x512xf32>
    %372 = vector.extract_strided_slice %371 {offsets = [0, 0], sizes = [8, 128], strides = [1, 1]} : vector<8x512xf32> to vector<8x128xf32>
    %cst_153 = arith.constant 5.000000e-01 : f32
    %373 = vector.broadcast %cst_153 : f32 to vector<8x128xf32>
    %374 = arith.mulf %373, %372 : vector<8x128xf32>
    %375 = math.tanh %374 : vector<8x128xf32>
    %cst_154 = arith.constant 5.000000e-01 : f32
    %376 = vector.broadcast %cst_154 : f32 to vector<8x128xf32>
    %377 = arith.mulf %376, %375 : vector<8x128xf32>
    %cst_155 = arith.constant 5.000000e-01 : f32
    %378 = vector.broadcast %cst_155 : f32 to vector<8x128xf32>
    %379 = arith.addf %377, %378 : vector<8x128xf32>
    %380 = vector.extract_strided_slice %371 {offsets = [0, 128], sizes = [8, 128], strides = [1, 1]} : vector<8x512xf32> to vector<8x128xf32>
    %cst_156 = arith.constant 5.000000e-01 : f32
    %381 = vector.broadcast %cst_156 : f32 to vector<8x128xf32>
    %382 = arith.mulf %381, %380 : vector<8x128xf32>
    %383 = math.tanh %382 : vector<8x128xf32>
    %cst_157 = arith.constant 5.000000e-01 : f32
    %384 = vector.broadcast %cst_157 : f32 to vector<8x128xf32>
    %385 = arith.mulf %384, %383 : vector<8x128xf32>
    %cst_158 = arith.constant 5.000000e-01 : f32
    %386 = vector.broadcast %cst_158 : f32 to vector<8x128xf32>
    %387 = arith.addf %385, %386 : vector<8x128xf32>
    %388 = vector.extract_strided_slice %371 {offsets = [0, 256], sizes = [8, 128], strides = [1, 1]} : vector<8x512xf32> to vector<8x128xf32>
    %389 = math.tanh %388 : vector<8x128xf32>
    %390 = vector.extract_strided_slice %371 {offsets = [0, 384], sizes = [8, 128], strides = [1, 1]} : vector<8x512xf32> to vector<8x128xf32>
    %cst_159 = arith.constant 5.000000e-01 : f32
    %391 = vector.broadcast %cst_159 : f32 to vector<8x128xf32>
    %392 = arith.mulf %391, %390 : vector<8x128xf32>
    %393 = math.tanh %392 : vector<8x128xf32>
    %cst_160 = arith.constant 5.000000e-01 : f32
    %394 = vector.broadcast %cst_160 : f32 to vector<8x128xf32>
    %395 = arith.mulf %394, %393 : vector<8x128xf32>
    %cst_161 = arith.constant 5.000000e-01 : f32
    %396 = vector.broadcast %cst_161 : f32 to vector<8x128xf32>
    %397 = arith.addf %395, %396 : vector<8x128xf32>
    %398 = arith.mulf %387, %328 : vector<8x128xf32>
    %399 = arith.mulf %379, %389 : vector<8x128xf32>
    %400 = arith.addf %398, %399 : vector<8x128xf32>
    %401 = math.tanh %400 : vector<8x128xf32>
    %402 = arith.mulf %397, %401 : vector<8x128xf32>
    %c0_162 = arith.constant 0 : index
    %c0_163 = arith.constant 0 : index
    %403 = vector.load %arg4[%c0_162, %c0_163] : memref<128x512xf32, #tpu.memory_space<vmem>>, vector<128x512xf32>
    %cst_164 = arith.constant dense<0.000000e+00> : vector<8x512xf32>
    %404 = tpu.matmul %402, %403, %cst_164 {dimension_numbers = #tpu.dot_dimension_numbers<[1], [0], [0], [1], [0, 0, 1, 1], [], []>} : vector<8x128xf32>, vector<128x512xf32>, vector<8x512xf32> -> vector<8x512xf32>
    %405 = arith.addf %404, %6 : vector<8x512xf32>
    %c0_165 = arith.constant 0 : index
    %c0_166 = arith.constant 0 : index
    %406 = vector.load %arg6[%c0_165, %c0_166] : memref<128x512xf32, #tpu.memory_space<vmem>>, vector<128x512xf32>
    %cst_167 = arith.constant dense<0.000000e+00> : vector<8x512xf32>
    %407 = tpu.matmul %367, %406, %cst_167 {dimension_numbers = #tpu.dot_dimension_numbers<[1], [0], [0], [1], [0, 0, 1, 1], [], []>} : vector<8x128xf32>, vector<128x512xf32>, vector<8x512xf32> -> vector<8x512xf32>
    %408 = arith.addf %405, %407 : vector<8x512xf32>
    %409 = vector.extract_strided_slice %408 {offsets = [0, 0], sizes = [8, 128], strides = [1, 1]} : vector<8x512xf32> to vector<8x128xf32>
    %cst_168 = arith.constant 5.000000e-01 : f32
    %410 = vector.broadcast %cst_168 : f32 to vector<8x128xf32>
    %411 = arith.mulf %410, %409 : vector<8x128xf32>
    %412 = math.tanh %411 : vector<8x128xf32>
    %cst_169 = arith.constant 5.000000e-01 : f32
    %413 = vector.broadcast %cst_169 : f32 to vector<8x128xf32>
    %414 = arith.mulf %413, %412 : vector<8x128xf32>
    %cst_170 = arith.constant 5.000000e-01 : f32
    %415 = vector.broadcast %cst_170 : f32 to vector<8x128xf32>
    %416 = arith.addf %414, %415 : vector<8x128xf32>
    %417 = vector.extract_strided_slice %408 {offsets = [0, 128], sizes = [8, 128], strides = [1, 1]} : vector<8x512xf32> to vector<8x128xf32>
    %cst_171 = arith.constant 5.000000e-01 : f32
    %418 = vector.broadcast %cst_171 : f32 to vector<8x128xf32>
    %419 = arith.mulf %418, %417 : vector<8x128xf32>
    %420 = math.tanh %419 : vector<8x128xf32>
    %cst_172 = arith.constant 5.000000e-01 : f32
    %421 = vector.broadcast %cst_172 : f32 to vector<8x128xf32>
    %422 = arith.mulf %421, %420 : vector<8x128xf32>
    %cst_173 = arith.constant 5.000000e-01 : f32
    %423 = vector.broadcast %cst_173 : f32 to vector<8x128xf32>
    %424 = arith.addf %422, %423 : vector<8x128xf32>
    %425 = vector.extract_strided_slice %408 {offsets = [0, 256], sizes = [8, 128], strides = [1, 1]} : vector<8x512xf32> to vector<8x128xf32>
    %426 = math.tanh %425 : vector<8x128xf32>
    %427 = vector.extract_strided_slice %408 {offsets = [0, 384], sizes = [8, 128], strides = [1, 1]} : vector<8x512xf32> to vector<8x128xf32>
    %cst_174 = arith.constant 5.000000e-01 : f32
    %428 = vector.broadcast %cst_174 : f32 to vector<8x128xf32>
    %429 = arith.mulf %428, %427 : vector<8x128xf32>
    %430 = math.tanh %429 : vector<8x128xf32>
    %cst_175 = arith.constant 5.000000e-01 : f32
    %431 = vector.broadcast %cst_175 : f32 to vector<8x128xf32>
    %432 = arith.mulf %431, %430 : vector<8x128xf32>
    %cst_176 = arith.constant 5.000000e-01 : f32
    %433 = vector.broadcast %cst_176 : f32 to vector<8x128xf32>
    %434 = arith.addf %432, %433 : vector<8x128xf32>
    %435 = arith.mulf %424, %365 : vector<8x128xf32>
    %436 = arith.mulf %416, %426 : vector<8x128xf32>
    %437 = arith.addf %435, %436 : vector<8x128xf32>
    %438 = math.tanh %437 : vector<8x128xf32>
    %439 = arith.mulf %434, %438 : vector<8x128xf32>
    %c48 = arith.constant 48 : index
    %c0_177 = arith.constant 0 : index
    %440 = vector.load %arg12[%c48, %c0_177] : memref<64x512xf32, #tpu.memory_space<vmem>>, vector<8x512xf32>
    %c0_178 = arith.constant 0 : index
    %c0_179 = arith.constant 0 : index
    %441 = vector.load %arg3[%c0_178, %c0_179] : memref<128x512xf32, #tpu.memory_space<vmem>>, vector<128x512xf32>
    %cst_180 = arith.constant dense<0.000000e+00> : vector<8x512xf32>
    %442 = tpu.matmul %402, %441, %cst_180 {dimension_numbers = #tpu.dot_dimension_numbers<[1], [0], [0], [1], [0, 0, 1, 1], [], []>} : vector<8x128xf32>, vector<128x512xf32>, vector<8x512xf32> -> vector<8x512xf32>
    %443 = arith.addf %440, %442 : vector<8x512xf32>
    %444 = vector.extract_strided_slice %443 {offsets = [0, 0], sizes = [8, 128], strides = [1, 1]} : vector<8x512xf32> to vector<8x128xf32>
    %cst_181 = arith.constant 5.000000e-01 : f32
    %445 = vector.broadcast %cst_181 : f32 to vector<8x128xf32>
    %446 = arith.mulf %445, %444 : vector<8x128xf32>
    %447 = math.tanh %446 : vector<8x128xf32>
    %cst_182 = arith.constant 5.000000e-01 : f32
    %448 = vector.broadcast %cst_182 : f32 to vector<8x128xf32>
    %449 = arith.mulf %448, %447 : vector<8x128xf32>
    %cst_183 = arith.constant 5.000000e-01 : f32
    %450 = vector.broadcast %cst_183 : f32 to vector<8x128xf32>
    %451 = arith.addf %449, %450 : vector<8x128xf32>
    %452 = vector.extract_strided_slice %443 {offsets = [0, 128], sizes = [8, 128], strides = [1, 1]} : vector<8x512xf32> to vector<8x128xf32>
    %cst_184 = arith.constant 5.000000e-01 : f32
    %453 = vector.broadcast %cst_184 : f32 to vector<8x128xf32>
    %454 = arith.mulf %453, %452 : vector<8x128xf32>
    %455 = math.tanh %454 : vector<8x128xf32>
    %cst_185 = arith.constant 5.000000e-01 : f32
    %456 = vector.broadcast %cst_185 : f32 to vector<8x128xf32>
    %457 = arith.mulf %456, %455 : vector<8x128xf32>
    %cst_186 = arith.constant 5.000000e-01 : f32
    %458 = vector.broadcast %cst_186 : f32 to vector<8x128xf32>
    %459 = arith.addf %457, %458 : vector<8x128xf32>
    %460 = vector.extract_strided_slice %443 {offsets = [0, 256], sizes = [8, 128], strides = [1, 1]} : vector<8x512xf32> to vector<8x128xf32>
    %461 = math.tanh %460 : vector<8x128xf32>
    %462 = vector.extract_strided_slice %443 {offsets = [0, 384], sizes = [8, 128], strides = [1, 1]} : vector<8x512xf32> to vector<8x128xf32>
    %cst_187 = arith.constant 5.000000e-01 : f32
    %463 = vector.broadcast %cst_187 : f32 to vector<8x128xf32>
    %464 = arith.mulf %463, %462 : vector<8x128xf32>
    %465 = math.tanh %464 : vector<8x128xf32>
    %cst_188 = arith.constant 5.000000e-01 : f32
    %466 = vector.broadcast %cst_188 : f32 to vector<8x128xf32>
    %467 = arith.mulf %466, %465 : vector<8x128xf32>
    %cst_189 = arith.constant 5.000000e-01 : f32
    %468 = vector.broadcast %cst_189 : f32 to vector<8x128xf32>
    %469 = arith.addf %467, %468 : vector<8x128xf32>
    %470 = arith.mulf %459, %400 : vector<8x128xf32>
    %471 = arith.mulf %451, %461 : vector<8x128xf32>
    %472 = arith.addf %470, %471 : vector<8x128xf32>
    %473 = math.tanh %472 : vector<8x128xf32>
    %474 = arith.mulf %469, %473 : vector<8x128xf32>
    %c0_190 = arith.constant 0 : index
    %c0_191 = arith.constant 0 : index
    %475 = vector.load %arg4[%c0_190, %c0_191] : memref<128x512xf32, #tpu.memory_space<vmem>>, vector<128x512xf32>
    %cst_192 = arith.constant dense<0.000000e+00> : vector<8x512xf32>
    %476 = tpu.matmul %474, %475, %cst_192 {dimension_numbers = #tpu.dot_dimension_numbers<[1], [0], [0], [1], [0, 0, 1, 1], [], []>} : vector<8x128xf32>, vector<128x512xf32>, vector<8x512xf32> -> vector<8x512xf32>
    %477 = arith.addf %476, %6 : vector<8x512xf32>
    %c0_193 = arith.constant 0 : index
    %c0_194 = arith.constant 0 : index
    %478 = vector.load %arg6[%c0_193, %c0_194] : memref<128x512xf32, #tpu.memory_space<vmem>>, vector<128x512xf32>
    %cst_195 = arith.constant dense<0.000000e+00> : vector<8x512xf32>
    %479 = tpu.matmul %439, %478, %cst_195 {dimension_numbers = #tpu.dot_dimension_numbers<[1], [0], [0], [1], [0, 0, 1, 1], [], []>} : vector<8x128xf32>, vector<128x512xf32>, vector<8x512xf32> -> vector<8x512xf32>
    %480 = arith.addf %477, %479 : vector<8x512xf32>
    %481 = vector.extract_strided_slice %480 {offsets = [0, 0], sizes = [8, 128], strides = [1, 1]} : vector<8x512xf32> to vector<8x128xf32>
    %cst_196 = arith.constant 5.000000e-01 : f32
    %482 = vector.broadcast %cst_196 : f32 to vector<8x128xf32>
    %483 = arith.mulf %482, %481 : vector<8x128xf32>
    %484 = math.tanh %483 : vector<8x128xf32>
    %cst_197 = arith.constant 5.000000e-01 : f32
    %485 = vector.broadcast %cst_197 : f32 to vector<8x128xf32>
    %486 = arith.mulf %485, %484 : vector<8x128xf32>
    %cst_198 = arith.constant 5.000000e-01 : f32
    %487 = vector.broadcast %cst_198 : f32 to vector<8x128xf32>
    %488 = arith.addf %486, %487 : vector<8x128xf32>
    %489 = vector.extract_strided_slice %480 {offsets = [0, 128], sizes = [8, 128], strides = [1, 1]} : vector<8x512xf32> to vector<8x128xf32>
    %cst_199 = arith.constant 5.000000e-01 : f32
    %490 = vector.broadcast %cst_199 : f32 to vector<8x128xf32>
    %491 = arith.mulf %490, %489 : vector<8x128xf32>
    %492 = math.tanh %491 : vector<8x128xf32>
    %cst_200 = arith.constant 5.000000e-01 : f32
    %493 = vector.broadcast %cst_200 : f32 to vector<8x128xf32>
    %494 = arith.mulf %493, %492 : vector<8x128xf32>
    %cst_201 = arith.constant 5.000000e-01 : f32
    %495 = vector.broadcast %cst_201 : f32 to vector<8x128xf32>
    %496 = arith.addf %494, %495 : vector<8x128xf32>
    %497 = vector.extract_strided_slice %480 {offsets = [0, 256], sizes = [8, 128], strides = [1, 1]} : vector<8x512xf32> to vector<8x128xf32>
    %498 = math.tanh %497 : vector<8x128xf32>
    %499 = vector.extract_strided_slice %480 {offsets = [0, 384], sizes = [8, 128], strides = [1, 1]} : vector<8x512xf32> to vector<8x128xf32>
    %cst_202 = arith.constant 5.000000e-01 : f32
    %500 = vector.broadcast %cst_202 : f32 to vector<8x128xf32>
    %501 = arith.mulf %500, %499 : vector<8x128xf32>
    %502 = math.tanh %501 : vector<8x128xf32>
    %cst_203 = arith.constant 5.000000e-01 : f32
    %503 = vector.broadcast %cst_203 : f32 to vector<8x128xf32>
    %504 = arith.mulf %503, %502 : vector<8x128xf32>
    %cst_204 = arith.constant 5.000000e-01 : f32
    %505 = vector.broadcast %cst_204 : f32 to vector<8x128xf32>
    %506 = arith.addf %504, %505 : vector<8x128xf32>
    %507 = arith.mulf %496, %437 : vector<8x128xf32>
    %508 = arith.mulf %488, %498 : vector<8x128xf32>
    %509 = arith.addf %507, %508 : vector<8x128xf32>
    %510 = math.tanh %509 : vector<8x128xf32>
    %511 = arith.mulf %506, %510 : vector<8x128xf32>
    %c56 = arith.constant 56 : index
    %c0_205 = arith.constant 0 : index
    %512 = vector.load %arg12[%c56, %c0_205] : memref<64x512xf32, #tpu.memory_space<vmem>>, vector<8x512xf32>
    %c0_206 = arith.constant 0 : index
    %c0_207 = arith.constant 0 : index
    %513 = vector.load %arg3[%c0_206, %c0_207] : memref<128x512xf32, #tpu.memory_space<vmem>>, vector<128x512xf32>
    %cst_208 = arith.constant dense<0.000000e+00> : vector<8x512xf32>
    %514 = tpu.matmul %474, %513, %cst_208 {dimension_numbers = #tpu.dot_dimension_numbers<[1], [0], [0], [1], [0, 0, 1, 1], [], []>} : vector<8x128xf32>, vector<128x512xf32>, vector<8x512xf32> -> vector<8x512xf32>
    %515 = arith.addf %512, %514 : vector<8x512xf32>
    %516 = vector.extract_strided_slice %515 {offsets = [0, 0], sizes = [8, 128], strides = [1, 1]} : vector<8x512xf32> to vector<8x128xf32>
    %cst_209 = arith.constant 5.000000e-01 : f32
    %517 = vector.broadcast %cst_209 : f32 to vector<8x128xf32>
    %518 = arith.mulf %517, %516 : vector<8x128xf32>
    %519 = math.tanh %518 : vector<8x128xf32>
    %cst_210 = arith.constant 5.000000e-01 : f32
    %520 = vector.broadcast %cst_210 : f32 to vector<8x128xf32>
    %521 = arith.mulf %520, %519 : vector<8x128xf32>
    %cst_211 = arith.constant 5.000000e-01 : f32
    %522 = vector.broadcast %cst_211 : f32 to vector<8x128xf32>
    %523 = arith.addf %521, %522 : vector<8x128xf32>
    %524 = vector.extract_strided_slice %515 {offsets = [0, 128], sizes = [8, 128], strides = [1, 1]} : vector<8x512xf32> to vector<8x128xf32>
    %cst_212 = arith.constant 5.000000e-01 : f32
    %525 = vector.broadcast %cst_212 : f32 to vector<8x128xf32>
    %526 = arith.mulf %525, %524 : vector<8x128xf32>
    %527 = math.tanh %526 : vector<8x128xf32>
    %cst_213 = arith.constant 5.000000e-01 : f32
    %528 = vector.broadcast %cst_213 : f32 to vector<8x128xf32>
    %529 = arith.mulf %528, %527 : vector<8x128xf32>
    %cst_214 = arith.constant 5.000000e-01 : f32
    %530 = vector.broadcast %cst_214 : f32 to vector<8x128xf32>
    %531 = arith.addf %529, %530 : vector<8x128xf32>
    %532 = vector.extract_strided_slice %515 {offsets = [0, 256], sizes = [8, 128], strides = [1, 1]} : vector<8x512xf32> to vector<8x128xf32>
    %533 = math.tanh %532 : vector<8x128xf32>
    %534 = vector.extract_strided_slice %515 {offsets = [0, 384], sizes = [8, 128], strides = [1, 1]} : vector<8x512xf32> to vector<8x128xf32>
    %cst_215 = arith.constant 5.000000e-01 : f32
    %535 = vector.broadcast %cst_215 : f32 to vector<8x128xf32>
    %536 = arith.mulf %535, %534 : vector<8x128xf32>
    %537 = math.tanh %536 : vector<8x128xf32>
    %cst_216 = arith.constant 5.000000e-01 : f32
    %538 = vector.broadcast %cst_216 : f32 to vector<8x128xf32>
    %539 = arith.mulf %538, %537 : vector<8x128xf32>
    %cst_217 = arith.constant 5.000000e-01 : f32
    %540 = vector.broadcast %cst_217 : f32 to vector<8x128xf32>
    %541 = arith.addf %539, %540 : vector<8x128xf32>
    %542 = arith.mulf %531, %472 : vector<8x128xf32>
    %543 = arith.mulf %523, %533 : vector<8x128xf32>
    %544 = arith.addf %542, %543 : vector<8x128xf32>
    %545 = math.tanh %544 : vector<8x128xf32>
    %546 = arith.mulf %541, %545 : vector<8x128xf32>
    %c0_218 = arith.constant 0 : index
    %c0_219 = arith.constant 0 : index
    %547 = vector.load %arg4[%c0_218, %c0_219] : memref<128x512xf32, #tpu.memory_space<vmem>>, vector<128x512xf32>
    %cst_220 = arith.constant dense<0.000000e+00> : vector<8x512xf32>
    %548 = tpu.matmul %546, %547, %cst_220 {dimension_numbers = #tpu.dot_dimension_numbers<[1], [0], [0], [1], [0, 0, 1, 1], [], []>} : vector<8x128xf32>, vector<128x512xf32>, vector<8x512xf32> -> vector<8x512xf32>
    %549 = arith.addf %548, %6 : vector<8x512xf32>
    %c0_221 = arith.constant 0 : index
    %c0_222 = arith.constant 0 : index
    %550 = vector.load %arg6[%c0_221, %c0_222] : memref<128x512xf32, #tpu.memory_space<vmem>>, vector<128x512xf32>
    %cst_223 = arith.constant dense<0.000000e+00> : vector<8x512xf32>
    %551 = tpu.matmul %511, %550, %cst_223 {dimension_numbers = #tpu.dot_dimension_numbers<[1], [0], [0], [1], [0, 0, 1, 1], [], []>} : vector<8x128xf32>, vector<128x512xf32>, vector<8x512xf32> -> vector<8x512xf32>
    %552 = arith.addf %549, %551 : vector<8x512xf32>
    %553 = vector.extract_strided_slice %552 {offsets = [0, 0], sizes = [8, 128], strides = [1, 1]} : vector<8x512xf32> to vector<8x128xf32>
    %cst_224 = arith.constant 5.000000e-01 : f32
    %554 = vector.broadcast %cst_224 : f32 to vector<8x128xf32>
    %555 = arith.mulf %554, %553 : vector<8x128xf32>
    %556 = math.tanh %555 : vector<8x128xf32>
    %cst_225 = arith.constant 5.000000e-01 : f32
    %557 = vector.broadcast %cst_225 : f32 to vector<8x128xf32>
    %558 = arith.mulf %557, %556 : vector<8x128xf32>
    %cst_226 = arith.constant 5.000000e-01 : f32
    %559 = vector.broadcast %cst_226 : f32 to vector<8x128xf32>
    %560 = arith.addf %558, %559 : vector<8x128xf32>
    %561 = vector.extract_strided_slice %552 {offsets = [0, 128], sizes = [8, 128], strides = [1, 1]} : vector<8x512xf32> to vector<8x128xf32>
    %cst_227 = arith.constant 5.000000e-01 : f32
    %562 = vector.broadcast %cst_227 : f32 to vector<8x128xf32>
    %563 = arith.mulf %562, %561 : vector<8x128xf32>
    %564 = math.tanh %563 : vector<8x128xf32>
    %cst_228 = arith.constant 5.000000e-01 : f32
    %565 = vector.broadcast %cst_228 : f32 to vector<8x128xf32>
    %566 = arith.mulf %565, %564 : vector<8x128xf32>
    %cst_229 = arith.constant 5.000000e-01 : f32
    %567 = vector.broadcast %cst_229 : f32 to vector<8x128xf32>
    %568 = arith.addf %566, %567 : vector<8x128xf32>
    %569 = vector.extract_strided_slice %552 {offsets = [0, 256], sizes = [8, 128], strides = [1, 1]} : vector<8x512xf32> to vector<8x128xf32>
    %570 = math.tanh %569 : vector<8x128xf32>
    %571 = vector.extract_strided_slice %552 {offsets = [0, 384], sizes = [8, 128], strides = [1, 1]} : vector<8x512xf32> to vector<8x128xf32>
    %cst_230 = arith.constant 5.000000e-01 : f32
    %572 = vector.broadcast %cst_230 : f32 to vector<8x128xf32>
    %573 = arith.mulf %572, %571 : vector<8x128xf32>
    %574 = math.tanh %573 : vector<8x128xf32>
    %cst_231 = arith.constant 5.000000e-01 : f32
    %575 = vector.broadcast %cst_231 : f32 to vector<8x128xf32>
    %576 = arith.mulf %575, %574 : vector<8x128xf32>
    %cst_232 = arith.constant 5.000000e-01 : f32
    %577 = vector.broadcast %cst_232 : f32 to vector<8x128xf32>
    %578 = arith.addf %576, %577 : vector<8x128xf32>
    %579 = arith.mulf %568, %509 : vector<8x128xf32>
    %580 = arith.mulf %560, %570 : vector<8x128xf32>
    %581 = arith.addf %579, %580 : vector<8x128xf32>
    %582 = math.tanh %581 : vector<8x128xf32>
    %583 = arith.mulf %578, %582 : vector<8x128xf32>
    %c0_233 = arith.constant 0 : index
    %c0_234 = arith.constant 0 : index
    %584 = vector.load %arg7[%c0_233, %c0_234] : memref<128x128xf32, #tpu.memory_space<vmem>>, vector<128x128xf32>
    %cst_235 = arith.constant dense<0.000000e+00> : vector<8x128xf32>
    %585 = tpu.matmul %583, %584, %cst_235 {dimension_numbers = #tpu.dot_dimension_numbers<[1], [0], [0], [1], [0, 0, 1, 1], [], []>} : vector<8x128xf32>, vector<128x128xf32>, vector<8x128xf32> -> vector<8x128xf32>
    %c0_236 = arith.constant 0 : index
    %c0_237 = arith.constant 0 : index
    %586 = vector.load %arg8[%c0_236, %c0_237] : memref<1x128xf32, #tpu.memory_space<vmem>>, vector<1x128xf32>
    %587 = vector.broadcast %586 : vector<1x128xf32> to vector<8x128xf32>
    %588 = arith.addf %585, %587 : vector<8x128xf32>
    %cst_238 = arith.constant 0.000000e+00 : f32
    %589 = vector.broadcast %cst_238 : f32 to vector<8x128xf32>
    %590 = arith.maximumf %588, %589 : vector<8x128xf32>
    %c0_239 = arith.constant 0 : index
    %c0_240 = arith.constant 0 : index
    %591 = vector.load %arg9[%c0_239, %c0_240] : memref<1x128xf32, #tpu.memory_space<vmem>>, vector<1x128xf32>
    %592 = vector.broadcast %591 : vector<1x128xf32> to vector<8x128xf32>
    %593 = arith.mulf %590, %592 : vector<8x128xf32>
    %cst_241 = arith.constant dense<0.000000e+00> : vector<8xf32>
    %594 = vector.multi_reduction <add>, %593, %cst_241 [1] : vector<8x128xf32> to vector<8xf32>
    %595 = vector.shape_cast %594 : vector<8xf32> to vector<8x1xf32>
    %c0_242 = arith.constant 0 : index
    %c0_243 = arith.constant 0 : index
    %596 = vector.load %arg10[%c0_242, %c0_243] : memref<1x1xf32, #tpu.memory_space<vmem>>, vector<1x1xf32>
    %597 = vector.broadcast %596 : vector<1x1xf32> to vector<8x1xf32>
    %598 = arith.addf %595, %597 : vector<8x1xf32>
    %c0_244 = arith.constant 0 : index
    %c0_245 = arith.constant 0 : index
    %599 = vector.load %arg11[%c0_244, %c0_245] : memref<8x1xf32, #tpu.memory_space<vmem>>, vector<8x1xf32>
    tpu.vector_store %arg11[%c0_244, %c0_245], %598 {strides = array<i32>} : memref<8x1xf32, #tpu.memory_space<vmem>>, vector<8x1xf32>,
    return
  }
  func.func @transform_0(%arg0: i32) -> (i32, i32) {
    %c0_i32 = arith.constant 0 : i32
    %c0_i32_0 = arith.constant 0 : i32
    %c0_i32_1 = arith.constant 0 : i32
    return %c0_i32, %c0_i32_0 : i32, i32
  }
  func.func @transform_1(%arg0: i32) -> (i32, i32) {
    %c0_i32 = arith.constant 0 : i32
    %c0_i32_0 = arith.constant 0 : i32
    %c0_i32_1 = arith.constant 0 : i32
    return %c0_i32, %c0_i32_0 : i32, i32
  }
  func.func @transform_2(%arg0: i32) -> (i32, i32) {
    %c0_i32 = arith.constant 0 : i32
    %c0_i32_0 = arith.constant 0 : i32
    %c0_i32_1 = arith.constant 0 : i32
    return %c0_i32, %c0_i32_0 : i32, i32
  }
  func.func @transform_3(%arg0: i32) -> (i32, i32) {
    %c0_i32 = arith.constant 0 : i32
    %c0_i32_0 = arith.constant 0 : i32
    %c0_i32_1 = arith.constant 0 : i32
    return %c0_i32, %c0_i32_0 : i32, i32
  }
  func.func @transform_4(%arg0: i32) -> (i32, i32) {
    %c0_i32 = arith.constant 0 : i32
    %c0_i32_0 = arith.constant 0 : i32
    %c0_i32_1 = arith.constant 0 : i32
    return %c0_i32, %c0_i32_0 : i32, i32
  }
  func.func @transform_5(%arg0: i32) -> (i32, i32) {
    %c0_i32 = arith.constant 0 : i32
    %c0_i32_0 = arith.constant 0 : i32
    %c0_i32_1 = arith.constant 0 : i32
    return %c0_i32, %c0_i32_0 : i32, i32
  }
  func.func @transform_6(%arg0: i32) -> (i32, i32) {
    %c0_i32 = arith.constant 0 : i32
    %c0_i32_0 = arith.constant 0 : i32
    %c0_i32_1 = arith.constant 0 : i32
    return %c0_i32, %c0_i32_0 : i32, i32
  }
  func.func @transform_7(%arg0: i32) -> (i32, i32) {
    %c0_i32 = arith.constant 0 : i32
    %c0_i32_0 = arith.constant 0 : i32
    %c0_i32_1 = arith.constant 0 : i32
    return %c0_i32, %c0_i32_0 : i32, i32
  }
  func.func @transform_8(%arg0: i32) -> (i32, i32) {
    %c0_i32 = arith.constant 0 : i32
    %c0_i32_0 = arith.constant 0 : i32
    %c0_i32_1 = arith.constant 0 : i32
    return %c0_i32, %c0_i32_0 : i32, i32
  }
  func.func @transform_9(%arg0: i32) -> (i32, i32) {
    %c0_i32 = arith.constant 0 : i32
    %c0_i32_0 = arith.constant 0 : i32
    %c0_i32_1 = arith.constant 0 : i32
    return %c0_i32, %c0_i32_0 : i32, i32
  }
  func.func @transform_10(%arg0: i32) -> (i32, i32) {
    %c0_i32 = arith.constant 0 : i32
    %c0_i32_0 = arith.constant 0 : i32
    %c0_i32_1 = arith.constant 0 : i32
    return %c0_i32, %c0_i32_0 : i32, i32
  }
}

</mosaic_0001>

<llo_original>
// kernel: single_lstm_forward.1
$region0: #{single_lstm_forward.1}
  #allocation0 [shape = 'u32[]', space=smem, size = 0x4, offset = 0x4, fixed_abs, tag = 'smem constant byte address 0x4 - core index']
  #allocation1 [shape = 'u32[144,128]{1,0:T(1,128)}', space=vmem, size = 0x12000, scoped, tag = 'internal scratch']
  #allocation2 [shape = 'f32[64,512]{1,0:T(8,128)}', space=vmem, size = 0x20000, scoped, tag = 'scratch operand']
  #allocation3 [shape = 'f32[1,1]{1,0:T(1,128)S(1)}', space=vmem, size = 0x200, scoped, tag = 'scoped memory for single_lstm_forward.1']
  %s0 = inlined_call_operand.vmem [shape: f32[64,128], index: 0, kind: input, shape index: {}]
  %s1 = inlined_call_operand.vmem [shape: f32[128,512], index: 1, kind: input, shape index: {}]
  %s2 = inlined_call_operand.vmem [shape: f32[128,512], index: 2, kind: input, shape index: {}]
  %s3 = inlined_call_operand.vmem [shape: f32[128,512], index: 3, kind: input, shape index: {}]
  %s4 = inlined_call_operand.vmem [shape: f32[1,512], index: 4, kind: input, shape index: {}]
  %s5 = inlined_call_operand.vmem [shape: f32[128,512], index: 5, kind: input, shape index: {}]
  %s6 = inlined_call_operand.vmem [shape: f32[128,128], index: 6, kind: input, shape index: {}]
  %s7 = inlined_call_operand.vmem [shape: f32[1,128], index: 7, kind: input, shape index: {}]
  %s8 = inlined_call_operand.vmem [shape: f32[1,128], index: 8, kind: input, shape index: {}]
  %s9 = inlined_call_operand.<no memory space> [shape: f32[1,1], index: 9, kind: input, shape index: {}]
  %s10 = inlined_call_operand.vmem [shape: f32[8,1], index: 10, kind: output, shape index: {}]
  %s11 = sld [smem:[#allocation0]]
  $region50: #{single_lstm_forward.1} parent=0
    _
  %s13 = ssub.s32 1, %s11
  %s14 = scalar_select 0, %s13, %s11
  %v15 = vstv %s9
  %16 = vst [vmem:[#allocation3] sm:$0x1] %v15
  // Predicated region
  $region2: #{single_lstm_forward.1} parent=0 // pred_check
    _
  $region3: #{single_lstm_forward.1} parent=0 // pred_check_branch
    %18 = sbr.rel (0) target = $region5
  $region4: #{single_lstm_forward.1} parent=0 // pred_region
    _
  $region5: #{single_lstm_forward.1} parent=0 // pred_fallthru
    _
  // Predicated region
  $region6: #{single_lstm_forward.1} parent=0 // pred_check
    _
  $region7: #{single_lstm_forward.1} parent=0 // pred_check_branch
    %20 = sbr.rel (0) target = $region9
  $region8: #{single_lstm_forward.1} parent=0 // pred_region
    _
  $region9: #{single_lstm_forward.1} parent=0 // pred_fallthru
    _
  // Predicated region
  $region10: #{single_lstm_forward.1} parent=0 // pred_check
    _
  $region11: #{single_lstm_forward.1} parent=0 // pred_check_branch
    %22 = sbr.rel (0) target = $region13
  $region12: #{single_lstm_forward.1} parent=0 // pred_region
    _
  $region13: #{single_lstm_forward.1} parent=0 // pred_fallthru
    _
  // Predicated region
  $region14: #{single_lstm_forward.1} parent=0 // pred_check
    _
  $region15: #{single_lstm_forward.1} parent=0 // pred_check_branch
    %24 = sbr.rel (0) target = $region17
  $region16: #{single_lstm_forward.1} parent=0 // pred_region
    _
  $region17: #{single_lstm_forward.1} parent=0 // pred_fallthru
    _
  // Predicated region
  $region18: #{single_lstm_forward.1} parent=0 // pred_check
    _
  $region19: #{single_lstm_forward.1} parent=0 // pred_check_branch
    %26 = sbr.rel (0) target = $region21
  $region20: #{single_lstm_forward.1} parent=0 // pred_region
    _
  $region21: #{single_lstm_forward.1} parent=0 // pred_fallthru
    _
  // Predicated region
  $region22: #{single_lstm_forward.1} parent=0 // pred_check
    _
  $region23: #{single_lstm_forward.1} parent=0 // pred_check_branch
    %28 = sbr.rel (0) target = $region25
  $region24: #{single_lstm_forward.1} parent=0 // pred_region
    _
  $region25: #{single_lstm_forward.1} parent=0 // pred_fallthru
    _
  // Predicated region
  $region26: #{single_lstm_forward.1} parent=0 // pred_check
    _
  $region27: #{single_lstm_forward.1} parent=0 // pred_check_branch
    %30 = sbr.rel (0) target = $region29
  $region28: #{single_lstm_forward.1} parent=0 // pred_region
    _
  $region29: #{single_lstm_forward.1} parent=0 // pred_fallthru
    _
  // Predicated region
  $region30: #{single_lstm_forward.1} parent=0 // pred_check
    _
  $region31: #{single_lstm_forward.1} parent=0 // pred_check_branch
    %32 = sbr.rel (0) target = $region33
  $region32: #{single_lstm_forward.1} parent=0 // pred_region
    _
  $region33: #{single_lstm_forward.1} parent=0 // pred_fallthru
    _
  // Predicated region
  $region34: #{single_lstm_forward.1} parent=0 // pred_check
    _
  $region35: #{single_lstm_forward.1} parent=0 // pred_check_branch
    %34 = sbr.rel (0) target = $region37
  $region36: #{single_lstm_forward.1} parent=0 // pred_region
    _
  $region37: #{single_lstm_forward.1} parent=0 // pred_fallthru
    _
  // Predicated region
  $region38: #{single_lstm_forward.1} parent=0 // pred_check
    _
  $region39: #{single_lstm_forward.1} parent=0 // pred_check_branch
    %36 = sbr.rel (0) target = $region41
  $region40: #{single_lstm_forward.1} parent=0 // pred_region
    _
  $region41: #{single_lstm_forward.1} parent=0 // pred_fallthru
    _
  %v37 = vld [vmem:[%s0] sm:$0xff]
  %v38 = vld [vmem:[%s0 + $0x8] sm:$0xff]
  %v39 = vld [vmem:[%s0 + $0x10] sm:$0xff]
  %v40 = vld [vmem:[%s0 + $0x18] sm:$0xff]
  %v41 = vld [vmem:[%s0 + $0x20] sm:$0xff]
  %v42 = vld [vmem:[%s0 + $0x28] sm:$0xff]
  %v43 = vld [vmem:[%s0 + $0x30] sm:$0xff]
  %v44 = vld [vmem:[%s0 + $0x38] sm:$0xff]
  %v45 = vld [vmem:[%s1] sm:$0xff]
  %v46 = vld [vmem:[%s1 + $0x8] sm:$0xff]
  %v47 = vld [vmem:[%s1 + $0x10] sm:$0xff]
  %v48 = vld [vmem:[%s1 + $0x18] sm:$0xff]
  %v49 = vld [vmem:[%s1 + $0x20] sm:$0xff]
  %v50 = vld [vmem:[%s1 + $0x28] sm:$0xff]
  %v51 = vld [vmem:[%s1 + $0x30] sm:$0xff]
  %v52 = vld [vmem:[%s1 + $0x38] sm:$0xff]
  %v53 = vld [vmem:[%s1 + $0x40] sm:$0xff]
  %v54 = vld [vmem:[%s1 + $0x48] sm:$0xff]
  %v55 = vld [vmem:[%s1 + $0x50] sm:$0xff]
  %v56 = vld [vmem:[%s1 + $0x58] sm:$0xff]
  %v57 = vld [vmem:[%s1 + $0x60] sm:$0xff]
  %v58 = vld [vmem:[%s1 + $0x68] sm:$0xff]
  %v59 = vld [vmem:[%s1 + $0x70] sm:$0xff]
  %v60 = vld [vmem:[%s1 + $0x78] sm:$0xff]
  %v61 = vld [vmem:[%s1 + $0x80] sm:$0xff]
  %v62 = vld [vmem:[%s1 + $0x88] sm:$0xff]
  %v63 = vld [vmem:[%s1 + $0x90] sm:$0xff]
  %v64 = vld [vmem:[%s1 + $0x98] sm:$0xff]
  %v65 = vld [vmem:[%s1 + $0xa0] sm:$0xff]
  %v66 = vld [vmem:[%s1 + $0xa8] sm:$0xff]
  %v67 = vld [vmem:[%s1 + $0xb0] sm:$0xff]
  %v68 = vld [vmem:[%s1 + $0xb8] sm:$0xff]
  %v69 = vld [vmem:[%s1 + $0xc0] sm:$0xff]
  %v70 = vld [vmem:[%s1 + $0xc8] sm:$0xff]
  %v71 = vld [vmem:[%s1 + $0xd0] sm:$0xff]
  %v72 = vld [vmem:[%s1 + $0xd8] sm:$0xff]
  %v73 = vld [vmem:[%s1 + $0xe0] sm:$0xff]
  %v74 = vld [vmem:[%s1 + $0xe8] sm:$0xff]
  %v75 = vld [vmem:[%s1 + $0xf0] sm:$0xff]
  %v76 = vld [vmem:[%s1 + $0xf8] sm:$0xff]
  %v77 = vld [vmem:[%s1 + $0x100] sm:$0xff]
  %v78 = vld [vmem:[%s1 + $0x108] sm:$0xff]
  %v79 = vld [vmem:[%s1 + $0x110] sm:$0xff]
  %v80 = vld [vmem:[%s1 + $0x118] sm:$0xff]
  %v81 = vld [vmem:[%s1 + $0x120] sm:$0xff]
  %v82 = vld [vmem:[%s1 + $0x128] sm:$0xff]
  %v83 = vld [vmem:[%s1 + $0x130] sm:$0xff]
  %v84 = vld [vmem:[%s1 + $0x138] sm:$0xff]
  %v85 = vld [vmem:[%s1 + $0x140] sm:$0xff]
  %v86 = vld [vmem:[%s1 + $0x148] sm:$0xff]
  %v87 = vld [vmem:[%s1 + $0x150] sm:$0xff]
  %v88 = vld [vmem:[%s1 + $0x158] sm:$0xff]
  %v89 = vld [vmem:[%s1 + $0x160] sm:$0xff]
  %v90 = vld [vmem:[%s1 + $0x168] sm:$0xff]
  %v91 = vld [vmem:[%s1 + $0x170] sm:$0xff]
  %v92 = vld [vmem:[%s1 + $0x178] sm:$0xff]
  %v93 = vld [vmem:[%s1 + $0x180] sm:$0xff]
  %v94 = vld [vmem:[%s1 + $0x188] sm:$0xff]
  %v95 = vld [vmem:[%s1 + $0x190] sm:$0xff]
  %v96 = vld [vmem:[%s1 + $0x198] sm:$0xff]
  %v97 = vld [vmem:[%s1 + $0x1a0] sm:$0xff]
  %v98 = vld [vmem:[%s1 + $0x1a8] sm:$0xff]
  %v99 = vld [vmem:[%s1 + $0x1b0] sm:$0xff]
  %v100 = vld [vmem:[%s1 + $0x1b8] sm:$0xff]
  %v101 = vld [vmem:[%s1 + $0x1c0] sm:$0xff]
  %v102 = vld [vmem:[%s1 + $0x1c8] sm:$0xff]
  %v103 = vld [vmem:[%s1 + $0x1d0] sm:$0xff]
  %v104 = vld [vmem:[%s1 + $0x1d8] sm:$0xff]
  %v105 = vld [vmem:[%s1 + $0x1e0] sm:$0xff]
  %v106 = vld [vmem:[%s1 + $0x1e8] sm:$0xff]
  %v107 = vld [vmem:[%s1 + $0x1f0] sm:$0xff]
  %v108 = vld [vmem:[%s1 + $0x1f8] sm:$0xff]
  %109 = vmatprep.subr.mxu0 %v46
  %110 = vmatpush1.msra.mxu0 %v45
  %111 = vmatprep.subr.mxu0 %v50
  %112 = vmatpush1.msra.mxu0 %v49
  %113 = vmatprep.subr.mxu0 %v54
  %114 = vmatpush1.msra.mxu0 %v53
  %115 = vmatprep.subr.mxu0 %v58
  %116 = vmatpush1.msra.mxu0 %v57
  %117 = vmatprep.subr.mxu0 %v62
  %118 = vmatpush1.msra.mxu0 %v61
  %119 = vmatprep.subr.mxu0 %v66
  %120 = vmatpush1.msra.mxu0 %v65
  %121 = vmatprep.subr.mxu0 %v70
  %122 = vmatpush1.msra.mxu0 %v69
  %123 = vmatprep.subr.mxu0 %v74
  %124 = vmatpush1.msra.mxu0 %v73
  %125 = vmatprep.subr.mxu0 %v78
  %126 = vmatpush1.msra.mxu0 %v77
  %127 = vmatprep.subr.mxu0 %v82
  %128 = vmatpush1.msra.mxu0 %v81
  %129 = vmatprep.subr.mxu0 %v86
  %130 = vmatpush1.msra.mxu0 %v85
  %131 = vmatprep.subr.mxu0 %v90
  %132 = vmatpush1.msra.mxu0 %v89
  %133 = vmatprep.subr.mxu0 %v94
  %134 = vmatpush1.msra.mxu0 %v93
  %135 = vmatprep.subr.mxu0 %v98
  %136 = vmatpush1.msra.mxu0 %v97
  %137 = vmatprep.subr.mxu0 %v102
  %138 = vmatpush1.msra.mxu0 %v101
  %139 = vmatprep.subr.mxu0 %v106
  %140 = vmatpush1.msra.mxu0 %v105
  %141 = vmatprep.subr.mxu0 0.0
  %142 = vmatpush1.msra.mxu0 0.0
  %143 = vmatprep.subr.mxu0 0.0
  %144 = vmatpush1.msra.mxu0 0.0
  %145 = vmatprep.subr.mxu0 0.0
  %146 = vmatpush1.msra.mxu0 0.0
  %147 = vmatprep.subr.mxu0 0.0
  %148 = vmatpush1.msra.mxu0 0.0
  %149 = vmatprep.subr.mxu0 0.0
  %150 = vmatpush1.msra.mxu0 0.0
  %151 = vmatprep.subr.mxu0 0.0
  %152 = vmatpush1.msra.mxu0 0.0
  %153 = vmatprep.subr.mxu0 0.0
  %154 = vmatpush1.msra.mxu0 0.0
  %155 = vmatprep.subr.mxu0 0.0
  %156 = vmatpush1.msra.mxu0 0.0
  %157 = vmatprep.subr.mxu0 0.0
  %158 = vmatpush1.msra.mxu0 0.0
  %159 = vmatprep.subr.mxu0 0.0
  %160 = vmatpush1.msra.mxu0 0.0
  %161 = vmatprep.subr.mxu0 0.0
  %162 = vmatpush1.msra.mxu0 0.0
  %163 = vmatprep.subr.mxu0 0.0
  %164 = vmatpush1.msra.mxu0 0.0
  %165 = vmatprep.subr.mxu0 0.0
  %166 = vmatpush1.msra.mxu0 0.0
  %167 = vmatprep.subr.mxu0 0.0
  %168 = vmatpush1.msra.mxu0 0.0
  %169 = vmatprep.subr.mxu0 0.0
  %170 = vmatpush1.msra.mxu0 0.0
  %171 = vmatprep.subr.mxu0 0.0
  %172 = vmatpush1.msra.mxu0 0.0
  %173 = vmatprep.mubr.f32.mxu0 0.0
  %174 = vmatmul.mubr.f32.gmra.mrb[0].mxu0 %v37
  %v175 = vpop.f32.mrb[0].mxu0
  %v176 = vadd.f32 0.0, %v175
  %v177 = vpop.f32.mrb[0].mxu0
  %v178 = vadd.f32 0.0, %v177
  %179 = vmatprep.mubr.f32.mxu0 0.0
  %180 = vmatmul.mubr.f32.gmra.mrb[0].mxu0 %v38
  %v181 = vpop.f32.mrb[0].mxu0
  %v182 = vadd.f32 0.0, %v181
  %v183 = vpop.f32.mrb[0].mxu0
  %v184 = vadd.f32 0.0, %v183
  %185 = vmatprep.mubr.f32.mxu0 0.0
  %186 = vmatmul.mubr.f32.gmra.mrb[0].mxu0 %v39
  %v187 = vpop.f32.mrb[0].mxu0
  %v188 = vadd.f32 0.0, %v187
  %v189 = vpop.f32.mrb[0].mxu0
  %v190 = vadd.f32 0.0, %v189
  %191 = vmatprep.mubr.f32.mxu0 0.0
  %192 = vmatmul.mubr.f32.gmra.mrb[0].mxu0 %v40
  %v193 = vpop.f32.mrb[0].mxu0
  %v194 = vadd.f32 0.0, %v193
  %v195 = vpop.f32.mrb[0].mxu0
  %v196 = vadd.f32 0.0, %v195
  %197 = vmatprep.mubr.f32.mxu0 0.0
  %198 = vmatmul.mubr.f32.gmra.mrb[0].mxu0 %v41
  %v199 = vpop.f32.mrb[0].mxu0
  %v200 = vadd.f32 0.0, %v199
  %v201 = vpop.f32.mrb[0].mxu0
  %v202 = vadd.f32 0.0, %v201
  %203 = vmatprep.mubr.f32.mxu0 0.0
  %204 = vmatmul.mubr.f32.gmra.mrb[0].mxu0 %v42
  %v205 = vpop.f32.mrb[0].mxu0
  %v206 = vadd.f32 0.0, %v205
  %v207 = vpop.f32.mrb[0].mxu0
  %v208 = vadd.f32 0.0, %v207
  %209 = vmatprep.mubr.f32.mxu0 0.0
  %210 = vmatmul.mubr.f32.gmra.mrb[0].mxu0 %v43
  %v211 = vpop.f32.mrb[0].mxu0
  %v212 = vadd.f32 0.0, %v211
  %v213 = vpop.f32.mrb[0].mxu0
  %v214 = vadd.f32 0.0, %v213
  %215 = vmatprep.mubr.f32.mxu0 0.0
  %216 = vmatmul.mubr.f32.gmra.mrb[0].mxu0 %v44
  %v217 = vpop.f32.mrb[0].mxu0
  %v218 = vadd.f32 0.0, %v217
  %v219 = vpop.f32.mrb[0].mxu0
  %v220 = vadd.f32 0.0, %v219
  %221 = vdwg.mxu0
  %222 = vmatprep.subr.mxu0 %v48
  %223 = vmatpush1.msra.mxu0 %v47
  %224 = vmatprep.subr.mxu0 %v52
  %225 = vmatpush1.msra.mxu0 %v51
  %226 = vmatprep.subr.mxu0 %v56
  %227 = vmatpush1.msra.mxu0 %v55
  %228 = vmatprep.subr.mxu0 %v60
  %229 = vmatpush1.msra.mxu0 %v59
  %230 = vmatprep.subr.mxu0 %v64
  %231 = vmatpush1.msra.mxu0 %v63
  %232 = vmatprep.subr.mxu0 %v68
  %233 = vmatpush1.msra.mxu0 %v67
  %234 = vmatprep.subr.mxu0 %v72
  %235 = vmatpush1.msra.mxu0 %v71
  %236 = vmatprep.subr.mxu0 %v76
  %237 = vmatpush1.msra.mxu0 %v75
  %238 = vmatprep.subr.mxu0 %v80
  %239 = vmatpush1.msra.mxu0 %v79
  %240 = vmatprep.subr.mxu0 %v84
  %241 = vmatpush1.msra.mxu0 %v83
  %242 = vmatprep.subr.mxu0 %v88
  %243 = vmatpush1.msra.mxu0 %v87
  %244 = vmatprep.subr.mxu0 %v92
  %245 = vmatpush1.msra.mxu0 %v91
  %246 = vmatprep.subr.mxu0 %v96
  %247 = vmatpush1.msra.mxu0 %v95
  %248 = vmatprep.subr.mxu0 %v100
  %249 = vmatpush1.msra.mxu0 %v99
  %250 = vmatprep.subr.mxu0 %v104
  %251 = vmatpush1.msra.mxu0 %v103
  %252 = vmatprep.subr.mxu0 %v108
  %253 = vmatpush1.msra.mxu0 %v107
  %254 = vmatprep.subr.mxu0 0.0
  %255 = vmatpush1.msra.mxu0 0.0
  %256 = vmatprep.subr.mxu0 0.0
  %257 = vmatpush1.msra.mxu0 0.0
  %258 = vmatprep.subr.mxu0 0.0
  %259 = vmatpush1.msra.mxu0 0.0
  %260 = vmatprep.subr.mxu0 0.0
  %261 = vmatpush1.msra.mxu0 0.0
  %262 = vmatprep.subr.mxu0 0.0
  %263 = vmatpush1.msra.mxu0 0.0
  %264 = vmatprep.subr.mxu0 0.0
  %265 = vmatpush1.msra.mxu0 0.0
  %266 = vmatprep.subr.mxu0 0.0
  %267 = vmatpush1.msra.mxu0 0.0
  %268 = vmatprep.subr.mxu0 0.0
  %269 = vmatpush1.msra.mxu0 0.0
  %270 = vmatprep.subr.mxu0 0.0
  %271 = vmatpush1.msra.mxu0 0.0
  %272 = vmatprep.subr.mxu0 0.0
  %273 = vmatpush1.msra.mxu0 0.0
  %274 = vmatprep.subr.mxu0 0.0
  %275 = vmatpush1.msra.mxu0 0.0
  %276 = vmatprep.subr.mxu0 0.0
  %277 = vmatpush1.msra.mxu0 0.0
  %278 = vmatprep.subr.mxu0 0.0
  %279 = vmatpush1.msra.mxu0 0.0
  %280 = vmatprep.subr.mxu0 0.0
  %281 = vmatpush1.msra.mxu0 0.0
  %282 = vmatprep.subr.mxu0 0.0
  %283 = vmatpush1.msra.mxu0 0.0
  %284 = vmatprep.subr.mxu0 0.0
  %285 = vmatpush1.msra.mxu0 0.0
  %286 = vmatprep.mubr.f32.mxu0 0.0
  %287 = vmatmul.mubr.f32.gmra.mrb[0].mxu0 %v37
  %v288 = vpop.f32.mrb[0].mxu0
  %v289 = vadd.f32 0.0, %v288
  %v290 = vpop.f32.mrb[0].mxu0
  %v291 = vadd.f32 0.0, %v290
  %292 = vmatprep.mubr.f32.mxu0 0.0
  %293 = vmatmul.mubr.f32.gmra.mrb[0].mxu0 %v38
  %v294 = vpop.f32.mrb[0].mxu0
  %v295 = vadd.f32 0.0, %v294
  %v296 = vpop.f32.mrb[0].mxu0
  %v297 = vadd.f32 0.0, %v296
  %298 = vmatprep.mubr.f32.mxu0 0.0
  %299 = vmatmul.mubr.f32.gmra.mrb[0].mxu0 %v39
  %v300 = vpop.f32.mrb[0].mxu0
  %v301 = vadd.f32 0.0, %v300
  %v302 = vpop.f32.mrb[0].mxu0
  %v303 = vadd.f32 0.0, %v302
  %304 = vmatprep.mubr.f32.mxu0 0.0
  %305 = vmatmul.mubr.f32.gmra.mrb[0].mxu0 %v40
  %v306 = vpop.f32.mrb[0].mxu0
  %v307 = vadd.f32 0.0, %v306
  %v308 = vpop.f32.mrb[0].mxu0
  %v309 = vadd.f32 0.0, %v308
  %310 = vmatprep.mubr.f32.mxu0 0.0
  %311 = vmatmul.mubr.f32.gmra.mrb[0].mxu0 %v41
  %v312 = vpop.f32.mrb[0].mxu0
  %v313 = vadd.f32 0.0, %v312
  %v314 = vpop.f32.mrb[0].mxu0
  %v315 = vadd.f32 0.0, %v314
  %316 = vmatprep.mubr.f32.mxu0 0.0
  %317 = vmatmul.mubr.f32.gmra.mrb[0].mxu0 %v42
  %v318 = vpop.f32.mrb[0].mxu0
  %v319 = vadd.f32 0.0, %v318
  %v320 = vpop.f32.mrb[0].mxu0
  %v321 = vadd.f32 0.0, %v320
  %322 = vmatprep.mubr.f32.mxu0 0.0
  %323 = vmatmul.mubr.f32.gmra.mrb[0].mxu0 %v43
  %v324 = vpop.f32.mrb[0].mxu0
  %v325 = vadd.f32 0.0, %v324
  %v326 = vpop.f32.mrb[0].mxu0
  %v327 = vadd.f32 0.0, %v326
  %328 = vmatprep.mubr.f32.mxu0 0.0
  %329 = vmatmul.mubr.f32.gmra.mrb[0].mxu0 %v44
  %v330 = vpop.f32.mrb[0].mxu0
  %v331 = vadd.f32 0.0, %v330
  %v332 = vpop.f32.mrb[0].mxu0
  %v333 = vadd.f32 0.0, %v332
  %334 = vdwg.mxu0
  %335 = vst [vmem:[#allocation2] sm:$0xff] %v176
  %336 = vst [vmem:[#allocation2 + $0x8] sm:$0xff] %v178
  %337 = vst [vmem:[#allocation2 + $0x10] sm:$0xff] %v289
  %338 = vst [vmem:[#allocation2 + $0x18] sm:$0xff] %v291
  %339 = vst [vmem:[#allocation2 + $0x20] sm:$0xff] %v182
  %340 = vst [vmem:[#allocation2 + $0x28] sm:$0xff] %v184
  %341 = vst [vmem:[#allocation2 + $0x30] sm:$0xff] %v295
  %342 = vst [vmem:[#allocation2 + $0x38] sm:$0xff] %v297
  %343 = vst [vmem:[#allocation2 + $0x40] sm:$0xff] %v188
  %344 = vst [vmem:[#allocation2 + $0x48] sm:$0xff] %v190
  %345 = vst [vmem:[#allocation2 + $0x50] sm:$0xff] %v301
  %346 = vst [vmem:[#allocation2 + $0x58] sm:$0xff] %v303
  %347 = vst [vmem:[#allocation2 + $0x60] sm:$0xff] %v194
  %348 = vst [vmem:[#allocation2 + $0x68] sm:$0xff] %v196
  %349 = vst [vmem:[#allocation2 + $0x70] sm:$0xff] %v307
  %350 = vst [vmem:[#allocation2 + $0x78] sm:$0xff] %v309
  %351 = vst [vmem:[#allocation2 + $0x80] sm:$0xff] %v200
  %352 = vst [vmem:[#allocation2 + $0x88] sm:$0xff] %v202
  %353 = vst [vmem:[#allocation2 + $0x90] sm:$0xff] %v313
  %354 = vst [vmem:[#allocation2 + $0x98] sm:$0xff] %v315
  %355 = vst [vmem:[#allocation2 + $0xa0] sm:$0xff] %v206
  %356 = vst [vmem:[#allocation2 + $0xa8] sm:$0xff] %v208
  %357 = vst [vmem:[#allocation2 + $0xb0] sm:$0xff] %v319
  %358 = vst [vmem:[#allocation2 + $0xb8] sm:$0xff] %v321
  %359 = vst [vmem:[#allocation2 + $0xc0] sm:$0xff] %v212
  %360 = vst [vmem:[#allocation2 + $0xc8] sm:$0xff] %v214
  %361 = vst [vmem:[#allocation2 + $0xd0] sm:$0xff] %v325
  %362 = vst [vmem:[#allocation2 + $0xd8] sm:$0xff] %v327
  %363 = vst [vmem:[#allocation2 + $0xe0] sm:$0xff] %v218
  %364 = vst [vmem:[#allocation2 + $0xe8] sm:$0xff] %v220
  %365 = vst [vmem:[#allocation2 + $0xf0] sm:$0xff] %v331
  %366 = vst [vmem:[#allocation2 + $0xf8] sm:$0xff] %v333
  %v367 = vld [vmem:[%s4] sm:$0xf]
  %v369 = vlaneseq
  %v370 = vshrl.u32 %v369, 7
  %v371 = vsub.s32 0, %v370
  %v372 = vrot.slane %v367, %v371
  %v373 = vlaneseq
  %v374 = vshrl.u32 %v373, 7
  %v375 = vsub.s32 1, %v374
  %v376 = vrot.slane %v367, %v375
  %v377 = vlaneseq
  %v378 = vshrl.u32 %v377, 7
  %v379 = vsub.s32 2, %v378
  %v380 = vrot.slane %v367, %v379
  %v381 = vlaneseq
  %v382 = vshrl.u32 %v381, 7
  %v383 = vsub.s32 3, %v382
  %v384 = vrot.slane %v367, %v383
  %v389 = vld [vmem:[#allocation2] sm:$0xff]
  %v390 = vld [vmem:[#allocation2 + $0x8] sm:$0xff]
  %v391 = vld [vmem:[#allocation2 + $0x10] sm:$0xff]
  %v392 = vld [vmem:[#allocation2 + $0x18] sm:$0xff]
  %v393 = vld [vmem:[%s2] sm:$0xff]
  %v394 = vld [vmem:[%s2 + $0x8] sm:$0xff]
  %v395 = vld [vmem:[%s2 + $0x10] sm:$0xff]
  %v396 = vld [vmem:[%s2 + $0x18] sm:$0xff]
  %v397 = vld [vmem:[%s2 + $0x20] sm:$0xff]
  %v398 = vld [vmem:[%s2 + $0x28] sm:$0xff]
  %v399 = vld [vmem:[%s2 + $0x30] sm:$0xff]
  %v400 = vld [vmem:[%s2 + $0x38] sm:$0xff]
  %v401 = vld [vmem:[%s2 + $0x40] sm:$0xff]
  %v402 = vld [vmem:[%s2 + $0x48] sm:$0xff]
  %v403 = vld [vmem:[%s2 + $0x50] sm:$0xff]
  %v404 = vld [vmem:[%s2 + $0x58] sm:$0xff]
  %v405 = vld [vmem:[%s2 + $0x60] sm:$0xff]
  %v406 = vld [vmem:[%s2 + $0x68] sm:$0xff]
  %v407 = vld [vmem:[%s2 + $0x70] sm:$0xff]
  %v408 = vld [vmem:[%s2 + $0x78] sm:$0xff]
  %v409 = vld [vmem:[%s2 + $0x80] sm:$0xff]
  %v410 = vld [vmem:[%s2 + $0x88] sm:$0xff]
  %v411 = vld [vmem:[%s2 + $0x90] sm:$0xff]
  %v412 = vld [vmem:[%s2 + $0x98] sm:$0xff]
  %v413 = vld [vmem:[%s2 + $0xa0] sm:$0xff]
  %v414 = vld [vmem:[%s2 + $0xa8] sm:$0xff]
  %v415 = vld [vmem:[%s2 + $0xb0] sm:$0xff]
  %v416 = vld [vmem:[%s2 + $0xb8] sm:$0xff]
  %v417 = vld [vmem:[%s2 + $0xc0] sm:$0xff]
  %v418 = vld [vmem:[%s2 + $0xc8] sm:$0xff]
  %v419 = vld [vmem:[%s2 + $0xd0] sm:$0xff]
  %v420 = vld [vmem:[%s2 + $0xd8] sm:$0xff]
  %v421 = vld [vmem:[%s2 + $0xe0] sm:$0xff]
  %v422 = vld [vmem:[%s2 + $0xe8] sm:$0xff]
  %v423 = vld [vmem:[%s2 + $0xf0] sm:$0xff]
  %v424 = vld [vmem:[%s2 + $0xf8] sm:$0xff]
  %v425 = vld [vmem:[%s2 + $0x100] sm:$0xff]
  %v426 = vld [vmem:[%s2 + $0x108] sm:$0xff]
  %v427 = vld [vmem:[%s2 + $0x110] sm:$0xff]
  %v428 = vld [vmem:[%s2 + $0x118] sm:$0xff]
  %v429 = vld [vmem:[%s2 + $0x120] sm:$0xff]
  %v430 = vld [vmem:[%s2 + $0x128] sm:$0xff]
  %v431 = vld [vmem:[%s2 + $0x130] sm:$0xff]
  %v432 = vld [vmem:[%s2 + $0x138] sm:$0xff]
  %v433 = vld [vmem:[%s2 + $0x140] sm:$0xff]
  %v434 = vld [vmem:[%s2 + $0x148] sm:$0xff]
  %v435 = vld [vmem:[%s2 + $0x150] sm:$0xff]
  %v436 = vld [vmem:[%s2 + $0x158] sm:$0xff]
  %v437 = vld [vmem:[%s2 + $0x160] sm:$0xff]
  %v438 = vld [vmem:[%s2 + $0x168] sm:$0xff]
  %v439 = vld [vmem:[%s2 + $0x170] sm:$0xff]
  %v440 = vld [vmem:[%s2 + $0x178] sm:$0xff]
  %v441 = vld [vmem:[%s2 + $0x180] sm:$0xff]
  %v442 = vld [vmem:[%s2 + $0x188] sm:$0xff]
  %v443 = vld [vmem:[%s2 + $0x190] sm:$0xff]
  %v444 = vld [vmem:[%s2 + $0x198] sm:$0xff]
  %v445 = vld [vmem:[%s2 + $0x1a0] sm:$0xff]
  %v446 = vld [vmem:[%s2 + $0x1a8] sm:$0xff]
  %v447 = vld [vmem:[%s2 + $0x1b0] sm:$0xff]
  %v448 = vld [vmem:[%s2 + $0x1b8] sm:$0xff]
  %v449 = vld [vmem:[%s2 + $0x1c0] sm:$0xff]
  %v450 = vld [vmem:[%s2 + $0x1c8] sm:$0xff]
  %v451 = vld [vmem:[%s2 + $0x1d0] sm:$0xff]
  %v452 = vld [vmem:[%s2 + $0x1d8] sm:$0xff]
  %v453 = vld [vmem:[%s2 + $0x1e0] sm:$0xff]
  %v454 = vld [vmem:[%s2 + $0x1e8] sm:$0xff]
  %v455 = vld [vmem:[%s2 + $0x1f0] sm:$0xff]
  %v456 = vld [vmem:[%s2 + $0x1f8] sm:$0xff]
  %457 = vmatprep.subr.mxu0 %v394
  %458 = vmatpush1.msra.mxu0 %v393
  %459 = vmatprep.subr.mxu0 %v398
  %460 = vmatpush1.msra.mxu0 %v397
  %461 = vmatprep.subr.mxu0 %v402
  %462 = vmatpush1.msra.mxu0 %v401
  %463 = vmatprep.subr.mxu0 %v406
  %464 = vmatpush1.msra.mxu0 %v405
  %465 = vmatprep.subr.mxu0 %v410
  %466 = vmatpush1.msra.mxu0 %v409
  %467 = vmatprep.subr.mxu0 %v414
  %468 = vmatpush1.msra.mxu0 %v413
  %469 = vmatprep.subr.mxu0 %v418
  %470 = vmatpush1.msra.mxu0 %v417
  %471 = vmatprep.subr.mxu0 %v422
  %472 = vmatpush1.msra.mxu0 %v421
  %473 = vmatprep.subr.mxu0 %v426
  %474 = vmatpush1.msra.mxu0 %v425
  %475 = vmatprep.subr.mxu0 %v430
  %476 = vmatpush1.msra.mxu0 %v429
  %477 = vmatprep.subr.mxu0 %v434
  %478 = vmatpush1.msra.mxu0 %v433
  %479 = vmatprep.subr.mxu0 %v438
  %480 = vmatpush1.msra.mxu0 %v437
  %481 = vmatprep.subr.mxu0 %v442
  %482 = vmatpush1.msra.mxu0 %v441
  %483 = vmatprep.subr.mxu0 %v446
  %484 = vmatpush1.msra.mxu0 %v445
  %485 = vmatprep.subr.mxu0 %v450
  %486 = vmatpush1.msra.mxu0 %v449
  %487 = vmatprep.subr.mxu0 %v454
  %488 = vmatpush1.msra.mxu0 %v453
  %489 = vmatprep.subr.mxu0 0.0
  %490 = vmatpush1.msra.mxu0 0.0
  %491 = vmatprep.subr.mxu0 0.0
  %492 = vmatpush1.msra.mxu0 0.0
  %493 = vmatprep.subr.mxu0 0.0
  %494 = vmatpush1.msra.mxu0 0.0
  %495 = vmatprep.subr.mxu0 0.0
  %496 = vmatpush1.msra.mxu0 0.0
  %497 = vmatprep.subr.mxu0 0.0
  %498 = vmatpush1.msra.mxu0 0.0
  %499 = vmatprep.subr.mxu0 0.0
  %500 = vmatpush1.msra.mxu0 0.0
  %501 = vmatprep.subr.mxu0 0.0
  %502 = vmatpush1.msra.mxu0 0.0
  %503 = vmatprep.subr.mxu0 0.0
  %504 = vmatpush1.msra.mxu0 0.0
  %505 = vmatprep.subr.mxu0 0.0
  %506 = vmatpush1.msra.mxu0 0.0
  %507 = vmatprep.subr.mxu0 0.0
  %508 = vmatpush1.msra.mxu0 0.0
  %509 = vmatprep.subr.mxu0 0.0
  %510 = vmatpush1.msra.mxu0 0.0
  %511 = vmatprep.subr.mxu0 0.0
  %512 = vmatpush1.msra.mxu0 0.0
  %513 = vmatprep.subr.mxu0 0.0
  %514 = vmatpush1.msra.mxu0 0.0
  %515 = vmatprep.subr.mxu0 0.0
  %516 = vmatpush1.msra.mxu0 0.0
  %517 = vmatprep.subr.mxu0 0.0
  %518 = vmatpush1.msra.mxu0 0.0
  %519 = vmatprep.subr.mxu0 0.0
  %520 = vmatpush1.msra.mxu0 0.0
  %521 = vmatprep.mubr.f32.mxu0 0.0
  %522 = vmatmul.mubr.f32.gmra.mrb[0].mxu0 0.0
  %v523 = vpop.f32.mrb[0].mxu0
  %v524 = vadd.f32 0.0, %v523
  %v525 = vpop.f32.mrb[0].mxu0
  %v526 = vadd.f32 0.0, %v525
  %527 = vdwg.mxu0
  %528 = vmatprep.subr.mxu0 %v396
  %529 = vmatpush1.msra.mxu0 %v395
  %530 = vmatprep.subr.mxu0 %v400
  %531 = vmatpush1.msra.mxu0 %v399
  %532 = vmatprep.subr.mxu0 %v404
  %533 = vmatpush1.msra.mxu0 %v403
  %534 = vmatprep.subr.mxu0 %v408
  %535 = vmatpush1.msra.mxu0 %v407
  %536 = vmatprep.subr.mxu0 %v412
  %537 = vmatpush1.msra.mxu0 %v411
  %538 = vmatprep.subr.mxu0 %v416
  %539 = vmatpush1.msra.mxu0 %v415
  %540 = vmatprep.subr.mxu0 %v420
  %541 = vmatpush1.msra.mxu0 %v419
  %542 = vmatprep.subr.mxu0 %v424
  %543 = vmatpush1.msra.mxu0 %v423
  %544 = vmatprep.subr.mxu0 %v428
  %545 = vmatpush1.msra.mxu0 %v427
  %546 = vmatprep.subr.mxu0 %v432
  %547 = vmatpush1.msra.mxu0 %v431
  %548 = vmatprep.subr.mxu0 %v436
  %549 = vmatpush1.msra.mxu0 %v435
  %550 = vmatprep.subr.mxu0 %v440
  %551 = vmatpush1.msra.mxu0 %v439
  %552 = vmatprep.subr.mxu0 %v444
  %553 = vmatpush1.msra.mxu0 %v443
  %554 = vmatprep.subr.mxu0 %v448
  %555 = vmatpush1.msra.mxu0 %v447
  %556 = vmatprep.subr.mxu0 %v452
  %557 = vmatpush1.msra.mxu0 %v451
  %558 = vmatprep.subr.mxu0 %v456
  %559 = vmatpush1.msra.mxu0 %v455
  %560 = vmatprep.subr.mxu0 0.0
  %561 = vmatpush1.msra.mxu0 0.0
  %562 = vmatprep.subr.mxu0 0.0
  %563 = vmatpush1.msra.mxu0 0.0
  %564 = vmatprep.subr.mxu0 0.0
  %565 = vmatpush1.msra.mxu0 0.0
  %566 = vmatprep.subr.mxu0 0.0
  %567 = vmatpush1.msra.mxu0 0.0
  %568 = vmatprep.subr.mxu0 0.0
  %569 = vmatpush1.msra.mxu0 0.0
  %570 = vmatprep.subr.mxu0 0.0
  %571 = vmatpush1.msra.mxu0 0.0
  %572 = vmatprep.subr.mxu0 0.0
  %573 = vmatpush1.msra.mxu0 0.0
  %574 = vmatprep.subr.mxu0 0.0
  %575 = vmatpush1.msra.mxu0 0.0
  %576 = vmatprep.subr.mxu0 0.0
  %577 = vmatpush1.msra.mxu0 0.0
  %578 = vmatprep.subr.mxu0 0.0
  %579 = vmatpush1.msra.mxu0 0.0
  %580 = vmatprep.subr.mxu0 0.0
  %581 = vmatpush1.msra.mxu0 0.0
  %582 = vmatprep.subr.mxu0 0.0
  %583 = vmatpush1.msra.mxu0 0.0
  %584 = vmatprep.subr.mxu0 0.0
  %585 = vmatpush1.msra.mxu0 0.0
  %586 = vmatprep.subr.mxu0 0.0
  %587 = vmatpush1.msra.mxu0 0.0
  %588 = vmatprep.subr.mxu0 0.0
  %589 = vmatpush1.msra.mxu0 0.0
  %590 = vmatprep.subr.mxu0 0.0
  %591 = vmatpush1.msra.mxu0 0.0
  %592 = vmatprep.mubr.f32.mxu0 0.0
  %593 = vmatmul.mubr.f32.gmra.mrb[0].mxu0 0.0
  %v594 = vpop.f32.mrb[0].mxu0
  %v595 = vadd.f32 0.0, %v594
  %v596 = vpop.f32.mrb[0].mxu0
  %v597 = vadd.f32 0.0, %v596
  %598 = vdwg.mxu0
  %v599 = vadd.f32 %v389, %v524
  %v600 = vadd.f32 %v390, %v526
  %v601 = vadd.f32 %v391, %v595
  %v602 = vadd.f32 %v392, %v597
  %v603 = vmul.f32 %v599, 0.5
  %v604 = vtanh.pop %v603
  %v605 = vmul.f32 %v604, 0.5
  %v606 = vadd.f32 %v605, 0.5
  %v607 = vmul.f32 %v600, 0.5
  %v608 = vtanh.pop %v607
  %v609 = vmul.f32 %v608, 0.5
  %v610 = vadd.f32 %v609, 0.5
  %v611 = vtanh.pop %v601
  %v612 = vmul.f32 %v602, 0.5
  %v613 = vtanh.pop %v612
  %v614 = vmul.f32 %v613, 0.5
  %v615 = vadd.f32 %v614, 0.5
  %v616 = vmul.f32 %v610, 0.0
  %v617 = vmul.f32 %v606, %v611
  %v618 = vadd.f32 %v616, %v617
  %v619 = vtanh.pop %v618
  %v620 = vmul.f32 %v615, %v619
  %v621 = vld [vmem:[%s3] sm:$0xff]
  %v622 = vld [vmem:[%s3 + $0x8] sm:$0xff]
  %v623 = vld [vmem:[%s3 + $0x10] sm:$0xff]
  %v624 = vld [vmem:[%s3 + $0x18] sm:$0xff]
  %v625 = vld [vmem:[%s3 + $0x20] sm:$0xff]
  %v626 = vld [vmem:[%s3 + $0x28] sm:$0xff]
  %v627 = vld [vmem:[%s3 + $0x30] sm:$0xff]
  %v628 = vld [vmem:[%s3 + $0x38] sm:$0xff]
  %v629 = vld [vmem:[%s3 + $0x40] sm:$0xff]
  %v630 = vld [vmem:[%s3 + $0x48] sm:$0xff]
  %v631 = vld [vmem:[%s3 + $0x50] sm:$0xff]
  %v632 = vld [vmem:[%s3 + $0x58] sm:$0xff]
  %v633 = vld [vmem:[%s3 + $0x60] sm:$0xff]
  %v634 = vld [vmem:[%s3 + $0x68] sm:$0xff]
  %v635 = vld [vmem:[%s3 + $0x70] sm:$0xff]
  %v636 = vld [vmem:[%s3 + $0x78] sm:$0xff]
  %v637 = vld [vmem:[%s3 + $0x80] sm:$0xff]
  %v638 = vld [vmem:[%s3 + $0x88] sm:$0xff]
  %v639 = vld [vmem:[%s3 + $0x90] sm:$0xff]
  %v640 = vld [vmem:[%s3 + $0x98] sm:$0xff]
  %v641 = vld [vmem:[%s3 + $0xa0] sm:$0xff]
  %v642 = vld [vmem:[%s3 + $0xa8] sm:$0xff]
  %v643 = vld [vmem:[%s3 + $0xb0] sm:$0xff]
  %v644 = vld [vmem:[%s3 + $0xb8] sm:$0xff]
  %v645 = vld [vmem:[%s3 + $0xc0] sm:$0xff]
  %v646 = vld [vmem:[%s3 + $0xc8] sm:$0xff]
  %v647 = vld [vmem:[%s3 + $0xd0] sm:$0xff]
  %v648 = vld [vmem:[%s3 + $0xd8] sm:$0xff]
  %v649 = vld [vmem:[%s3 + $0xe0] sm:$0xff]
  %v650 = vld [vmem:[%s3 + $0xe8] sm:$0xff]
  %v651 = vld [vmem:[%s3 + $0xf0] sm:$0xff]
  %v652 = vld [vmem:[%s3 + $0xf8] sm:$0xff]
  %v653 = vld [vmem:[%s3 + $0x100] sm:$0xff]
  %v654 = vld [vmem:[%s3 + $0x108] sm:$0xff]
  %v655 = vld [vmem:[%s3 + $0x110] sm:$0xff]
  %v656 = vld [vmem:[%s3 + $0x118] sm:$0xff]
  %v657 = vld [vmem:[%s3 + $0x120] sm:$0xff]
  %v658 = vld [vmem:[%s3 + $0x128] sm:$0xff]
  %v659 = vld [vmem:[%s3 + $0x130] sm:$0xff]
  %v660 = vld [vmem:[%s3 + $0x138] sm:$0xff]
  %v661 = vld [vmem:[%s3 + $0x140] sm:$0xff]
  %v662 = vld [vmem:[%s3 + $0x148] sm:$0xff]
  %v663 = vld [vmem:[%s3 + $0x150] sm:$0xff]
  %v664 = vld [vmem:[%s3 + $0x158] sm:$0xff]
  %v665 = vld [vmem:[%s3 + $0x160] sm:$0xff]
  %v666 = vld [vmem:[%s3 + $0x168] sm:$0xff]
  %v667 = vld [vmem:[%s3 + $0x170] sm:$0xff]
  %v668 = vld [vmem:[%s3 + $0x178] sm:$0xff]
  %v669 = vld [vmem:[%s3 + $0x180] sm:$0xff]
  %v670 = vld [vmem:[%s3 + $0x188] sm:$0xff]
  %v671 = vld [vmem:[%s3 + $0x190] sm:$0xff]
  %v672 = vld [vmem:[%s3 + $0x198] sm:$0xff]
  %v673 = vld [vmem:[%s3 + $0x1a0] sm:$0xff]
  %v674 = vld [vmem:[%s3 + $0x1a8] sm:$0xff]
  %v675 = vld [vmem:[%s3 + $0x1b0] sm:$0xff]
  %v676 = vld [vmem:[%s3 + $0x1b8] sm:$0xff]
  %v677 = vld [vmem:[%s3 + $0x1c0] sm:$0xff]
  %v678 = vld [vmem:[%s3 + $0x1c8] sm:$0xff]
  %v679 = vld [vmem:[%s3 + $0x1d0] sm:$0xff]
  %v680 = vld [vmem:[%s3 + $0x1d8] sm:$0xff]
  %v681 = vld [vmem:[%s3 + $0x1e0] sm:$0xff]
  %v682 = vld [vmem:[%s3 + $0x1e8] sm:$0xff]
  %v683 = vld [vmem:[%s3 + $0x1f0] sm:$0xff]
  %v684 = vld [vmem:[%s3 + $0x1f8] sm:$0xff]
  %685 = vmatprep.subr.mxu0 %v622
  %686 = vmatpush1.msra.mxu0 %v621
  %687 = vmatprep.subr.mxu0 %v626
  %688 = vmatpush1.msra.mxu0 %v625
  %689 = vmatprep.subr.mxu0 %v630
  %690 = vmatpush1.msra.mxu0 %v629
  %691 = vmatprep.subr.mxu0 %v634
  %692 = vmatpush1.msra.mxu0 %v633
  %693 = vmatprep.subr.mxu0 %v638
  %694 = vmatpush1.msra.mxu0 %v637
  %695 = vmatprep.subr.mxu0 %v642
  %696 = vmatpush1.msra.mxu0 %v641
  %697 = vmatprep.subr.mxu0 %v646
  %698 = vmatpush1.msra.mxu0 %v645
  %699 = vmatprep.subr.mxu0 %v650
  %700 = vmatpush1.msra.mxu0 %v649
  %701 = vmatprep.subr.mxu0 %v654
  %702 = vmatpush1.msra.mxu0 %v653
  %703 = vmatprep.subr.mxu0 %v658
  %704 = vmatpush1.msra.mxu0 %v657
  %705 = vmatprep.subr.mxu0 %v662
  %706 = vmatpush1.msra.mxu0 %v661
  %707 = vmatprep.subr.mxu0 %v666
  %708 = vmatpush1.msra.mxu0 %v665
  %709 = vmatprep.subr.mxu0 %v670
  %710 = vmatpush1.msra.mxu0 %v669
  %711 = vmatprep.subr.mxu0 %v674
  %712 = vmatpush1.msra.mxu0 %v673
  %713 = vmatprep.subr.mxu0 %v678
  %714 = vmatpush1.msra.mxu0 %v677
  %715 = vmatprep.subr.mxu0 %v682
  %716 = vmatpush1.msra.mxu0 %v681
  %717 = vmatprep.subr.mxu0 0.0
  %718 = vmatpush1.msra.mxu0 0.0
  %719 = vmatprep.subr.mxu0 0.0
  %720 = vmatpush1.msra.mxu0 0.0
  %721 = vmatprep.subr.mxu0 0.0
  %722 = vmatpush1.msra.mxu0 0.0
  %723 = vmatprep.subr.mxu0 0.0
  %724 = vmatpush1.msra.mxu0 0.0
  %725 = vmatprep.subr.mxu0 0.0
  %726 = vmatpush1.msra.mxu0 0.0
  %727 = vmatprep.subr.mxu0 0.0
  %728 = vmatpush1.msra.mxu0 0.0
  %729 = vmatprep.subr.mxu0 0.0
  %730 = vmatpush1.msra.mxu0 0.0
  %731 = vmatprep.subr.mxu0 0.0
  %732 = vmatpush1.msra.mxu0 0.0
  %733 = vmatprep.subr.mxu0 0.0
  %734 = vmatpush1.msra.mxu0 0.0
  %735 = vmatprep.subr.mxu0 0.0
  %736 = vmatpush1.msra.mxu0 0.0
  %737 = vmatprep.subr.mxu0 0.0
  %738 = vmatpush1.msra.mxu0 0.0
  %739 = vmatprep.subr.mxu0 0.0
  %740 = vmatpush1.msra.mxu0 0.0
  %741 = vmatprep.subr.mxu0 0.0
  %742 = vmatpush1.msra.mxu0 0.0
  %743 = vmatprep.subr.mxu0 0.0
  %744 = vmatpush1.msra.mxu0 0.0
  %745 = vmatprep.subr.mxu0 0.0
  %746 = vmatpush1.msra.mxu0 0.0
  %747 = vmatprep.subr.mxu0 0.0
  %748 = vmatpush1.msra.mxu0 0.0
  %749 = vmatprep.mubr.f32.mxu0 0.0
  %750 = vmatmul.mubr.f32.gmra.mrb[0].mxu0 %v620
  %v751 = vpop.f32.mrb[0].mxu0
  %v752 = vadd.f32 %v372, %v751
  %v753 = vpop.f32.mrb[0].mxu0
  %v754 = vadd.f32 %v376, %v753
  %755 = vdwg.mxu0
  %756 = vmatprep.subr.mxu0 %v624
  %757 = vmatpush1.msra.mxu0 %v623
  %758 = vmatprep.subr.mxu0 %v628
  %759 = vmatpush1.msra.mxu0 %v627
  %760 = vmatprep.subr.mxu0 %v632
  %761 = vmatpush1.msra.mxu0 %v631
  %762 = vmatprep.subr.mxu0 %v636
  %763 = vmatpush1.msra.mxu0 %v635
  %764 = vmatprep.subr.mxu0 %v640
  %765 = vmatpush1.msra.mxu0 %v639
  %766 = vmatprep.subr.mxu0 %v644
  %767 = vmatpush1.msra.mxu0 %v643
  %768 = vmatprep.subr.mxu0 %v648
  %769 = vmatpush1.msra.mxu0 %v647
  %770 = vmatprep.subr.mxu0 %v652
  %771 = vmatpush1.msra.mxu0 %v651
  %772 = vmatprep.subr.mxu0 %v656
  %773 = vmatpush1.msra.mxu0 %v655
  %774 = vmatprep.subr.mxu0 %v660
  %775 = vmatpush1.msra.mxu0 %v659
  %776 = vmatprep.subr.mxu0 %v664
  %777 = vmatpush1.msra.mxu0 %v663
  %778 = vmatprep.subr.mxu0 %v668
  %779 = vmatpush1.msra.mxu0 %v667
  %780 = vmatprep.subr.mxu0 %v672
  %781 = vmatpush1.msra.mxu0 %v671
  %782 = vmatprep.subr.mxu0 %v676
  %783 = vmatpush1.msra.mxu0 %v675
  %784 = vmatprep.subr.mxu0 %v680
  %785 = vmatpush1.msra.mxu0 %v679
  %786 = vmatprep.subr.mxu0 %v684
  %787 = vmatpush1.msra.mxu0 %v683
  %788 = vmatprep.subr.mxu0 0.0
  %789 = vmatpush1.msra.mxu0 0.0
  %790 = vmatprep.subr.mxu0 0.0
  %791 = vmatpush1.msra.mxu0 0.0
  %792 = vmatprep.subr.mxu0 0.0
  %793 = vmatpush1.msra.mxu0 0.0
  %794 = vmatprep.subr.mxu0 0.0
  %795 = vmatpush1.msra.mxu0 0.0
  %796 = vmatprep.subr.mxu0 0.0
  %797 = vmatpush1.msra.mxu0 0.0
  %798 = vmatprep.subr.mxu0 0.0
  %799 = vmatpush1.msra.mxu0 0.0
  %800 = vmatprep.subr.mxu0 0.0
  %801 = vmatpush1.msra.mxu0 0.0
  %802 = vmatprep.subr.mxu0 0.0
  %803 = vmatpush1.msra.mxu0 0.0
  %804 = vmatprep.subr.mxu0 0.0
  %805 = vmatpush1.msra.mxu0 0.0
  %806 = vmatprep.subr.mxu0 0.0
  %807 = vmatpush1.msra.mxu0 0.0
  %808 = vmatprep.subr.mxu0 0.0
  %809 = vmatpush1.msra.mxu0 0.0
  %810 = vmatprep.subr.mxu0 0.0
  %811 = vmatpush1.msra.mxu0 0.0
  %812 = vmatprep.subr.mxu0 0.0
  %813 = vmatpush1.msra.mxu0 0.0
  %814 = vmatprep.subr.mxu0 0.0
  %815 = vmatpush1.msra.mxu0 0.0
  %816 = vmatprep.subr.mxu0 0.0
  %817 = vmatpush1.msra.mxu0 0.0
  %818 = vmatprep.subr.mxu0 0.0
  %819 = vmatpush1.msra.mxu0 0.0
  %820 = vmatprep.mubr.f32.mxu0 0.0
  %821 = vmatmul.mubr.f32.gmra.mrb[0].mxu0 %v620
  %v822 = vpop.f32.mrb[0].mxu0
  %v823 = vadd.f32 %v380, %v822
  %v824 = vpop.f32.mrb[0].mxu0
  %v825 = vadd.f32 %v384, %v824
  %826 = vdwg.mxu0
  %v827 = vld [vmem:[%s5] sm:$0xff]
  %v828 = vld [vmem:[%s5 + $0x8] sm:$0xff]
  %v829 = vld [vmem:[%s5 + $0x10] sm:$0xff]
  %v830 = vld [vmem:[%s5 + $0x18] sm:$0xff]
  %v831 = vld [vmem:[%s5 + $0x20] sm:$0xff]
  %v832 = vld [vmem:[%s5 + $0x28] sm:$0xff]
  %v833 = vld [vmem:[%s5 + $0x30] sm:$0xff]
  %v834 = vld [vmem:[%s5 + $0x38] sm:$0xff]
  %v835 = vld [vmem:[%s5 + $0x40] sm:$0xff]
  %v836 = vld [vmem:[%s5 + $0x48] sm:$0xff]
  %v837 = vld [vmem:[%s5 + $0x50] sm:$0xff]
  %v838 = vld [vmem:[%s5 + $0x58] sm:$0xff]
  %v839 = vld [vmem:[%s5 + $0x60] sm:$0xff]
  %v840 = vld [vmem:[%s5 + $0x68] sm:$0xff]
  %v841 = vld [vmem:[%s5 + $0x70] sm:$0xff]
  %v842 = vld [vmem:[%s5 + $0x78] sm:$0xff]
  %v843 = vld [vmem:[%s5 + $0x80] sm:$0xff]
  %v844 = vld [vmem:[%s5 + $0x88] sm:$0xff]
  %v845 = vld [vmem:[%s5 + $0x90] sm:$0xff]
  %v846 = vld [vmem:[%s5 + $0x98] sm:$0xff]
  %v847 = vld [vmem:[%s5 + $0xa0] sm:$0xff]
  %v848 = vld [vmem:[%s5 + $0xa8] sm:$0xff]
  %v849 = vld [vmem:[%s5 + $0xb0] sm:$0xff]
  %v850 = vld [vmem:[%s5 + $0xb8] sm:$0xff]
  %v851 = vld [vmem:[%s5 + $0xc0] sm:$0xff]
  %v852 = vld [vmem:[%s5 + $0xc8] sm:$0xff]
  %v853 = vld [vmem:[%s5 + $0xd0] sm:$0xff]
  %v854 = vld [vmem:[%s5 + $0xd8] sm:$0xff]
  %v855 = vld [vmem:[%s5 + $0xe0] sm:$0xff]
  %v856 = vld [vmem:[%s5 + $0xe8] sm:$0xff]
  %v857 = vld [vmem:[%s5 + $0xf0] sm:$0xff]
  %v858 = vld [vmem:[%s5 + $0xf8] sm:$0xff]
  %v859 = vld [vmem:[%s5 + $0x100] sm:$0xff]
  %v860 = vld [vmem:[%s5 + $0x108] sm:$0xff]
  %v861 = vld [vmem:[%s5 + $0x110] sm:$0xff]
  %v862 = vld [vmem:[%s5 + $0x118] sm:$0xff]
  %v863 = vld [vmem:[%s5 + $0x120] sm:$0xff]
  %v864 = vld [vmem:[%s5 + $0x128] sm:$0xff]
  %v865 = vld [vmem:[%s5 + $0x130] sm:$0xff]
  %v866 = vld [vmem:[%s5 + $0x138] sm:$0xff]
  %v867 = vld [vmem:[%s5 + $0x140] sm:$0xff]
  %v868 = vld [vmem:[%s5 + $0x148] sm:$0xff]
  %v869 = vld [vmem:[%s5 + $0x150] sm:$0xff]
  %v870 = vld [vmem:[%s5 + $0x158] sm:$0xff]
  %v871 = vld [vmem:[%s5 + $0x160] sm:$0xff]
  %v872 = vld [vmem:[%s5 + $0x168] sm:$0xff]
  %v873 = vld [vmem:[%s5 + $0x170] sm:$0xff]
  %v874 = vld [vmem:[%s5 + $0x178] sm:$0xff]
  %v875 = vld [vmem:[%s5 + $0x180] sm:$0xff]
  %v876 = vld [vmem:[%s5 + $0x188] sm:$0xff]
  %v877 = vld [vmem:[%s5 + $0x190] sm:$0xff]
  %v878 = vld [vmem:[%s5 + $0x198] sm:$0xff]
  %v879 = vld [vmem:[%s5 + $0x1a0] sm:$0xff]
  %v880 = vld [vmem:[%s5 + $0x1a8] sm:$0xff]
  %v881 = vld [vmem:[%s5 + $0x1b0] sm:$0xff]
  %v882 = vld [vmem:[%s5 + $0x1b8] sm:$0xff]
  %v883 = vld [vmem:[%s5 + $0x1c0] sm:$0xff]
  %v884 = vld [vmem:[%s5 + $0x1c8] sm:$0xff]
  %v885 = vld [vmem:[%s5 + $0x1d0] sm:$0xff]
  %v886 = vld [vmem:[%s5 + $0x1d8] sm:$0xff]
  %v887 = vld [vmem:[%s5 + $0x1e0] sm:$0xff]
  %v888 = vld [vmem:[%s5 + $0x1e8] sm:$0xff]
  %v889 = vld [vmem:[%s5 + $0x1f0] sm:$0xff]
  %v890 = vld [vmem:[%s5 + $0x1f8] sm:$0xff]
  %891 = vmatprep.subr.mxu0 %v828
  %892 = vmatpush1.msra.mxu0 %v827
  %893 = vmatprep.subr.mxu0 %v832
  %894 = vmatpush1.msra.mxu0 %v831
  %895 = vmatprep.subr.mxu0 %v836
  %896 = vmatpush1.msra.mxu0 %v835
  %897 = vmatprep.subr.mxu0 %v840
  %898 = vmatpush1.msra.mxu0 %v839
  %899 = vmatprep.subr.mxu0 %v844
  %900 = vmatpush1.msra.mxu0 %v843
  %901 = vmatprep.subr.mxu0 %v848
  %902 = vmatpush1.msra.mxu0 %v847
  %903 = vmatprep.subr.mxu0 %v852
  %904 = vmatpush1.msra.mxu0 %v851
  %905 = vmatprep.subr.mxu0 %v856
  %906 = vmatpush1.msra.mxu0 %v855
  %907 = vmatprep.subr.mxu0 %v860
  %908 = vmatpush1.msra.mxu0 %v859
  %909 = vmatprep.subr.mxu0 %v864
  %910 = vmatpush1.msra.mxu0 %v863
  %911 = vmatprep.subr.mxu0 %v868
  %912 = vmatpush1.msra.mxu0 %v867
  %913 = vmatprep.subr.mxu0 %v872
  %914 = vmatpush1.msra.mxu0 %v871
  %915 = vmatprep.subr.mxu0 %v876
  %916 = vmatpush1.msra.mxu0 %v875
  %917 = vmatprep.subr.mxu0 %v880
  %918 = vmatpush1.msra.mxu0 %v879
  %919 = vmatprep.subr.mxu0 %v884
  %920 = vmatpush1.msra.mxu0 %v883
  %921 = vmatprep.subr.mxu0 %v888
  %922 = vmatpush1.msra.mxu0 %v887
  %923 = vmatprep.subr.mxu0 0.0
  %924 = vmatpush1.msra.mxu0 0.0
  %925 = vmatprep.subr.mxu0 0.0
  %926 = vmatpush1.msra.mxu0 0.0
  %927 = vmatprep.subr.mxu0 0.0
  %928 = vmatpush1.msra.mxu0 0.0
  %929 = vmatprep.subr.mxu0 0.0
  %930 = vmatpush1.msra.mxu0 0.0
  %931 = vmatprep.subr.mxu0 0.0
  %932 = vmatpush1.msra.mxu0 0.0
  %933 = vmatprep.subr.mxu0 0.0
  %934 = vmatpush1.msra.mxu0 0.0
  %935 = vmatprep.subr.mxu0 0.0
  %936 = vmatpush1.msra.mxu0 0.0
  %937 = vmatprep.subr.mxu0 0.0
  %938 = vmatpush1.msra.mxu0 0.0
  %939 = vmatprep.subr.mxu0 0.0
  %940 = vmatpush1.msra.mxu0 0.0
  %941 = vmatprep.subr.mxu0 0.0
  %942 = vmatpush1.msra.mxu0 0.0
  %943 = vmatprep.subr.mxu0 0.0
  %944 = vmatpush1.msra.mxu0 0.0
  %945 = vmatprep.subr.mxu0 0.0
  %946 = vmatpush1.msra.mxu0 0.0
  %947 = vmatprep.subr.mxu0 0.0
  %948 = vmatpush1.msra.mxu0 0.0
  %949 = vmatprep.subr.mxu0 0.0
  %950 = vmatpush1.msra.mxu0 0.0
  %951 = vmatprep.subr.mxu0 0.0
  %952 = vmatpush1.msra.mxu0 0.0
  %953 = vmatprep.subr.mxu0 0.0
  %954 = vmatpush1.msra.mxu0 0.0
  %955 = vmatprep.mubr.f32.mxu0 0.0
  %956 = vmatmul.mubr.f32.gmra.mrb[0].mxu0 0.0
  %v957 = vpop.f32.mrb[0].mxu0
  %v958 = vadd.f32 0.0, %v957
  %v959 = vpop.f32.mrb[0].mxu0
  %v960 = vadd.f32 0.0, %v959
  %961 = vdwg.mxu0
  %962 = vmatprep.subr.mxu0 %v830
  %963 = vmatpush1.msra.mxu0 %v829
  %964 = vmatprep.subr.mxu0 %v834
  %965 = vmatpush1.msra.mxu0 %v833
  %966 = vmatprep.subr.mxu0 %v838
  %967 = vmatpush1.msra.mxu0 %v837
  %968 = vmatprep.subr.mxu0 %v842
  %969 = vmatpush1.msra.mxu0 %v841
  %970 = vmatprep.subr.mxu0 %v846
  %971 = vmatpush1.msra.mxu0 %v845
  %972 = vmatprep.subr.mxu0 %v850
  %973 = vmatpush1.msra.mxu0 %v849
  %974 = vmatprep.subr.mxu0 %v854
  %975 = vmatpush1.msra.mxu0 %v853
  %976 = vmatprep.subr.mxu0 %v858
  %977 = vmatpush1.msra.mxu0 %v857
  %978 = vmatprep.subr.mxu0 %v862
  %979 = vmatpush1.msra.mxu0 %v861
  %980 = vmatprep.subr.mxu0 %v866
  %981 = vmatpush1.msra.mxu0 %v865
  %982 = vmatprep.subr.mxu0 %v870
  %983 = vmatpush1.msra.mxu0 %v869
  %984 = vmatprep.subr.mxu0 %v874
  %985 = vmatpush1.msra.mxu0 %v873
  %986 = vmatprep.subr.mxu0 %v878
  %987 = vmatpush1.msra.mxu0 %v877
  %988 = vmatprep.subr.mxu0 %v882
  %989 = vmatpush1.msra.mxu0 %v881
  %990 = vmatprep.subr.mxu0 %v886
  %991 = vmatpush1.msra.mxu0 %v885
  %992 = vmatprep.subr.mxu0 %v890
  %993 = vmatpush1.msra.mxu0 %v889
  %994 = vmatprep.subr.mxu0 0.0
  %995 = vmatpush1.msra.mxu0 0.0
  %996 = vmatprep.subr.mxu0 0.0
  %997 = vmatpush1.msra.mxu0 0.0
  %998 = vmatprep.subr.mxu0 0.0
  %999 = vmatpush1.msra.mxu0 0.0
  %1000 = vmatprep.subr.mxu0 0.0
  %1001 = vmatpush1.msra.mxu0 0.0
  %1002 = vmatprep.subr.mxu0 0.0
  %1003 = vmatpush1.msra.mxu0 0.0
  %1004 = vmatprep.subr.mxu0 0.0
  %1005 = vmatpush1.msra.mxu0 0.0
  %1006 = vmatprep.subr.mxu0 0.0
  %1007 = vmatpush1.msra.mxu0 0.0
  %1008 = vmatprep.subr.mxu0 0.0
  %1009 = vmatpush1.msra.mxu0 0.0
  %1010 = vmatprep.subr.mxu0 0.0
  %1011 = vmatpush1.msra.mxu0 0.0
  %1012 = vmatprep.subr.mxu0 0.0
  %1013 = vmatpush1.msra.mxu0 0.0
  %1014 = vmatprep.subr.mxu0 0.0
  %1015 = vmatpush1.msra.mxu0 0.0
  %1016 = vmatprep.subr.mxu0 0.0
  %1017 = vmatpush1.msra.mxu0 0.0
  %1018 = vmatprep.subr.mxu0 0.0
  %1019 = vmatpush1.msra.mxu0 0.0
  %1020 = vmatprep.subr.mxu0 0.0
  %1021 = vmatpush1.msra.mxu0 0.0
  %1022 = vmatprep.subr.mxu0 0.0
  %1023 = vmatpush1.msra.mxu0 0.0
  %1024 = vmatprep.subr.mxu0 0.0
  %1025 = vmatpush1.msra.mxu0 0.0
  %1026 = vmatprep.mubr.f32.mxu0 0.0
  %1027 = vmatmul.mubr.f32.gmra.mrb[0].mxu0 0.0
  %v1028 = vpop.f32.mrb[0].mxu0
  %v1029 = vadd.f32 0.0, %v1028
  %v1030 = vpop.f32.mrb[0].mxu0
  %v1031 = vadd.f32 0.0, %v1030
  %1032 = vdwg.mxu0
  %v1033 = vadd.f32 %v752, %v958
  %v1034 = vadd.f32 %v754, %v960
  %v1035 = vadd.f32 %v823, %v1029
  %v1036 = vadd.f32 %v825, %v1031
  %v1037 = vmul.f32 %v1033, 0.5
  %v1038 = vtanh.pop %v1037
  %v1039 = vmul.f32 %v1038, 0.5
  %v1040 = vadd.f32 %v1039, 0.5
  %v1041 = vmul.f32 %v1034, 0.5
  %v1042 = vtanh.pop %v1041
  %v1043 = vmul.f32 %v1042, 0.5
  %v1044 = vadd.f32 %v1043, 0.5
  %v1045 = vtanh.pop %v1035
  %v1046 = vmul.f32 %v1036, 0.5
  %v1047 = vtanh.pop %v1046
  %v1048 = vmul.f32 %v1047, 0.5
  %v1049 = vadd.f32 %v1048, 0.5
  %v1050 = vmul.f32 %v1044, 0.0
  %v1051 = vmul.f32 %v1040, %v1045
  %v1052 = vadd.f32 %v1050, %v1051
  %v1053 = vtanh.pop %v1052
  %v1054 = vmul.f32 %v1049, %v1053
  %v1055 = vld [vmem:[#allocation2 + $0x20] sm:$0xff]
  %v1056 = vld [vmem:[#allocation2 + $0x28] sm:$0xff]
  %v1057 = vld [vmem:[#allocation2 + $0x30] sm:$0xff]
  %v1058 = vld [vmem:[#allocation2 + $0x38] sm:$0xff]
  %1059 = vmatprep.subr.mxu0 %v394
  %1060 = vmatpush1.msra.mxu0 %v393
  %1061 = vmatprep.subr.mxu0 %v398
  %1062 = vmatpush1.msra.mxu0 %v397
  %1063 = vmatprep.subr.mxu0 %v402
  %1064 = vmatpush1.msra.mxu0 %v401
  %1065 = vmatprep.subr.mxu0 %v406
  %1066 = vmatpush1.msra.mxu0 %v405
  %1067 = vmatprep.subr.mxu0 %v410
  %1068 = vmatpush1.msra.mxu0 %v409
  %1069 = vmatprep.subr.mxu0 %v414
  %1070 = vmatpush1.msra.mxu0 %v413
  %1071 = vmatprep.subr.mxu0 %v418
  %1072 = vmatpush1.msra.mxu0 %v417
  %1073 = vmatprep.subr.mxu0 %v422
  %1074 = vmatpush1.msra.mxu0 %v421
  %1075 = vmatprep.subr.mxu0 %v426
  %1076 = vmatpush1.msra.mxu0 %v425
  %1077 = vmatprep.subr.mxu0 %v430
  %1078 = vmatpush1.msra.mxu0 %v429
  %1079 = vmatprep.subr.mxu0 %v434
  %1080 = vmatpush1.msra.mxu0 %v433
  %1081 = vmatprep.subr.mxu0 %v438
  %1082 = vmatpush1.msra.mxu0 %v437
  %1083 = vmatprep.subr.mxu0 %v442
  %1084 = vmatpush1.msra.mxu0 %v441
  %1085 = vmatprep.subr.mxu0 %v446
  %1086 = vmatpush1.msra.mxu0 %v445
  %1087 = vmatprep.subr.mxu0 %v450
  %1088 = vmatpush1.msra.mxu0 %v449
  %1089 = vmatprep.subr.mxu0 %v454
  %1090 = vmatpush1.msra.mxu0 %v453
  %1091 = vmatprep.subr.mxu0 0.0
  %1092 = vmatpush1.msra.mxu0 0.0
  %1093 = vmatprep.subr.mxu0 0.0
  %1094 = vmatpush1.msra.mxu0 0.0
  %1095 = vmatprep.subr.mxu0 0.0
  %1096 = vmatpush1.msra.mxu0 0.0
  %1097 = vmatprep.subr.mxu0 0.0
  %1098 = vmatpush1.msra.mxu0 0.0
  %1099 = vmatprep.subr.mxu0 0.0
  %1100 = vmatpush1.msra.mxu0 0.0
  %1101 = vmatprep.subr.mxu0 0.0
  %1102 = vmatpush1.msra.mxu0 0.0
  %1103 = vmatprep.subr.mxu0 0.0
  %1104 = vmatpush1.msra.mxu0 0.0
  %1105 = vmatprep.subr.mxu0 0.0
  %1106 = vmatpush1.msra.mxu0 0.0
  %1107 = vmatprep.subr.mxu0 0.0
  %1108 = vmatpush1.msra.mxu0 0.0
  %1109 = vmatprep.subr.mxu0 0.0
  %1110 = vmatpush1.msra.mxu0 0.0
  %1111 = vmatprep.subr.mxu0 0.0
  %1112 = vmatpush1.msra.mxu0 0.0
  %1113 = vmatprep.subr.mxu0 0.0
  %1114 = vmatpush1.msra.mxu0 0.0
  %1115 = vmatprep.subr.mxu0 0.0
  %1116 = vmatpush1.msra.mxu0 0.0
  %1117 = vmatprep.subr.mxu0 0.0
  %1118 = vmatpush1.msra.mxu0 0.0
  %1119 = vmatprep.subr.mxu0 0.0
  %1120 = vmatpush1.msra.mxu0 0.0
  %1121 = vmatprep.subr.mxu0 0.0
  %1122 = vmatpush1.msra.mxu0 0.0
  %1123 = vmatprep.mubr.f32.mxu0 0.0
  %1124 = vmatmul.mubr.f32.gmra.mrb[0].mxu0 %v620
  %v1125 = vpop.f32.mrb[0].mxu0
  %v1126 = vadd.f32 0.0, %v1125
  %v1127 = vpop.f32.mrb[0].mxu0
  %v1128 = vadd.f32 0.0, %v1127
  %1129 = vdwg.mxu0
  %1130 = vmatprep.subr.mxu0 %v396
  %1131 = vmatpush1.msra.mxu0 %v395
  %1132 = vmatprep.subr.mxu0 %v400
  %1133 = vmatpush1.msra.mxu0 %v399
  %1134 = vmatprep.subr.mxu0 %v404
  %1135 = vmatpush1.msra.mxu0 %v403
  %1136 = vmatprep.subr.mxu0 %v408
  %1137 = vmatpush1.msra.mxu0 %v407
  %1138 = vmatprep.subr.mxu0 %v412
  %1139 = vmatpush1.msra.mxu0 %v411
  %1140 = vmatprep.subr.mxu0 %v416
  %1141 = vmatpush1.msra.mxu0 %v415
  %1142 = vmatprep.subr.mxu0 %v420
  %1143 = vmatpush1.msra.mxu0 %v419
  %1144 = vmatprep.subr.mxu0 %v424
  %1145 = vmatpush1.msra.mxu0 %v423
  %1146 = vmatprep.subr.mxu0 %v428
  %1147 = vmatpush1.msra.mxu0 %v427
  %1148 = vmatprep.subr.mxu0 %v432
  %1149 = vmatpush1.msra.mxu0 %v431
  %1150 = vmatprep.subr.mxu0 %v436
  %1151 = vmatpush1.msra.mxu0 %v435
  %1152 = vmatprep.subr.mxu0 %v440
  %1153 = vmatpush1.msra.mxu0 %v439
  %1154 = vmatprep.subr.mxu0 %v444
  %1155 = vmatpush1.msra.mxu0 %v443
  %1156 = vmatprep.subr.mxu0 %v448
  %1157 = vmatpush1.msra.mxu0 %v447
  %1158 = vmatprep.subr.mxu0 %v452
  %1159 = vmatpush1.msra.mxu0 %v451
  %1160 = vmatprep.subr.mxu0 %v456
  %1161 = vmatpush1.msra.mxu0 %v455
  %1162 = vmatprep.subr.mxu0 0.0
  %1163 = vmatpush1.msra.mxu0 0.0
  %1164 = vmatprep.subr.mxu0 0.0
  %1165 = vmatpush1.msra.mxu0 0.0
  %1166 = vmatprep.subr.mxu0 0.0
  %1167 = vmatpush1.msra.mxu0 0.0
  %1168 = vmatprep.subr.mxu0 0.0
  %1169 = vmatpush1.msra.mxu0 0.0
  %1170 = vmatprep.subr.mxu0 0.0
  %1171 = vmatpush1.msra.mxu0 0.0
  %1172 = vmatprep.subr.mxu0 0.0
  %1173 = vmatpush1.msra.mxu0 0.0
  %1174 = vmatprep.subr.mxu0 0.0
  %1175 = vmatpush1.msra.mxu0 0.0
  %1176 = vmatprep.subr.mxu0 0.0
  %1177 = vmatpush1.msra.mxu0 0.0
  %1178 = vmatprep.subr.mxu0 0.0
  %1179 = vmatpush1.msra.mxu0 0.0
  %1180 = vmatprep.subr.mxu0 0.0
  %1181 = vmatpush1.msra.mxu0 0.0
  %1182 = vmatprep.subr.mxu0 0.0
  %1183 = vmatpush1.msra.mxu0 0.0
  %1184 = vmatprep.subr.mxu0 0.0
  %1185 = vmatpush1.msra.mxu0 0.0
  %1186 = vmatprep.subr.mxu0 0.0
  %1187 = vmatpush1.msra.mxu0 0.0
  %1188 = vmatprep.subr.mxu0 0.0
  %1189 = vmatpush1.msra.mxu0 0.0
  %1190 = vmatprep.subr.mxu0 0.0
  %1191 = vmatpush1.msra.mxu0 0.0
  %1192 = vmatprep.subr.mxu0 0.0
  %1193 = vmatpush1.msra.mxu0 0.0
  %1194 = vmatprep.mubr.f32.mxu0 0.0
  %1195 = vmatmul.mubr.f32.gmra.mrb[0].mxu0 %v620
  %v1196 = vpop.f32.mrb[0].mxu0
  %v1197 = vadd.f32 0.0, %v1196
  %v1198 = vpop.f32.mrb[0].mxu0
  %v1199 = vadd.f32 0.0, %v1198
  %1200 = vdwg.mxu0
  %v1201 = vadd.f32 %v1055, %v1126
  %v1202 = vadd.f32 %v1056, %v1128
  %v1203 = vadd.f32 %v1057, %v1197
  %v1204 = vadd.f32 %v1058, %v1199
  %v1205 = vmul.f32 %v1201, 0.5
  %v1206 = vtanh.pop %v1205
  %v1207 = vmul.f32 %v1206, 0.5
  %v1208 = vadd.f32 %v1207, 0.5
  %v1209 = vmul.f32 %v1202, 0.5
  %v1210 = vtanh.pop %v1209
  %v1211 = vmul.f32 %v1210, 0.5
  %v1212 = vadd.f32 %v1211, 0.5
  %v1213 = vtanh.pop %v1203
  %v1214 = vmul.f32 %v1204, 0.5
  %v1215 = vtanh.pop %v1214
  %v1216 = vmul.f32 %v1215, 0.5
  %v1217 = vadd.f32 %v1216, 0.5
  %v1218 = vmul.f32 %v1212, %v618
  %v1219 = vmul.f32 %v1208, %v1213
  %v1220 = vadd.f32 %v1218, %v1219
  %v1221 = vtanh.pop %v1220
  %v1222 = vmul.f32 %v1217, %v1221
  %1223 = vmatprep.subr.mxu0 %v622
  %1224 = vmatpush1.msra.mxu0 %v621
  %1225 = vmatprep.subr.mxu0 %v626
  %1226 = vmatpush1.msra.mxu0 %v625
  %1227 = vmatprep.subr.mxu0 %v630
  %1228 = vmatpush1.msra.mxu0 %v629
  %1229 = vmatprep.subr.mxu0 %v634
  %1230 = vmatpush1.msra.mxu0 %v633
  %1231 = vmatprep.subr.mxu0 %v638
  %1232 = vmatpush1.msra.mxu0 %v637
  %1233 = vmatprep.subr.mxu0 %v642
  %1234 = vmatpush1.msra.mxu0 %v641
  %1235 = vmatprep.subr.mxu0 %v646
  %1236 = vmatpush1.msra.mxu0 %v645
  %1237 = vmatprep.subr.mxu0 %v650
  %1238 = vmatpush1.msra.mxu0 %v649
  %1239 = vmatprep.subr.mxu0 %v654
  %1240 = vmatpush1.msra.mxu0 %v653
  %1241 = vmatprep.subr.mxu0 %v658
  %1242 = vmatpush1.msra.mxu0 %v657
  %1243 = vmatprep.subr.mxu0 %v662
  %1244 = vmatpush1.msra.mxu0 %v661
  %1245 = vmatprep.subr.mxu0 %v666
  %1246 = vmatpush1.msra.mxu0 %v665
  %1247 = vmatprep.subr.mxu0 %v670
  %1248 = vmatpush1.msra.mxu0 %v669
  %1249 = vmatprep.subr.mxu0 %v674
  %1250 = vmatpush1.msra.mxu0 %v673
  %1251 = vmatprep.subr.mxu0 %v678
  %1252 = vmatpush1.msra.mxu0 %v677
  %1253 = vmatprep.subr.mxu0 %v682
  %1254 = vmatpush1.msra.mxu0 %v681
  %1255 = vmatprep.subr.mxu0 0.0
  %1256 = vmatpush1.msra.mxu0 0.0
  %1257 = vmatprep.subr.mxu0 0.0
  %1258 = vmatpush1.msra.mxu0 0.0
  %1259 = vmatprep.subr.mxu0 0.0
  %1260 = vmatpush1.msra.mxu0 0.0
  %1261 = vmatprep.subr.mxu0 0.0
  %1262 = vmatpush1.msra.mxu0 0.0
  %1263 = vmatprep.subr.mxu0 0.0
  %1264 = vmatpush1.msra.mxu0 0.0
  %1265 = vmatprep.subr.mxu0 0.0
  %1266 = vmatpush1.msra.mxu0 0.0
  %1267 = vmatprep.subr.mxu0 0.0
  %1268 = vmatpush1.msra.mxu0 0.0
  %1269 = vmatprep.subr.mxu0 0.0
  %1270 = vmatpush1.msra.mxu0 0.0
  %1271 = vmatprep.subr.mxu0 0.0
  %1272 = vmatpush1.msra.mxu0 0.0
  %1273 = vmatprep.subr.mxu0 0.0
  %1274 = vmatpush1.msra.mxu0 0.0
  %1275 = vmatprep.subr.mxu0 0.0
  %1276 = vmatpush1.msra.mxu0 0.0
  %1277 = vmatprep.subr.mxu0 0.0
  %1278 = vmatpush1.msra.mxu0 0.0
  %1279 = vmatprep.subr.mxu0 0.0
  %1280 = vmatpush1.msra.mxu0 0.0
  %1281 = vmatprep.subr.mxu0 0.0
  %1282 = vmatpush1.msra.mxu0 0.0
  %1283 = vmatprep.subr.mxu0 0.0
  %1284 = vmatpush1.msra.mxu0 0.0
  %1285 = vmatprep.subr.mxu0 0.0
  %1286 = vmatpush1.msra.mxu0 0.0
  %1287 = vmatprep.mubr.f32.mxu0 0.0
  %1288 = vmatmul.mubr.f32.gmra.mrb[0].mxu0 %v1222
  %v1289 = vpop.f32.mrb[0].mxu0
  %v1290 = vadd.f32 %v372, %v1289
  %v1291 = vpop.f32.mrb[0].mxu0
  %v1292 = vadd.f32 %v376, %v1291
  %1293 = vdwg.mxu0
  %1294 = vmatprep.subr.mxu0 %v624
  %1295 = vmatpush1.msra.mxu0 %v623
  %1296 = vmatprep.subr.mxu0 %v628
  %1297 = vmatpush1.msra.mxu0 %v627
  %1298 = vmatprep.subr.mxu0 %v632
  %1299 = vmatpush1.msra.mxu0 %v631
  %1300 = vmatprep.subr.mxu0 %v636
  %1301 = vmatpush1.msra.mxu0 %v635
  %1302 = vmatprep.subr.mxu0 %v640
  %1303 = vmatpush1.msra.mxu0 %v639
  %1304 = vmatprep.subr.mxu0 %v644
  %1305 = vmatpush1.msra.mxu0 %v643
  %1306 = vmatprep.subr.mxu0 %v648
  %1307 = vmatpush1.msra.mxu0 %v647
  %1308 = vmatprep.subr.mxu0 %v652
  %1309 = vmatpush1.msra.mxu0 %v651
  %1310 = vmatprep.subr.mxu0 %v656
  %1311 = vmatpush1.msra.mxu0 %v655
  %1312 = vmatprep.subr.mxu0 %v660
  %1313 = vmatpush1.msra.mxu0 %v659
  %1314 = vmatprep.subr.mxu0 %v664
  %1315 = vmatpush1.msra.mxu0 %v663
  %1316 = vmatprep.subr.mxu0 %v668
  %1317 = vmatpush1.msra.mxu0 %v667
  %1318 = vmatprep.subr.mxu0 %v672
  %1319 = vmatpush1.msra.mxu0 %v671
  %1320 = vmatprep.subr.mxu0 %v676
  %1321 = vmatpush1.msra.mxu0 %v675
  %1322 = vmatprep.subr.mxu0 %v680
  %1323 = vmatpush1.msra.mxu0 %v679
  %1324 = vmatprep.subr.mxu0 %v684
  %1325 = vmatpush1.msra.mxu0 %v683
  %1326 = vmatprep.subr.mxu0 0.0
  %1327 = vmatpush1.msra.mxu0 0.0
  %1328 = vmatprep.subr.mxu0 0.0
  %1329 = vmatpush1.msra.mxu0 0.0
  %1330 = vmatprep.subr.mxu0 0.0
  %1331 = vmatpush1.msra.mxu0 0.0
  %1332 = vmatprep.subr.mxu0 0.0
  %1333 = vmatpush1.msra.mxu0 0.0
  %1334 = vmatprep.subr.mxu0 0.0
  %1335 = vmatpush1.msra.mxu0 0.0
  %1336 = vmatprep.subr.mxu0 0.0
  %1337 = vmatpush1.msra.mxu0 0.0
  %1338 = vmatprep.subr.mxu0 0.0
  %1339 = vmatpush1.msra.mxu0 0.0
  %1340 = vmatprep.subr.mxu0 0.0
  %1341 = vmatpush1.msra.mxu0 0.0
  %1342 = vmatprep.subr.mxu0 0.0
  %1343 = vmatpush1.msra.mxu0 0.0
  %1344 = vmatprep.subr.mxu0 0.0
  %1345 = vmatpush1.msra.mxu0 0.0
  %1346 = vmatprep.subr.mxu0 0.0
  %1347 = vmatpush1.msra.mxu0 0.0
  %1348 = vmatprep.subr.mxu0 0.0
  %1349 = vmatpush1.msra.mxu0 0.0
  %1350 = vmatprep.subr.mxu0 0.0
  %1351 = vmatpush1.msra.mxu0 0.0
  %1352 = vmatprep.subr.mxu0 0.0
  %1353 = vmatpush1.msra.mxu0 0.0
  %1354 = vmatprep.subr.mxu0 0.0
  %1355 = vmatpush1.msra.mxu0 0.0
  %1356 = vmatprep.subr.mxu0 0.0
  %1357 = vmatpush1.msra.mxu0 0.0
  %1358 = vmatprep.mubr.f32.mxu0 0.0
  %1359 = vmatmul.mubr.f32.gmra.mrb[0].mxu0 %v1222
  %v1360 = vpop.f32.mrb[0].mxu0
  %v1361 = vadd.f32 %v380, %v1360
  %v1362 = vpop.f32.mrb[0].mxu0
  %v1363 = vadd.f32 %v384, %v1362
  %1364 = vdwg.mxu0
  %1365 = vmatprep.subr.mxu0 %v828
  %1366 = vmatpush1.msra.mxu0 %v827
  %1367 = vmatprep.subr.mxu0 %v832
  %1368 = vmatpush1.msra.mxu0 %v831
  %1369 = vmatprep.subr.mxu0 %v836
  %1370 = vmatpush1.msra.mxu0 %v835
  %1371 = vmatprep.subr.mxu0 %v840
  %1372 = vmatpush1.msra.mxu0 %v839
  %1373 = vmatprep.subr.mxu0 %v844
  %1374 = vmatpush1.msra.mxu0 %v843
  %1375 = vmatprep.subr.mxu0 %v848
  %1376 = vmatpush1.msra.mxu0 %v847
  %1377 = vmatprep.subr.mxu0 %v852
  %1378 = vmatpush1.msra.mxu0 %v851
  %1379 = vmatprep.subr.mxu0 %v856
  %1380 = vmatpush1.msra.mxu0 %v855
  %1381 = vmatprep.subr.mxu0 %v860
  %1382 = vmatpush1.msra.mxu0 %v859
  %1383 = vmatprep.subr.mxu0 %v864
  %1384 = vmatpush1.msra.mxu0 %v863
  %1385 = vmatprep.subr.mxu0 %v868
  %1386 = vmatpush1.msra.mxu0 %v867
  %1387 = vmatprep.subr.mxu0 %v872
  %1388 = vmatpush1.msra.mxu0 %v871
  %1389 = vmatprep.subr.mxu0 %v876
  %1390 = vmatpush1.msra.mxu0 %v875
  %1391 = vmatprep.subr.mxu0 %v880
  %1392 = vmatpush1.msra.mxu0 %v879
  %1393 = vmatprep.subr.mxu0 %v884
  %1394 = vmatpush1.msra.mxu0 %v883
  %1395 = vmatprep.subr.mxu0 %v888
  %1396 = vmatpush1.msra.mxu0 %v887
  %1397 = vmatprep.subr.mxu0 0.0
  %1398 = vmatpush1.msra.mxu0 0.0
  %1399 = vmatprep.subr.mxu0 0.0
  %1400 = vmatpush1.msra.mxu0 0.0
  %1401 = vmatprep.subr.mxu0 0.0
  %1402 = vmatpush1.msra.mxu0 0.0
  %1403 = vmatprep.subr.mxu0 0.0
  %1404 = vmatpush1.msra.mxu0 0.0
  %1405 = vmatprep.subr.mxu0 0.0
  %1406 = vmatpush1.msra.mxu0 0.0
  %1407 = vmatprep.subr.mxu0 0.0
  %1408 = vmatpush1.msra.mxu0 0.0
  %1409 = vmatprep.subr.mxu0 0.0
  %1410 = vmatpush1.msra.mxu0 0.0
  %1411 = vmatprep.subr.mxu0 0.0
  %1412 = vmatpush1.msra.mxu0 0.0
  %1413 = vmatprep.subr.mxu0 0.0
  %1414 = vmatpush1.msra.mxu0 0.0
  %1415 = vmatprep.subr.mxu0 0.0
  %1416 = vmatpush1.msra.mxu0 0.0
  %1417 = vmatprep.subr.mxu0 0.0
  %1418 = vmatpush1.msra.mxu0 0.0
  %1419 = vmatprep.subr.mxu0 0.0
  %1420 = vmatpush1.msra.mxu0 0.0
  %1421 = vmatprep.subr.mxu0 0.0
  %1422 = vmatpush1.msra.mxu0 0.0
  %1423 = vmatprep.subr.mxu0 0.0
  %1424 = vmatpush1.msra.mxu0 0.0
  %1425 = vmatprep.subr.mxu0 0.0
  %1426 = vmatpush1.msra.mxu0 0.0
  %1427 = vmatprep.subr.mxu0 0.0
  %1428 = vmatpush1.msra.mxu0 0.0
  %1429 = vmatprep.mubr.f32.mxu0 0.0
  %1430 = vmatmul.mubr.f32.gmra.mrb[0].mxu0 %v1054
  %v1431 = vpop.f32.mrb[0].mxu0
  %v1432 = vadd.f32 0.0, %v1431
  %v1433 = vpop.f32.mrb[0].mxu0
  %v1434 = vadd.f32 0.0, %v1433
  %1435 = vdwg.mxu0
  %1436 = vmatprep.subr.mxu0 %v830
  %1437 = vmatpush1.msra.mxu0 %v829
  %1438 = vmatprep.subr.mxu0 %v834
  %1439 = vmatpush1.msra.mxu0 %v833
  %1440 = vmatprep.subr.mxu0 %v838
  %1441 = vmatpush1.msra.mxu0 %v837
  %1442 = vmatprep.subr.mxu0 %v842
  %1443 = vmatpush1.msra.mxu0 %v841
  %1444 = vmatprep.subr.mxu0 %v846
  %1445 = vmatpush1.msra.mxu0 %v845
  %1446 = vmatprep.subr.mxu0 %v850
  %1447 = vmatpush1.msra.mxu0 %v849
  %1448 = vmatprep.subr.mxu0 %v854
  %1449 = vmatpush1.msra.mxu0 %v853
  %1450 = vmatprep.subr.mxu0 %v858
  %1451 = vmatpush1.msra.mxu0 %v857
  %1452 = vmatprep.subr.mxu0 %v862
  %1453 = vmatpush1.msra.mxu0 %v861
  %1454 = vmatprep.subr.mxu0 %v866
  %1455 = vmatpush1.msra.mxu0 %v865
  %1456 = vmatprep.subr.mxu0 %v870
  %1457 = vmatpush1.msra.mxu0 %v869
  %1458 = vmatprep.subr.mxu0 %v874
  %1459 = vmatpush1.msra.mxu0 %v873
  %1460 = vmatprep.subr.mxu0 %v878
  %1461 = vmatpush1.msra.mxu0 %v877
  %1462 = vmatprep.subr.mxu0 %v882
  %1463 = vmatpush1.msra.mxu0 %v881
  %1464 = vmatprep.subr.mxu0 %v886
  %1465 = vmatpush1.msra.mxu0 %v885
  %1466 = vmatprep.subr.mxu0 %v890
  %1467 = vmatpush1.msra.mxu0 %v889
  %1468 = vmatprep.subr.mxu0 0.0
  %1469 = vmatpush1.msra.mxu0 0.0
  %1470 = vmatprep.subr.mxu0 0.0
  %1471 = vmatpush1.msra.mxu0 0.0
  %1472 = vmatprep.subr.mxu0 0.0
  %1473 = vmatpush1.msra.mxu0 0.0
  %1474 = vmatprep.subr.mxu0 0.0
  %1475 = vmatpush1.msra.mxu0 0.0
  %1476 = vmatprep.subr.mxu0 0.0
  %1477 = vmatpush1.msra.mxu0 0.0
  %1478 = vmatprep.subr.mxu0 0.0
  %1479 = vmatpush1.msra.mxu0 0.0
  %1480 = vmatprep.subr.mxu0 0.0
  %1481 = vmatpush1.msra.mxu0 0.0
  %1482 = vmatprep.subr.mxu0 0.0
  %1483 = vmatpush1.msra.mxu0 0.0
  %1484 = vmatprep.subr.mxu0 0.0
  %1485 = vmatpush1.msra.mxu0 0.0
  %1486 = vmatprep.subr.mxu0 0.0
  %1487 = vmatpush1.msra.mxu0 0.0
  %1488 = vmatprep.subr.mxu0 0.0
  %1489 = vmatpush1.msra.mxu0 0.0
  %1490 = vmatprep.subr.mxu0 0.0
  %1491 = vmatpush1.msra.mxu0 0.0
  %1492 = vmatprep.subr.mxu0 0.0
  %1493 = vmatpush1.msra.mxu0 0.0
  %1494 = vmatprep.subr.mxu0 0.0
  %1495 = vmatpush1.msra.mxu0 0.0
  %1496 = vmatprep.subr.mxu0 0.0
  %1497 = vmatpush1.msra.mxu0 0.0
  %1498 = vmatprep.subr.mxu0 0.0
  %1499 = vmatpush1.msra.mxu0 0.0
  %1500 = vmatprep.mubr.f32.mxu0 0.0
  %1501 = vmatmul.mubr.f32.gmra.mrb[0].mxu0 %v1054
  %v1502 = vpop.f32.mrb[0].mxu0
  %v1503 = vadd.f32 0.0, %v1502
  %v1504 = vpop.f32.mrb[0].mxu0
  %v1505 = vadd.f32 0.0, %v1504
  %1506 = vdwg.mxu0
  %v1507 = vadd.f32 %v1290, %v1432
  %v1508 = vadd.f32 %v1292, %v1434
  %v1509 = vadd.f32 %v1361, %v1503
  %v1510 = vadd.f32 %v1363, %v1505
  %v1511 = vmul.f32 %v1507, 0.5
  %v1512 = vtanh.pop %v1511
  %v1513 = vmul.f32 %v1512, 0.5
  %v1514 = vadd.f32 %v1513, 0.5
  %v1515 = vmul.f32 %v1508, 0.5
  %v1516 = vtanh.pop %v1515
  %v1517 = vmul.f32 %v1516, 0.5
  %v1518 = vadd.f32 %v1517, 0.5
  %v1519 = vtanh.pop %v1509
  %v1520 = vmul.f32 %v1510, 0.5
  %v1521 = vtanh.pop %v1520
  %v1522 = vmul.f32 %v1521, 0.5
  %v1523 = vadd.f32 %v1522, 0.5
  %v1524 = vmul.f32 %v1518, %v1052
  %v1525 = vmul.f32 %v1514, %v1519
  %v1526 = vadd.f32 %v1524, %v1525
  %v1527 = vtanh.pop %v1526
  %v1528 = vmul.f32 %v1523, %v1527
  %v1529 = vld [vmem:[#allocation2 + $0x40] sm:$0xff]
  %v1530 = vld [vmem:[#allocation2 + $0x48] sm:$0xff]
  %v1531 = vld [vmem:[#allocation2 + $0x50] sm:$0xff]
  %v1532 = vld [vmem:[#allocation2 + $0x58] sm:$0xff]
  %1533 = vmatprep.subr.mxu0 %v394
  %1534 = vmatpush1.msra.mxu0 %v393
  %1535 = vmatprep.subr.mxu0 %v398
  %1536 = vmatpush1.msra.mxu0 %v397
  %1537 = vmatprep.subr.mxu0 %v402
  %1538 = vmatpush1.msra.mxu0 %v401
  %1539 = vmatprep.subr.mxu0 %v406
  %1540 = vmatpush1.msra.mxu0 %v405
  %1541 = vmatprep.subr.mxu0 %v410
  %1542 = vmatpush1.msra.mxu0 %v409
  %1543 = vmatprep.subr.mxu0 %v414
  %1544 = vmatpush1.msra.mxu0 %v413
  %1545 = vmatprep.subr.mxu0 %v418
  %1546 = vmatpush1.msra.mxu0 %v417
  %1547 = vmatprep.subr.mxu0 %v422
  %1548 = vmatpush1.msra.mxu0 %v421
  %1549 = vmatprep.subr.mxu0 %v426
  %1550 = vmatpush1.msra.mxu0 %v425
  %1551 = vmatprep.subr.mxu0 %v430
  %1552 = vmatpush1.msra.mxu0 %v429
  %1553 = vmatprep.subr.mxu0 %v434
  %1554 = vmatpush1.msra.mxu0 %v433
  %1555 = vmatprep.subr.mxu0 %v438
  %1556 = vmatpush1.msra.mxu0 %v437
  %1557 = vmatprep.subr.mxu0 %v442
  %1558 = vmatpush1.msra.mxu0 %v441
  %1559 = vmatprep.subr.mxu0 %v446
  %1560 = vmatpush1.msra.mxu0 %v445
  %1561 = vmatprep.subr.mxu0 %v450
  %1562 = vmatpush1.msra.mxu0 %v449
  %1563 = vmatprep.subr.mxu0 %v454
  %1564 = vmatpush1.msra.mxu0 %v453
  %1565 = vmatprep.subr.mxu0 0.0
  %1566 = vmatpush1.msra.mxu0 0.0
  %1567 = vmatprep.subr.mxu0 0.0
  %1568 = vmatpush1.msra.mxu0 0.0
  %1569 = vmatprep.subr.mxu0 0.0
  %1570 = vmatpush1.msra.mxu0 0.0
  %1571 = vmatprep.subr.mxu0 0.0
  %1572 = vmatpush1.msra.mxu0 0.0
  %1573 = vmatprep.subr.mxu0 0.0
  %1574 = vmatpush1.msra.mxu0 0.0
  %1575 = vmatprep.subr.mxu0 0.0
  %1576 = vmatpush1.msra.mxu0 0.0
  %1577 = vmatprep.subr.mxu0 0.0
  %1578 = vmatpush1.msra.mxu0 0.0
  %1579 = vmatprep.subr.mxu0 0.0
  %1580 = vmatpush1.msra.mxu0 0.0
  %1581 = vmatprep.subr.mxu0 0.0
  %1582 = vmatpush1.msra.mxu0 0.0
  %1583 = vmatprep.subr.mxu0 0.0
  %1584 = vmatpush1.msra.mxu0 0.0
  %1585 = vmatprep.subr.mxu0 0.0
  %1586 = vmatpush1.msra.mxu0 0.0
  %1587 = vmatprep.subr.mxu0 0.0
  %1588 = vmatpush1.msra.mxu0 0.0
  %1589 = vmatprep.subr.mxu0 0.0
  %1590 = vmatpush1.msra.mxu0 0.0
  %1591 = vmatprep.subr.mxu0 0.0
  %1592 = vmatpush1.msra.mxu0 0.0
  %1593 = vmatprep.subr.mxu0 0.0
  %1594 = vmatpush1.msra.mxu0 0.0
  %1595 = vmatprep.subr.mxu0 0.0
  %1596 = vmatpush1.msra.mxu0 0.0
  %1597 = vmatprep.mubr.f32.mxu0 0.0
  %1598 = vmatmul.mubr.f32.gmra.mrb[0].mxu0 %v1222
  %v1599 = vpop.f32.mrb[0].mxu0
  %v1600 = vadd.f32 0.0, %v1599
  %v1601 = vpop.f32.mrb[0].mxu0
  %v1602 = vadd.f32 0.0, %v1601
  %1603 = vdwg.mxu0
  %1604 = vmatprep.subr.mxu0 %v396
  %1605 = vmatpush1.msra.mxu0 %v395
  %1606 = vmatprep.subr.mxu0 %v400
  %1607 = vmatpush1.msra.mxu0 %v399
  %1608 = vmatprep.subr.mxu0 %v404
  %1609 = vmatpush1.msra.mxu0 %v403
  %1610 = vmatprep.subr.mxu0 %v408
  %1611 = vmatpush1.msra.mxu0 %v407
  %1612 = vmatprep.subr.mxu0 %v412
  %1613 = vmatpush1.msra.mxu0 %v411
  %1614 = vmatprep.subr.mxu0 %v416
  %1615 = vmatpush1.msra.mxu0 %v415
  %1616 = vmatprep.subr.mxu0 %v420
  %1617 = vmatpush1.msra.mxu0 %v419
  %1618 = vmatprep.subr.mxu0 %v424
  %1619 = vmatpush1.msra.mxu0 %v423
  %1620 = vmatprep.subr.mxu0 %v428
  %1621 = vmatpush1.msra.mxu0 %v427
  %1622 = vmatprep.subr.mxu0 %v432
  %1623 = vmatpush1.msra.mxu0 %v431
  %1624 = vmatprep.subr.mxu0 %v436
  %1625 = vmatpush1.msra.mxu0 %v435
  %1626 = vmatprep.subr.mxu0 %v440
  %1627 = vmatpush1.msra.mxu0 %v439
  %1628 = vmatprep.subr.mxu0 %v444
  %1629 = vmatpush1.msra.mxu0 %v443
  %1630 = vmatprep.subr.mxu0 %v448
  %1631 = vmatpush1.msra.mxu0 %v447
  %1632 = vmatprep.subr.mxu0 %v452
  %1633 = vmatpush1.msra.mxu0 %v451
  %1634 = vmatprep.subr.mxu0 %v456
  %1635 = vmatpush1.msra.mxu0 %v455
  %1636 = vmatprep.subr.mxu0 0.0
  %1637 = vmatpush1.msra.mxu0 0.0
  %1638 = vmatprep.subr.mxu0 0.0
  %1639 = vmatpush1.msra.mxu0 0.0
  %1640 = vmatprep.subr.mxu0 0.0
  %1641 = vmatpush1.msra.mxu0 0.0
  %1642 = vmatprep.subr.mxu0 0.0
  %1643 = vmatpush1.msra.mxu0 0.0
  %1644 = vmatprep.subr.mxu0 0.0
  %1645 = vmatpush1.msra.mxu0 0.0
  %1646 = vmatprep.subr.mxu0 0.0
  %1647 = vmatpush1.msra.mxu0 0.0
  %1648 = vmatprep.subr.mxu0 0.0
  %1649 = vmatpush1.msra.mxu0 0.0
  %1650 = vmatprep.subr.mxu0 0.0
  %1651 = vmatpush1.msra.mxu0 0.0
  %1652 = vmatprep.subr.mxu0 0.0
  %1653 = vmatpush1.msra.mxu0 0.0
  %1654 = vmatprep.subr.mxu0 0.0
  %1655 = vmatpush1.msra.mxu0 0.0
  %1656 = vmatprep.subr.mxu0 0.0
  %1657 = vmatpush1.msra.mxu0 0.0
  %1658 = vmatprep.subr.mxu0 0.0
  %1659 = vmatpush1.msra.mxu0 0.0
  %1660 = vmatprep.subr.mxu0 0.0
  %1661 = vmatpush1.msra.mxu0 0.0
  %1662 = vmatprep.subr.mxu0 0.0
  %1663 = vmatpush1.msra.mxu0 0.0
  %1664 = vmatprep.subr.mxu0 0.0
  %1665 = vmatpush1.msra.mxu0 0.0
  %1666 = vmatprep.subr.mxu0 0.0
  %1667 = vmatpush1.msra.mxu0 0.0
  %1668 = vmatprep.mubr.f32.mxu0 0.0
  %1669 = vmatmul.mubr.f32.gmra.mrb[0].mxu0 %v1222
  %v1670 = vpop.f32.mrb[0].mxu0
  %v1671 = vadd.f32 0.0, %v1670
  %v1672 = vpop.f32.mrb[0].mxu0
  %v1673 = vadd.f32 0.0, %v1672
  %1674 = vdwg.mxu0
  %v1675 = vadd.f32 %v1529, %v1600
  %v1676 = vadd.f32 %v1530, %v1602
  %v1677 = vadd.f32 %v1531, %v1671
  %v1678 = vadd.f32 %v1532, %v1673
  %v1679 = vmul.f32 %v1675, 0.5
  %v1680 = vtanh.pop %v1679
  %v1681 = vmul.f32 %v1680, 0.5
  %v1682 = vadd.f32 %v1681, 0.5
  %v1683 = vmul.f32 %v1676, 0.5
  %v1684 = vtanh.pop %v1683
  %v1685 = vmul.f32 %v1684, 0.5
  %v1686 = vadd.f32 %v1685, 0.5
  %v1687 = vtanh.pop %v1677
  %v1688 = vmul.f32 %v1678, 0.5
  %v1689 = vtanh.pop %v1688
  %v1690 = vmul.f32 %v1689, 0.5
  %v1691 = vadd.f32 %v1690, 0.5
  %v1692 = vmul.f32 %v1686, %v1220
  %v1693 = vmul.f32 %v1682, %v1687
  %v1694 = vadd.f32 %v1692, %v1693
  %v1695 = vtanh.pop %v1694
  %v1696 = vmul.f32 %v1691, %v1695
  %1697 = vmatprep.subr.mxu0 %v622
  %1698 = vmatpush1.msra.mxu0 %v621
  %1699 = vmatprep.subr.mxu0 %v626
  %1700 = vmatpush1.msra.mxu0 %v625
  %1701 = vmatprep.subr.mxu0 %v630
  %1702 = vmatpush1.msra.mxu0 %v629
  %1703 = vmatprep.subr.mxu0 %v634
  %1704 = vmatpush1.msra.mxu0 %v633
  %1705 = vmatprep.subr.mxu0 %v638
  %1706 = vmatpush1.msra.mxu0 %v637
  %1707 = vmatprep.subr.mxu0 %v642
  %1708 = vmatpush1.msra.mxu0 %v641
  %1709 = vmatprep.subr.mxu0 %v646
  %1710 = vmatpush1.msra.mxu0 %v645
  %1711 = vmatprep.subr.mxu0 %v650
  %1712 = vmatpush1.msra.mxu0 %v649
  %1713 = vmatprep.subr.mxu0 %v654
  %1714 = vmatpush1.msra.mxu0 %v653
  %1715 = vmatprep.subr.mxu0 %v658
  %1716 = vmatpush1.msra.mxu0 %v657
  %1717 = vmatprep.subr.mxu0 %v662
  %1718 = vmatpush1.msra.mxu0 %v661
  %1719 = vmatprep.subr.mxu0 %v666
  %1720 = vmatpush1.msra.mxu0 %v665
  %1721 = vmatprep.subr.mxu0 %v670
  %1722 = vmatpush1.msra.mxu0 %v669
  %1723 = vmatprep.subr.mxu0 %v674
  %1724 = vmatpush1.msra.mxu0 %v673
  %1725 = vmatprep.subr.mxu0 %v678
  %1726 = vmatpush1.msra.mxu0 %v677
  %1727 = vmatprep.subr.mxu0 %v682
  %1728 = vmatpush1.msra.mxu0 %v681
  %1729 = vmatprep.subr.mxu0 0.0
  %1730 = vmatpush1.msra.mxu0 0.0
  %1731 = vmatprep.subr.mxu0 0.0
  %1732 = vmatpush1.msra.mxu0 0.0
  %1733 = vmatprep.subr.mxu0 0.0
  %1734 = vmatpush1.msra.mxu0 0.0
  %1735 = vmatprep.subr.mxu0 0.0
  %1736 = vmatpush1.msra.mxu0 0.0
  %1737 = vmatprep.subr.mxu0 0.0
  %1738 = vmatpush1.msra.mxu0 0.0
  %1739 = vmatprep.subr.mxu0 0.0
  %1740 = vmatpush1.msra.mxu0 0.0
  %1741 = vmatprep.subr.mxu0 0.0
  %1742 = vmatpush1.msra.mxu0 0.0
  %1743 = vmatprep.subr.mxu0 0.0
  %1744 = vmatpush1.msra.mxu0 0.0
  %1745 = vmatprep.subr.mxu0 0.0
  %1746 = vmatpush1.msra.mxu0 0.0
  %1747 = vmatprep.subr.mxu0 0.0
  %1748 = vmatpush1.msra.mxu0 0.0
  %1749 = vmatprep.subr.mxu0 0.0
  %1750 = vmatpush1.msra.mxu0 0.0
  %1751 = vmatprep.subr.mxu0 0.0
  %1752 = vmatpush1.msra.mxu0 0.0
  %1753 = vmatprep.subr.mxu0 0.0
  %1754 = vmatpush1.msra.mxu0 0.0
  %1755 = vmatprep.subr.mxu0 0.0
  %1756 = vmatpush1.msra.mxu0 0.0
  %1757 = vmatprep.subr.mxu0 0.0
  %1758 = vmatpush1.msra.mxu0 0.0
  %1759 = vmatprep.subr.mxu0 0.0
  %1760 = vmatpush1.msra.mxu0 0.0
  %1761 = vmatprep.mubr.f32.mxu0 0.0
  %1762 = vmatmul.mubr.f32.gmra.mrb[0].mxu0 %v1696
  %v1763 = vpop.f32.mrb[0].mxu0
  %v1764 = vadd.f32 %v372, %v1763
  %v1765 = vpop.f32.mrb[0].mxu0
  %v1766 = vadd.f32 %v376, %v1765
  %1767 = vdwg.mxu0
  %1768 = vmatprep.subr.mxu0 %v624
  %1769 = vmatpush1.msra.mxu0 %v623
  %1770 = vmatprep.subr.mxu0 %v628
  %1771 = vmatpush1.msra.mxu0 %v627
  %1772 = vmatprep.subr.mxu0 %v632
  %1773 = vmatpush1.msra.mxu0 %v631
  %1774 = vmatprep.subr.mxu0 %v636
  %1775 = vmatpush1.msra.mxu0 %v635
  %1776 = vmatprep.subr.mxu0 %v640
  %1777 = vmatpush1.msra.mxu0 %v639
  %1778 = vmatprep.subr.mxu0 %v644
  %1779 = vmatpush1.msra.mxu0 %v643
  %1780 = vmatprep.subr.mxu0 %v648
  %1781 = vmatpush1.msra.mxu0 %v647
  %1782 = vmatprep.subr.mxu0 %v652
  %1783 = vmatpush1.msra.mxu0 %v651
  %1784 = vmatprep.subr.mxu0 %v656
  %1785 = vmatpush1.msra.mxu0 %v655
  %1786 = vmatprep.subr.mxu0 %v660
  %1787 = vmatpush1.msra.mxu0 %v659
  %1788 = vmatprep.subr.mxu0 %v664
  %1789 = vmatpush1.msra.mxu0 %v663
  %1790 = vmatprep.subr.mxu0 %v668
  %1791 = vmatpush1.msra.mxu0 %v667
  %1792 = vmatprep.subr.mxu0 %v672
  %1793 = vmatpush1.msra.mxu0 %v671
  %1794 = vmatprep.subr.mxu0 %v676
  %1795 = vmatpush1.msra.mxu0 %v675
  %1796 = vmatprep.subr.mxu0 %v680
  %1797 = vmatpush1.msra.mxu0 %v679
  %1798 = vmatprep.subr.mxu0 %v684
  %1799 = vmatpush1.msra.mxu0 %v683
  %1800 = vmatprep.subr.mxu0 0.0
  %1801 = vmatpush1.msra.mxu0 0.0
  %1802 = vmatprep.subr.mxu0 0.0
  %1803 = vmatpush1.msra.mxu0 0.0
  %1804 = vmatprep.subr.mxu0 0.0
  %1805 = vmatpush1.msra.mxu0 0.0
  %1806 = vmatprep.subr.mxu0 0.0
  %1807 = vmatpush1.msra.mxu0 0.0
  %1808 = vmatprep.subr.mxu0 0.0
  %1809 = vmatpush1.msra.mxu0 0.0
  %1810 = vmatprep.subr.mxu0 0.0
  %1811 = vmatpush1.msra.mxu0 0.0
  %1812 = vmatprep.subr.mxu0 0.0
  %1813 = vmatpush1.msra.mxu0 0.0
  %1814 = vmatprep.subr.mxu0 0.0
  %1815 = vmatpush1.msra.mxu0 0.0
  %1816 = vmatprep.subr.mxu0 0.0
  %1817 = vmatpush1.msra.mxu0 0.0
  %1818 = vmatprep.subr.mxu0 0.0
  %1819 = vmatpush1.msra.mxu0 0.0
  %1820 = vmatprep.subr.mxu0 0.0
  %1821 = vmatpush1.msra.mxu0 0.0
  %1822 = vmatprep.subr.mxu0 0.0
  %1823 = vmatpush1.msra.mxu0 0.0
  %1824 = vmatprep.subr.mxu0 0.0
  %1825 = vmatpush1.msra.mxu0 0.0
  %1826 = vmatprep.subr.mxu0 0.0
  %1827 = vmatpush1.msra.mxu0 0.0
  %1828 = vmatprep.subr.mxu0 0.0
  %1829 = vmatpush1.msra.mxu0 0.0
  %1830 = vmatprep.subr.mxu0 0.0
  %1831 = vmatpush1.msra.mxu0 0.0
  %1832 = vmatprep.mubr.f32.mxu0 0.0
  %1833 = vmatmul.mubr.f32.gmra.mrb[0].mxu0 %v1696
  %v1834 = vpop.f32.mrb[0].mxu0
  %v1835 = vadd.f32 %v380, %v1834
  %v1836 = vpop.f32.mrb[0].mxu0
  %v1837 = vadd.f32 %v384, %v1836
  %1838 = vdwg.mxu0
  %1839 = vmatprep.subr.mxu0 %v828
  %1840 = vmatpush1.msra.mxu0 %v827
  %1841 = vmatprep.subr.mxu0 %v832
  %1842 = vmatpush1.msra.mxu0 %v831
  %1843 = vmatprep.subr.mxu0 %v836
  %1844 = vmatpush1.msra.mxu0 %v835
  %1845 = vmatprep.subr.mxu0 %v840
  %1846 = vmatpush1.msra.mxu0 %v839
  %1847 = vmatprep.subr.mxu0 %v844
  %1848 = vmatpush1.msra.mxu0 %v843
  %1849 = vmatprep.subr.mxu0 %v848
  %1850 = vmatpush1.msra.mxu0 %v847
  %1851 = vmatprep.subr.mxu0 %v852
  %1852 = vmatpush1.msra.mxu0 %v851
  %1853 = vmatprep.subr.mxu0 %v856
  %1854 = vmatpush1.msra.mxu0 %v855
  %1855 = vmatprep.subr.mxu0 %v860
  %1856 = vmatpush1.msra.mxu0 %v859
  %1857 = vmatprep.subr.mxu0 %v864
  %1858 = vmatpush1.msra.mxu0 %v863
  %1859 = vmatprep.subr.mxu0 %v868
  %1860 = vmatpush1.msra.mxu0 %v867
  %1861 = vmatprep.subr.mxu0 %v872
  %1862 = vmatpush1.msra.mxu0 %v871
  %1863 = vmatprep.subr.mxu0 %v876
  %1864 = vmatpush1.msra.mxu0 %v875
  %1865 = vmatprep.subr.mxu0 %v880
  %1866 = vmatpush1.msra.mxu0 %v879
  %1867 = vmatprep.subr.mxu0 %v884
  %1868 = vmatpush1.msra.mxu0 %v883
  %1869 = vmatprep.subr.mxu0 %v888
  %1870 = vmatpush1.msra.mxu0 %v887
  %1871 = vmatprep.subr.mxu0 0.0
  %1872 = vmatpush1.msra.mxu0 0.0
  %1873 = vmatprep.subr.mxu0 0.0
  %1874 = vmatpush1.msra.mxu0 0.0
  %1875 = vmatprep.subr.mxu0 0.0
  %1876 = vmatpush1.msra.mxu0 0.0
  %1877 = vmatprep.subr.mxu0 0.0
  %1878 = vmatpush1.msra.mxu0 0.0
  %1879 = vmatprep.subr.mxu0 0.0
  %1880 = vmatpush1.msra.mxu0 0.0
  %1881 = vmatprep.subr.mxu0 0.0
  %1882 = vmatpush1.msra.mxu0 0.0
  %1883 = vmatprep.subr.mxu0 0.0
  %1884 = vmatpush1.msra.mxu0 0.0
  %1885 = vmatprep.subr.mxu0 0.0
  %1886 = vmatpush1.msra.mxu0 0.0
  %1887 = vmatprep.subr.mxu0 0.0
  %1888 = vmatpush1.msra.mxu0 0.0
  %1889 = vmatprep.subr.mxu0 0.0
  %1890 = vmatpush1.msra.mxu0 0.0
  %1891 = vmatprep.subr.mxu0 0.0
  %1892 = vmatpush1.msra.mxu0 0.0
  %1893 = vmatprep.subr.mxu0 0.0
  %1894 = vmatpush1.msra.mxu0 0.0
  %1895 = vmatprep.subr.mxu0 0.0
  %1896 = vmatpush1.msra.mxu0 0.0
  %1897 = vmatprep.subr.mxu0 0.0
  %1898 = vmatpush1.msra.mxu0 0.0
  %1899 = vmatprep.subr.mxu0 0.0
  %1900 = vmatpush1.msra.mxu0 0.0
  %1901 = vmatprep.subr.mxu0 0.0
  %1902 = vmatpush1.msra.mxu0 0.0
  %1903 = vmatprep.mubr.f32.mxu0 0.0
  %1904 = vmatmul.mubr.f32.gmra.mrb[0].mxu0 %v1528
  %v1905 = vpop.f32.mrb[0].mxu0
  %v1906 = vadd.f32 0.0, %v1905
  %v1907 = vpop.f32.mrb[0].mxu0
  %v1908 = vadd.f32 0.0, %v1907
  %1909 = vdwg.mxu0
  %1910 = vmatprep.subr.mxu0 %v830
  %1911 = vmatpush1.msra.mxu0 %v829
  %1912 = vmatprep.subr.mxu0 %v834
  %1913 = vmatpush1.msra.mxu0 %v833
  %1914 = vmatprep.subr.mxu0 %v838
  %1915 = vmatpush1.msra.mxu0 %v837
  %1916 = vmatprep.subr.mxu0 %v842
  %1917 = vmatpush1.msra.mxu0 %v841
  %1918 = vmatprep.subr.mxu0 %v846
  %1919 = vmatpush1.msra.mxu0 %v845
  %1920 = vmatprep.subr.mxu0 %v850
  %1921 = vmatpush1.msra.mxu0 %v849
  %1922 = vmatprep.subr.mxu0 %v854
  %1923 = vmatpush1.msra.mxu0 %v853
  %1924 = vmatprep.subr.mxu0 %v858
  %1925 = vmatpush1.msra.mxu0 %v857
  %1926 = vmatprep.subr.mxu0 %v862
  %1927 = vmatpush1.msra.mxu0 %v861
  %1928 = vmatprep.subr.mxu0 %v866
  %1929 = vmatpush1.msra.mxu0 %v865
  %1930 = vmatprep.subr.mxu0 %v870
  %1931 = vmatpush1.msra.mxu0 %v869
  %1932 = vmatprep.subr.mxu0 %v874
  %1933 = vmatpush1.msra.mxu0 %v873
  %1934 = vmatprep.subr.mxu0 %v878
  %1935 = vmatpush1.msra.mxu0 %v877
  %1936 = vmatprep.subr.mxu0 %v882
  %1937 = vmatpush1.msra.mxu0 %v881
  %1938 = vmatprep.subr.mxu0 %v886
  %1939 = vmatpush1.msra.mxu0 %v885
  %1940 = vmatprep.subr.mxu0 %v890
  %1941 = vmatpush1.msra.mxu0 %v889
  %1942 = vmatprep.subr.mxu0 0.0
  %1943 = vmatpush1.msra.mxu0 0.0
  %1944 = vmatprep.subr.mxu0 0.0
  %1945 = vmatpush1.msra.mxu0 0.0
  %1946 = vmatprep.subr.mxu0 0.0
  %1947 = vmatpush1.msra.mxu0 0.0
  %1948 = vmatprep.subr.mxu0 0.0
  %1949 = vmatpush1.msra.mxu0 0.0
  %1950 = vmatprep.subr.mxu0 0.0
  %1951 = vmatpush1.msra.mxu0 0.0
  %1952 = vmatprep.subr.mxu0 0.0
  %1953 = vmatpush1.msra.mxu0 0.0
  %1954 = vmatprep.subr.mxu0 0.0
  %1955 = vmatpush1.msra.mxu0 0.0
  %1956 = vmatprep.subr.mxu0 0.0
  %1957 = vmatpush1.msra.mxu0 0.0
  %1958 = vmatprep.subr.mxu0 0.0
  %1959 = vmatpush1.msra.mxu0 0.0
  %1960 = vmatprep.subr.mxu0 0.0
  %1961 = vmatpush1.msra.mxu0 0.0
  %1962 = vmatprep.subr.mxu0 0.0
  %1963 = vmatpush1.msra.mxu0 0.0
  %1964 = vmatprep.subr.mxu0 0.0
  %1965 = vmatpush1.msra.mxu0 0.0
  %1966 = vmatprep.subr.mxu0 0.0
  %1967 = vmatpush1.msra.mxu0 0.0
  %1968 = vmatprep.subr.mxu0 0.0
  %1969 = vmatpush1.msra.mxu0 0.0
  %1970 = vmatprep.subr.mxu0 0.0
  %1971 = vmatpush1.msra.mxu0 0.0
  %1972 = vmatprep.subr.mxu0 0.0
  %1973 = vmatpush1.msra.mxu0 0.0
  %1974 = vmatprep.mubr.f32.mxu0 0.0
  %1975 = vmatmul.mubr.f32.gmra.mrb[0].mxu0 %v1528
  %v1976 = vpop.f32.mrb[0].mxu0
  %v1977 = vadd.f32 0.0, %v1976
  %v1978 = vpop.f32.mrb[0].mxu0
  %v1979 = vadd.f32 0.0, %v1978
  %1980 = vdwg.mxu0
  %v1981 = vadd.f32 %v1764, %v1906
  %v1982 = vadd.f32 %v1766, %v1908
  %v1983 = vadd.f32 %v1835, %v1977
  %v1984 = vadd.f32 %v1837, %v1979
  %v1985 = vmul.f32 %v1981, 0.5
  %v1986 = vtanh.pop %v1985
  %v1987 = vmul.f32 %v1986, 0.5
  %v1988 = vadd.f32 %v1987, 0.5
  %v1989 = vmul.f32 %v1982, 0.5
  %v1990 = vtanh.pop %v1989
  %v1991 = vmul.f32 %v1990, 0.5
  %v1992 = vadd.f32 %v1991, 0.5
  %v1993 = vtanh.pop %v1983
  %v1994 = vmul.f32 %v1984, 0.5
  %v1995 = vtanh.pop %v1994
  %v1996 = vmul.f32 %v1995, 0.5
  %v1997 = vadd.f32 %v1996, 0.5
  %v1998 = vmul.f32 %v1992, %v1526
  %v1999 = vmul.f32 %v1988, %v1993
  %v2000 = vadd.f32 %v1998, %v1999
  %v2001 = vtanh.pop %v2000
  %v2002 = vmul.f32 %v1997, %v2001
  %v2003 = vld [vmem:[#allocation2 + $0x60] sm:$0xff]
  %v2004 = vld [vmem:[#allocation2 + $0x68] sm:$0xff]
  %v2005 = vld [vmem:[#allocation2 + $0x70] sm:$0xff]
  %v2006 = vld [vmem:[#allocation2 + $0x78] sm:$0xff]
  %2007 = vmatprep.subr.mxu0 %v394
  %2008 = vmatpush1.msra.mxu0 %v393
  %2009 = vmatprep.subr.mxu0 %v398
  %2010 = vmatpush1.msra.mxu0 %v397
  %2011 = vmatprep.subr.mxu0 %v402
  %2012 = vmatpush1.msra.mxu0 %v401
  %2013 = vmatprep.subr.mxu0 %v406
  %2014 = vmatpush1.msra.mxu0 %v405
  %2015 = vmatprep.subr.mxu0 %v410
  %2016 = vmatpush1.msra.mxu0 %v409
  %2017 = vmatprep.subr.mxu0 %v414
  %2018 = vmatpush1.msra.mxu0 %v413
  %2019 = vmatprep.subr.mxu0 %v418
  %2020 = vmatpush1.msra.mxu0 %v417
  %2021 = vmatprep.subr.mxu0 %v422
  %2022 = vmatpush1.msra.mxu0 %v421
  %2023 = vmatprep.subr.mxu0 %v426
  %2024 = vmatpush1.msra.mxu0 %v425
  %2025 = vmatprep.subr.mxu0 %v430
  %2026 = vmatpush1.msra.mxu0 %v429
  %2027 = vmatprep.subr.mxu0 %v434
  %2028 = vmatpush1.msra.mxu0 %v433
  %2029 = vmatprep.subr.mxu0 %v438
  %2030 = vmatpush1.msra.mxu0 %v437
  %2031 = vmatprep.subr.mxu0 %v442
  %2032 = vmatpush1.msra.mxu0 %v441
  %2033 = vmatprep.subr.mxu0 %v446
  %2034 = vmatpush1.msra.mxu0 %v445
  %2035 = vmatprep.subr.mxu0 %v450
  %2036 = vmatpush1.msra.mxu0 %v449
  %2037 = vmatprep.subr.mxu0 %v454
  %2038 = vmatpush1.msra.mxu0 %v453
  %2039 = vmatprep.subr.mxu0 0.0
  %2040 = vmatpush1.msra.mxu0 0.0
  %2041 = vmatprep.subr.mxu0 0.0
  %2042 = vmatpush1.msra.mxu0 0.0
  %2043 = vmatprep.subr.mxu0 0.0
  %2044 = vmatpush1.msra.mxu0 0.0
  %2045 = vmatprep.subr.mxu0 0.0
  %2046 = vmatpush1.msra.mxu0 0.0
  %2047 = vmatprep.subr.mxu0 0.0
  %2048 = vmatpush1.msra.mxu0 0.0
  %2049 = vmatprep.subr.mxu0 0.0
  %2050 = vmatpush1.msra.mxu0 0.0
  %2051 = vmatprep.subr.mxu0 0.0
  %2052 = vmatpush1.msra.mxu0 0.0
  %2053 = vmatprep.subr.mxu0 0.0
  %2054 = vmatpush1.msra.mxu0 0.0
  %2055 = vmatprep.subr.mxu0 0.0
  %2056 = vmatpush1.msra.mxu0 0.0
  %2057 = vmatprep.subr.mxu0 0.0
  %2058 = vmatpush1.msra.mxu0 0.0
  %2059 = vmatprep.subr.mxu0 0.0
  %2060 = vmatpush1.msra.mxu0 0.0
  %2061 = vmatprep.subr.mxu0 0.0
  %2062 = vmatpush1.msra.mxu0 0.0
  %2063 = vmatprep.subr.mxu0 0.0
  %2064 = vmatpush1.msra.mxu0 0.0
  %2065 = vmatprep.subr.mxu0 0.0
  %2066 = vmatpush1.msra.mxu0 0.0
  %2067 = vmatprep.subr.mxu0 0.0
  %2068 = vmatpush1.msra.mxu0 0.0
  %2069 = vmatprep.subr.mxu0 0.0
  %2070 = vmatpush1.msra.mxu0 0.0
  %2071 = vmatprep.mubr.f32.mxu0 0.0
  %2072 = vmatmul.mubr.f32.gmra.mrb[0].mxu0 %v1696
  %v2073 = vpop.f32.mrb[0].mxu0
  %v2074 = vadd.f32 0.0, %v2073
  %v2075 = vpop.f32.mrb[0].mxu0
  %v2076 = vadd.f32 0.0, %v2075
  %2077 = vdwg.mxu0
  %2078 = vmatprep.subr.mxu0 %v396
  %2079 = vmatpush1.msra.mxu0 %v395
  %2080 = vmatprep.subr.mxu0 %v400
  %2081 = vmatpush1.msra.mxu0 %v399
  %2082 = vmatprep.subr.mxu0 %v404
  %2083 = vmatpush1.msra.mxu0 %v403
  %2084 = vmatprep.subr.mxu0 %v408
  %2085 = vmatpush1.msra.mxu0 %v407
  %2086 = vmatprep.subr.mxu0 %v412
  %2087 = vmatpush1.msra.mxu0 %v411
  %2088 = vmatprep.subr.mxu0 %v416
  %2089 = vmatpush1.msra.mxu0 %v415
  %2090 = vmatprep.subr.mxu0 %v420
  %2091 = vmatpush1.msra.mxu0 %v419
  %2092 = vmatprep.subr.mxu0 %v424
  %2093 = vmatpush1.msra.mxu0 %v423
  %2094 = vmatprep.subr.mxu0 %v428
  %2095 = vmatpush1.msra.mxu0 %v427
  %2096 = vmatprep.subr.mxu0 %v432
  %2097 = vmatpush1.msra.mxu0 %v431
  %2098 = vmatprep.subr.mxu0 %v436
  %2099 = vmatpush1.msra.mxu0 %v435
  %2100 = vmatprep.subr.mxu0 %v440
  %2101 = vmatpush1.msra.mxu0 %v439
  %2102 = vmatprep.subr.mxu0 %v444
  %2103 = vmatpush1.msra.mxu0 %v443
  %2104 = vmatprep.subr.mxu0 %v448
  %2105 = vmatpush1.msra.mxu0 %v447
  %2106 = vmatprep.subr.mxu0 %v452
  %2107 = vmatpush1.msra.mxu0 %v451
  %2108 = vmatprep.subr.mxu0 %v456
  %2109 = vmatpush1.msra.mxu0 %v455
  %2110 = vmatprep.subr.mxu0 0.0
  %2111 = vmatpush1.msra.mxu0 0.0
  %2112 = vmatprep.subr.mxu0 0.0
  %2113 = vmatpush1.msra.mxu0 0.0
  %2114 = vmatprep.subr.mxu0 0.0
  %2115 = vmatpush1.msra.mxu0 0.0
  %2116 = vmatprep.subr.mxu0 0.0
  %2117 = vmatpush1.msra.mxu0 0.0
  %2118 = vmatprep.subr.mxu0 0.0
  %2119 = vmatpush1.msra.mxu0 0.0
  %2120 = vmatprep.subr.mxu0 0.0
  %2121 = vmatpush1.msra.mxu0 0.0
  %2122 = vmatprep.subr.mxu0 0.0
  %2123 = vmatpush1.msra.mxu0 0.0
  %2124 = vmatprep.subr.mxu0 0.0
  %2125 = vmatpush1.msra.mxu0 0.0
  %2126 = vmatprep.subr.mxu0 0.0
  %2127 = vmatpush1.msra.mxu0 0.0
  %2128 = vmatprep.subr.mxu0 0.0
  %2129 = vmatpush1.msra.mxu0 0.0
  %2130 = vmatprep.subr.mxu0 0.0
  %2131 = vmatpush1.msra.mxu0 0.0
  %2132 = vmatprep.subr.mxu0 0.0
  %2133 = vmatpush1.msra.mxu0 0.0
  %2134 = vmatprep.subr.mxu0 0.0
  %2135 = vmatpush1.msra.mxu0 0.0
  %2136 = vmatprep.subr.mxu0 0.0
  %2137 = vmatpush1.msra.mxu0 0.0
  %2138 = vmatprep.subr.mxu0 0.0
  %2139 = vmatpush1.msra.mxu0 0.0
  %2140 = vmatprep.subr.mxu0 0.0
  %2141 = vmatpush1.msra.mxu0 0.0
  %2142 = vmatprep.mubr.f32.mxu0 0.0
  %2143 = vmatmul.mubr.f32.gmra.mrb[0].mxu0 %v1696
  %v2144 = vpop.f32.mrb[0].mxu0
  %v2145 = vadd.f32 0.0, %v2144
  %v2146 = vpop.f32.mrb[0].mxu0
  %v2147 = vadd.f32 0.0, %v2146
  %2148 = vdwg.mxu0
  %v2149 = vadd.f32 %v2003, %v2074
  %v2150 = vadd.f32 %v2004, %v2076
  %v2151 = vadd.f32 %v2005, %v2145
  %v2152 = vadd.f32 %v2006, %v2147
  %v2153 = vmul.f32 %v2149, 0.5
  %v2154 = vtanh.pop %v2153
  %v2155 = vmul.f32 %v2154, 0.5
  %v2156 = vadd.f32 %v2155, 0.5
  %v2157 = vmul.f32 %v2150, 0.5
  %v2158 = vtanh.pop %v2157
  %v2159 = vmul.f32 %v2158, 0.5
  %v2160 = vadd.f32 %v2159, 0.5
  %v2161 = vtanh.pop %v2151
  %v2162 = vmul.f32 %v2152, 0.5
  %v2163 = vtanh.pop %v2162
  %v2164 = vmul.f32 %v2163, 0.5
  %v2165 = vadd.f32 %v2164, 0.5
  %v2166 = vmul.f32 %v2160, %v1694
  %v2167 = vmul.f32 %v2156, %v2161
  %v2168 = vadd.f32 %v2166, %v2167
  %v2169 = vtanh.pop %v2168
  %v2170 = vmul.f32 %v2165, %v2169
  %2171 = vmatprep.subr.mxu0 %v622
  %2172 = vmatpush1.msra.mxu0 %v621
  %2173 = vmatprep.subr.mxu0 %v626
  %2174 = vmatpush1.msra.mxu0 %v625
  %2175 = vmatprep.subr.mxu0 %v630
  %2176 = vmatpush1.msra.mxu0 %v629
  %2177 = vmatprep.subr.mxu0 %v634
  %2178 = vmatpush1.msra.mxu0 %v633
  %2179 = vmatprep.subr.mxu0 %v638
  %2180 = vmatpush1.msra.mxu0 %v637
  %2181 = vmatprep.subr.mxu0 %v642
  %2182 = vmatpush1.msra.mxu0 %v641
  %2183 = vmatprep.subr.mxu0 %v646
  %2184 = vmatpush1.msra.mxu0 %v645
  %2185 = vmatprep.subr.mxu0 %v650
  %2186 = vmatpush1.msra.mxu0 %v649
  %2187 = vmatprep.subr.mxu0 %v654
  %2188 = vmatpush1.msra.mxu0 %v653
  %2189 = vmatprep.subr.mxu0 %v658
  %2190 = vmatpush1.msra.mxu0 %v657
  %2191 = vmatprep.subr.mxu0 %v662
  %2192 = vmatpush1.msra.mxu0 %v661
  %2193 = vmatprep.subr.mxu0 %v666
  %2194 = vmatpush1.msra.mxu0 %v665
  %2195 = vmatprep.subr.mxu0 %v670
  %2196 = vmatpush1.msra.mxu0 %v669
  %2197 = vmatprep.subr.mxu0 %v674
  %2198 = vmatpush1.msra.mxu0 %v673
  %2199 = vmatprep.subr.mxu0 %v678
  %2200 = vmatpush1.msra.mxu0 %v677
  %2201 = vmatprep.subr.mxu0 %v682
  %2202 = vmatpush1.msra.mxu0 %v681
  %2203 = vmatprep.subr.mxu0 0.0
  %2204 = vmatpush1.msra.mxu0 0.0
  %2205 = vmatprep.subr.mxu0 0.0
  %2206 = vmatpush1.msra.mxu0 0.0
  %2207 = vmatprep.subr.mxu0 0.0
  %2208 = vmatpush1.msra.mxu0 0.0
  %2209 = vmatprep.subr.mxu0 0.0
  %2210 = vmatpush1.msra.mxu0 0.0
  %2211 = vmatprep.subr.mxu0 0.0
  %2212 = vmatpush1.msra.mxu0 0.0
  %2213 = vmatprep.subr.mxu0 0.0
  %2214 = vmatpush1.msra.mxu0 0.0
  %2215 = vmatprep.subr.mxu0 0.0
  %2216 = vmatpush1.msra.mxu0 0.0
  %2217 = vmatprep.subr.mxu0 0.0
  %2218 = vmatpush1.msra.mxu0 0.0
  %2219 = vmatprep.subr.mxu0 0.0
  %2220 = vmatpush1.msra.mxu0 0.0
  %2221 = vmatprep.subr.mxu0 0.0
  %2222 = vmatpush1.msra.mxu0 0.0
  %2223 = vmatprep.subr.mxu0 0.0
  %2224 = vmatpush1.msra.mxu0 0.0
  %2225 = vmatprep.subr.mxu0 0.0
  %2226 = vmatpush1.msra.mxu0 0.0
  %2227 = vmatprep.subr.mxu0 0.0
  %2228 = vmatpush1.msra.mxu0 0.0
  %2229 = vmatprep.subr.mxu0 0.0
  %2230 = vmatpush1.msra.mxu0 0.0
  %2231 = vmatprep.subr.mxu0 0.0
  %2232 = vmatpush1.msra.mxu0 0.0
  %2233 = vmatprep.subr.mxu0 0.0
  %2234 = vmatpush1.msra.mxu0 0.0
  %2235 = vmatprep.mubr.f32.mxu0 0.0
  %2236 = vmatmul.mubr.f32.gmra.mrb[0].mxu0 %v2170
  %v2237 = vpop.f32.mrb[0].mxu0
  %v2238 = vadd.f32 %v372, %v2237
  %v2239 = vpop.f32.mrb[0].mxu0
  %v2240 = vadd.f32 %v376, %v2239
  %2241 = vdwg.mxu0
  %2242 = vmatprep.subr.mxu0 %v624
  %2243 = vmatpush1.msra.mxu0 %v623
  %2244 = vmatprep.subr.mxu0 %v628
  %2245 = vmatpush1.msra.mxu0 %v627
  %2246 = vmatprep.subr.mxu0 %v632
  %2247 = vmatpush1.msra.mxu0 %v631
  %2248 = vmatprep.subr.mxu0 %v636
  %2249 = vmatpush1.msra.mxu0 %v635
  %2250 = vmatprep.subr.mxu0 %v640
  %2251 = vmatpush1.msra.mxu0 %v639
  %2252 = vmatprep.subr.mxu0 %v644
  %2253 = vmatpush1.msra.mxu0 %v643
  %2254 = vmatprep.subr.mxu0 %v648
  %2255 = vmatpush1.msra.mxu0 %v647
  %2256 = vmatprep.subr.mxu0 %v652
  %2257 = vmatpush1.msra.mxu0 %v651
  %2258 = vmatprep.subr.mxu0 %v656
  %2259 = vmatpush1.msra.mxu0 %v655
  %2260 = vmatprep.subr.mxu0 %v660
  %2261 = vmatpush1.msra.mxu0 %v659
  %2262 = vmatprep.subr.mxu0 %v664
  %2263 = vmatpush1.msra.mxu0 %v663
  %2264 = vmatprep.subr.mxu0 %v668
  %2265 = vmatpush1.msra.mxu0 %v667
  %2266 = vmatprep.subr.mxu0 %v672
  %2267 = vmatpush1.msra.mxu0 %v671
  %2268 = vmatprep.subr.mxu0 %v676
  %2269 = vmatpush1.msra.mxu0 %v675
  %2270 = vmatprep.subr.mxu0 %v680
  %2271 = vmatpush1.msra.mxu0 %v679
  %2272 = vmatprep.subr.mxu0 %v684
  %2273 = vmatpush1.msra.mxu0 %v683
  %2274 = vmatprep.subr.mxu0 0.0
  %2275 = vmatpush1.msra.mxu0 0.0
  %2276 = vmatprep.subr.mxu0 0.0
  %2277 = vmatpush1.msra.mxu0 0.0
  %2278 = vmatprep.subr.mxu0 0.0
  %2279 = vmatpush1.msra.mxu0 0.0
  %2280 = vmatprep.subr.mxu0 0.0
  %2281 = vmatpush1.msra.mxu0 0.0
  %2282 = vmatprep.subr.mxu0 0.0
  %2283 = vmatpush1.msra.mxu0 0.0
  %2284 = vmatprep.subr.mxu0 0.0
  %2285 = vmatpush1.msra.mxu0 0.0
  %2286 = vmatprep.subr.mxu0 0.0
  %2287 = vmatpush1.msra.mxu0 0.0
  %2288 = vmatprep.subr.mxu0 0.0
  %2289 = vmatpush1.msra.mxu0 0.0
  %2290 = vmatprep.subr.mxu0 0.0
  %2291 = vmatpush1.msra.mxu0 0.0
  %2292 = vmatprep.subr.mxu0 0.0
  %2293 = vmatpush1.msra.mxu0 0.0
  %2294 = vmatprep.subr.mxu0 0.0
  %2295 = vmatpush1.msra.mxu0 0.0
  %2296 = vmatprep.subr.mxu0 0.0
  %2297 = vmatpush1.msra.mxu0 0.0
  %2298 = vmatprep.subr.mxu0 0.0
  %2299 = vmatpush1.msra.mxu0 0.0
  %2300 = vmatprep.subr.mxu0 0.0
  %2301 = vmatpush1.msra.mxu0 0.0
  %2302 = vmatprep.subr.mxu0 0.0
  %2303 = vmatpush1.msra.mxu0 0.0
  %2304 = vmatprep.subr.mxu0 0.0
  %2305 = vmatpush1.msra.mxu0 0.0
  %2306 = vmatprep.mubr.f32.mxu0 0.0
  %2307 = vmatmul.mubr.f32.gmra.mrb[0].mxu0 %v2170
  %v2308 = vpop.f32.mrb[0].mxu0
  %v2309 = vadd.f32 %v380, %v2308
  %v2310 = vpop.f32.mrb[0].mxu0
  %v2311 = vadd.f32 %v384, %v2310
  %2312 = vdwg.mxu0
  %2313 = vmatprep.subr.mxu0 %v828
  %2314 = vmatpush1.msra.mxu0 %v827
  %2315 = vmatprep.subr.mxu0 %v832
  %2316 = vmatpush1.msra.mxu0 %v831
  %2317 = vmatprep.subr.mxu0 %v836
  %2318 = vmatpush1.msra.mxu0 %v835
  %2319 = vmatprep.subr.mxu0 %v840
  %2320 = vmatpush1.msra.mxu0 %v839
  %2321 = vmatprep.subr.mxu0 %v844
  %2322 = vmatpush1.msra.mxu0 %v843
  %2323 = vmatprep.subr.mxu0 %v848
  %2324 = vmatpush1.msra.mxu0 %v847
  %2325 = vmatprep.subr.mxu0 %v852
  %2326 = vmatpush1.msra.mxu0 %v851
  %2327 = vmatprep.subr.mxu0 %v856
  %2328 = vmatpush1.msra.mxu0 %v855
  %2329 = vmatprep.subr.mxu0 %v860
  %2330 = vmatpush1.msra.mxu0 %v859
  %2331 = vmatprep.subr.mxu0 %v864
  %2332 = vmatpush1.msra.mxu0 %v863
  %2333 = vmatprep.subr.mxu0 %v868
  %2334 = vmatpush1.msra.mxu0 %v867
  %2335 = vmatprep.subr.mxu0 %v872
  %2336 = vmatpush1.msra.mxu0 %v871
  %2337 = vmatprep.subr.mxu0 %v876
  %2338 = vmatpush1.msra.mxu0 %v875
  %2339 = vmatprep.subr.mxu0 %v880
  %2340 = vmatpush1.msra.mxu0 %v879
  %2341 = vmatprep.subr.mxu0 %v884
  %2342 = vmatpush1.msra.mxu0 %v883
  %2343 = vmatprep.subr.mxu0 %v888
  %2344 = vmatpush1.msra.mxu0 %v887
  %2345 = vmatprep.subr.mxu0 0.0
  %2346 = vmatpush1.msra.mxu0 0.0
  %2347 = vmatprep.subr.mxu0 0.0
  %2348 = vmatpush1.msra.mxu0 0.0
  %2349 = vmatprep.subr.mxu0 0.0
  %2350 = vmatpush1.msra.mxu0 0.0
  %2351 = vmatprep.subr.mxu0 0.0
  %2352 = vmatpush1.msra.mxu0 0.0
  %2353 = vmatprep.subr.mxu0 0.0
  %2354 = vmatpush1.msra.mxu0 0.0
  %2355 = vmatprep.subr.mxu0 0.0
  %2356 = vmatpush1.msra.mxu0 0.0
  %2357 = vmatprep.subr.mxu0 0.0
  %2358 = vmatpush1.msra.mxu0 0.0
  %2359 = vmatprep.subr.mxu0 0.0
  %2360 = vmatpush1.msra.mxu0 0.0
  %2361 = vmatprep.subr.mxu0 0.0
  %2362 = vmatpush1.msra.mxu0 0.0
  %2363 = vmatprep.subr.mxu0 0.0
  %2364 = vmatpush1.msra.mxu0 0.0
  %2365 = vmatprep.subr.mxu0 0.0
  %2366 = vmatpush1.msra.mxu0 0.0
  %2367 = vmatprep.subr.mxu0 0.0
  %2368 = vmatpush1.msra.mxu0 0.0
  %2369 = vmatprep.subr.mxu0 0.0
  %2370 = vmatpush1.msra.mxu0 0.0
  %2371 = vmatprep.subr.mxu0 0.0
  %2372 = vmatpush1.msra.mxu0 0.0
  %2373 = vmatprep.subr.mxu0 0.0
  %2374 = vmatpush1.msra.mxu0 0.0
  %2375 = vmatprep.subr.mxu0 0.0
  %2376 = vmatpush1.msra.mxu0 0.0
  %2377 = vmatprep.mubr.f32.mxu0 0.0
  %2378 = vmatmul.mubr.f32.gmra.mrb[0].mxu0 %v2002
  %v2379 = vpop.f32.mrb[0].mxu0
  %v2380 = vadd.f32 0.0, %v2379
  %v2381 = vpop.f32.mrb[0].mxu0
  %v2382 = vadd.f32 0.0, %v2381
  %2383 = vdwg.mxu0
  %2384 = vmatprep.subr.mxu0 %v830
  %2385 = vmatpush1.msra.mxu0 %v829
  %2386 = vmatprep.subr.mxu0 %v834
  %2387 = vmatpush1.msra.mxu0 %v833
  %2388 = vmatprep.subr.mxu0 %v838
  %2389 = vmatpush1.msra.mxu0 %v837
  %2390 = vmatprep.subr.mxu0 %v842
  %2391 = vmatpush1.msra.mxu0 %v841
  %2392 = vmatprep.subr.mxu0 %v846
  %2393 = vmatpush1.msra.mxu0 %v845
  %2394 = vmatprep.subr.mxu0 %v850
  %2395 = vmatpush1.msra.mxu0 %v849
  %2396 = vmatprep.subr.mxu0 %v854
  %2397 = vmatpush1.msra.mxu0 %v853
  %2398 = vmatprep.subr.mxu0 %v858
  %2399 = vmatpush1.msra.mxu0 %v857
  %2400 = vmatprep.subr.mxu0 %v862
  %2401 = vmatpush1.msra.mxu0 %v861
  %2402 = vmatprep.subr.mxu0 %v866
  %2403 = vmatpush1.msra.mxu0 %v865
  %2404 = vmatprep.subr.mxu0 %v870
  %2405 = vmatpush1.msra.mxu0 %v869
  %2406 = vmatprep.subr.mxu0 %v874
  %2407 = vmatpush1.msra.mxu0 %v873
  %2408 = vmatprep.subr.mxu0 %v878
  %2409 = vmatpush1.msra.mxu0 %v877
  %2410 = vmatprep.subr.mxu0 %v882
  %2411 = vmatpush1.msra.mxu0 %v881
  %2412 = vmatprep.subr.mxu0 %v886
  %2413 = vmatpush1.msra.mxu0 %v885
  %2414 = vmatprep.subr.mxu0 %v890
  %2415 = vmatpush1.msra.mxu0 %v889
  %2416 = vmatprep.subr.mxu0 0.0
  %2417 = vmatpush1.msra.mxu0 0.0
  %2418 = vmatprep.subr.mxu0 0.0
  %2419 = vmatpush1.msra.mxu0 0.0
  %2420 = vmatprep.subr.mxu0 0.0
  %2421 = vmatpush1.msra.mxu0 0.0
  %2422 = vmatprep.subr.mxu0 0.0
  %2423 = vmatpush1.msra.mxu0 0.0
  %2424 = vmatprep.subr.mxu0 0.0
  %2425 = vmatpush1.msra.mxu0 0.0
  %2426 = vmatprep.subr.mxu0 0.0
  %2427 = vmatpush1.msra.mxu0 0.0
  %2428 = vmatprep.subr.mxu0 0.0
  %2429 = vmatpush1.msra.mxu0 0.0
  %2430 = vmatprep.subr.mxu0 0.0
  %2431 = vmatpush1.msra.mxu0 0.0
  %2432 = vmatprep.subr.mxu0 0.0
  %2433 = vmatpush1.msra.mxu0 0.0
  %2434 = vmatprep.subr.mxu0 0.0
  %2435 = vmatpush1.msra.mxu0 0.0
  %2436 = vmatprep.subr.mxu0 0.0
  %2437 = vmatpush1.msra.mxu0 0.0
  %2438 = vmatprep.subr.mxu0 0.0
  %2439 = vmatpush1.msra.mxu0 0.0
  %2440 = vmatprep.subr.mxu0 0.0
  %2441 = vmatpush1.msra.mxu0 0.0
  %2442 = vmatprep.subr.mxu0 0.0
  %2443 = vmatpush1.msra.mxu0 0.0
  %2444 = vmatprep.subr.mxu0 0.0
  %2445 = vmatpush1.msra.mxu0 0.0
  %2446 = vmatprep.subr.mxu0 0.0
  %2447 = vmatpush1.msra.mxu0 0.0
  %2448 = vmatprep.mubr.f32.mxu0 0.0
  %2449 = vmatmul.mubr.f32.gmra.mrb[0].mxu0 %v2002
  %v2450 = vpop.f32.mrb[0].mxu0
  %v2451 = vadd.f32 0.0, %v2450
  %v2452 = vpop.f32.mrb[0].mxu0
  %v2453 = vadd.f32 0.0, %v2452
  %2454 = vdwg.mxu0
  %v2455 = vadd.f32 %v2238, %v2380
  %v2456 = vadd.f32 %v2240, %v2382
  %v2457 = vadd.f32 %v2309, %v2451
  %v2458 = vadd.f32 %v2311, %v2453
  %v2459 = vmul.f32 %v2455, 0.5
  %v2460 = vtanh.pop %v2459
  %v2461 = vmul.f32 %v2460, 0.5
  %v2462 = vadd.f32 %v2461, 0.5
  %v2463 = vmul.f32 %v2456, 0.5
  %v2464 = vtanh.pop %v2463
  %v2465 = vmul.f32 %v2464, 0.5
  %v2466 = vadd.f32 %v2465, 0.5
  %v2467 = vtanh.pop %v2457
  %v2468 = vmul.f32 %v2458, 0.5
  %v2469 = vtanh.pop %v2468
  %v2470 = vmul.f32 %v2469, 0.5
  %v2471 = vadd.f32 %v2470, 0.5
  %v2472 = vmul.f32 %v2466, %v2000
  %v2473 = vmul.f32 %v2462, %v2467
  %v2474 = vadd.f32 %v2472, %v2473
  %v2475 = vtanh.pop %v2474
  %v2476 = vmul.f32 %v2471, %v2475
  %v2477 = vld [vmem:[#allocation2 + $0x80] sm:$0xff]
  %v2478 = vld [vmem:[#allocation2 + $0x88] sm:$0xff]
  %v2479 = vld [vmem:[#allocation2 + $0x90] sm:$0xff]
  %v2480 = vld [vmem:[#allocation2 + $0x98] sm:$0xff]
  %2481 = vmatprep.subr.mxu0 %v394
  %2482 = vmatpush1.msra.mxu0 %v393
  %2483 = vmatprep.subr.mxu0 %v398
  %2484 = vmatpush1.msra.mxu0 %v397
  %2485 = vmatprep.subr.mxu0 %v402
  %2486 = vmatpush1.msra.mxu0 %v401
  %2487 = vmatprep.subr.mxu0 %v406
  %2488 = vmatpush1.msra.mxu0 %v405
  %2489 = vmatprep.subr.mxu0 %v410
  %2490 = vmatpush1.msra.mxu0 %v409
  %2491 = vmatprep.subr.mxu0 %v414
  %2492 = vmatpush1.msra.mxu0 %v413
  %2493 = vmatprep.subr.mxu0 %v418
  %2494 = vmatpush1.msra.mxu0 %v417
  %2495 = vmatprep.subr.mxu0 %v422
  %2496 = vmatpush1.msra.mxu0 %v421
  %2497 = vmatprep.subr.mxu0 %v426
  %2498 = vmatpush1.msra.mxu0 %v425
  %2499 = vmatprep.subr.mxu0 %v430
  %2500 = vmatpush1.msra.mxu0 %v429
  %2501 = vmatprep.subr.mxu0 %v434
  %2502 = vmatpush1.msra.mxu0 %v433
  %2503 = vmatprep.subr.mxu0 %v438
  %2504 = vmatpush1.msra.mxu0 %v437
  %2505 = vmatprep.subr.mxu0 %v442
  %2506 = vmatpush1.msra.mxu0 %v441
  %2507 = vmatprep.subr.mxu0 %v446
  %2508 = vmatpush1.msra.mxu0 %v445
  %2509 = vmatprep.subr.mxu0 %v450
  %2510 = vmatpush1.msra.mxu0 %v449
  %2511 = vmatprep.subr.mxu0 %v454
  %2512 = vmatpush1.msra.mxu0 %v453
  %2513 = vmatprep.subr.mxu0 0.0
  %2514 = vmatpush1.msra.mxu0 0.0
  %2515 = vmatprep.subr.mxu0 0.0
  %2516 = vmatpush1.msra.mxu0 0.0
  %2517 = vmatprep.subr.mxu0 0.0
  %2518 = vmatpush1.msra.mxu0 0.0
  %2519 = vmatprep.subr.mxu0 0.0
  %2520 = vmatpush1.msra.mxu0 0.0
  %2521 = vmatprep.subr.mxu0 0.0
  %2522 = vmatpush1.msra.mxu0 0.0
  %2523 = vmatprep.subr.mxu0 0.0
  %2524 = vmatpush1.msra.mxu0 0.0
  %2525 = vmatprep.subr.mxu0 0.0
  %2526 = vmatpush1.msra.mxu0 0.0
  %2527 = vmatprep.subr.mxu0 0.0
  %2528 = vmatpush1.msra.mxu0 0.0
  %2529 = vmatprep.subr.mxu0 0.0
  %2530 = vmatpush1.msra.mxu0 0.0
  %2531 = vmatprep.subr.mxu0 0.0
  %2532 = vmatpush1.msra.mxu0 0.0
  %2533 = vmatprep.subr.mxu0 0.0
  %2534 = vmatpush1.msra.mxu0 0.0
  %2535 = vmatprep.subr.mxu0 0.0
  %2536 = vmatpush1.msra.mxu0 0.0
  %2537 = vmatprep.subr.mxu0 0.0
  %2538 = vmatpush1.msra.mxu0 0.0
  %2539 = vmatprep.subr.mxu0 0.0
  %2540 = vmatpush1.msra.mxu0 0.0
  %2541 = vmatprep.subr.mxu0 0.0
  %2542 = vmatpush1.msra.mxu0 0.0
  %2543 = vmatprep.subr.mxu0 0.0
  %2544 = vmatpush1.msra.mxu0 0.0
  %2545 = vmatprep.mubr.f32.mxu0 0.0
  %2546 = vmatmul.mubr.f32.gmra.mrb[0].mxu0 %v2170
  %v2547 = vpop.f32.mrb[0].mxu0
  %v2548 = vadd.f32 0.0, %v2547
  %v2549 = vpop.f32.mrb[0].mxu0
  %v2550 = vadd.f32 0.0, %v2549
  %2551 = vdwg.mxu0
  %2552 = vmatprep.subr.mxu0 %v396
  %2553 = vmatpush1.msra.mxu0 %v395
  %2554 = vmatprep.subr.mxu0 %v400
  %2555 = vmatpush1.msra.mxu0 %v399
  %2556 = vmatprep.subr.mxu0 %v404
  %2557 = vmatpush1.msra.mxu0 %v403
  %2558 = vmatprep.subr.mxu0 %v408
  %2559 = vmatpush1.msra.mxu0 %v407
  %2560 = vmatprep.subr.mxu0 %v412
  %2561 = vmatpush1.msra.mxu0 %v411
  %2562 = vmatprep.subr.mxu0 %v416
  %2563 = vmatpush1.msra.mxu0 %v415
  %2564 = vmatprep.subr.mxu0 %v420
  %2565 = vmatpush1.msra.mxu0 %v419
  %2566 = vmatprep.subr.mxu0 %v424
  %2567 = vmatpush1.msra.mxu0 %v423
  %2568 = vmatprep.subr.mxu0 %v428
  %2569 = vmatpush1.msra.mxu0 %v427
  %2570 = vmatprep.subr.mxu0 %v432
  %2571 = vmatpush1.msra.mxu0 %v431
  %2572 = vmatprep.subr.mxu0 %v436
  %2573 = vmatpush1.msra.mxu0 %v435
  %2574 = vmatprep.subr.mxu0 %v440
  %2575 = vmatpush1.msra.mxu0 %v439
  %2576 = vmatprep.subr.mxu0 %v444
  %2577 = vmatpush1.msra.mxu0 %v443
  %2578 = vmatprep.subr.mxu0 %v448
  %2579 = vmatpush1.msra.mxu0 %v447
  %2580 = vmatprep.subr.mxu0 %v452
  %2581 = vmatpush1.msra.mxu0 %v451
  %2582 = vmatprep.subr.mxu0 %v456
  %2583 = vmatpush1.msra.mxu0 %v455
  %2584 = vmatprep.subr.mxu0 0.0
  %2585 = vmatpush1.msra.mxu0 0.0
  %2586 = vmatprep.subr.mxu0 0.0
  %2587 = vmatpush1.msra.mxu0 0.0
  %2588 = vmatprep.subr.mxu0 0.0
  %2589 = vmatpush1.msra.mxu0 0.0
  %2590 = vmatprep.subr.mxu0 0.0
  %2591 = vmatpush1.msra.mxu0 0.0
  %2592 = vmatprep.subr.mxu0 0.0
  %2593 = vmatpush1.msra.mxu0 0.0
  %2594 = vmatprep.subr.mxu0 0.0
  %2595 = vmatpush1.msra.mxu0 0.0
  %2596 = vmatprep.subr.mxu0 0.0
  %2597 = vmatpush1.msra.mxu0 0.0
  %2598 = vmatprep.subr.mxu0 0.0
  %2599 = vmatpush1.msra.mxu0 0.0
  %2600 = vmatprep.subr.mxu0 0.0
  %2601 = vmatpush1.msra.mxu0 0.0
  %2602 = vmatprep.subr.mxu0 0.0
  %2603 = vmatpush1.msra.mxu0 0.0
  %2604 = vmatprep.subr.mxu0 0.0
  %2605 = vmatpush1.msra.mxu0 0.0
  %2606 = vmatprep.subr.mxu0 0.0
  %2607 = vmatpush1.msra.mxu0 0.0
  %2608 = vmatprep.subr.mxu0 0.0
  %2609 = vmatpush1.msra.mxu0 0.0
  %2610 = vmatprep.subr.mxu0 0.0
  %2611 = vmatpush1.msra.mxu0 0.0
  %2612 = vmatprep.subr.mxu0 0.0
  %2613 = vmatpush1.msra.mxu0 0.0
  %2614 = vmatprep.subr.mxu0 0.0
  %2615 = vmatpush1.msra.mxu0 0.0
  %2616 = vmatprep.mubr.f32.mxu0 0.0
  %2617 = vmatmul.mubr.f32.gmra.mrb[0].mxu0 %v2170
  %v2618 = vpop.f32.mrb[0].mxu0
  %v2619 = vadd.f32 0.0, %v2618
  %v2620 = vpop.f32.mrb[0].mxu0
  %v2621 = vadd.f32 0.0, %v2620
  %2622 = vdwg.mxu0
  %v2623 = vadd.f32 %v2477, %v2548
  %v2624 = vadd.f32 %v2478, %v2550
  %v2625 = vadd.f32 %v2479, %v2619
  %v2626 = vadd.f32 %v2480, %v2621
  %v2627 = vmul.f32 %v2623, 0.5
  %v2628 = vtanh.pop %v2627
  %v2629 = vmul.f32 %v2628, 0.5
  %v2630 = vadd.f32 %v2629, 0.5
  %v2631 = vmul.f32 %v2624, 0.5
  %v2632 = vtanh.pop %v2631
  %v2633 = vmul.f32 %v2632, 0.5
  %v2634 = vadd.f32 %v2633, 0.5
  %v2635 = vtanh.pop %v2625
  %v2636 = vmul.f32 %v2626, 0.5
  %v2637 = vtanh.pop %v2636
  %v2638 = vmul.f32 %v2637, 0.5
  %v2639 = vadd.f32 %v2638, 0.5
  %v2640 = vmul.f32 %v2634, %v2168
  %v2641 = vmul.f32 %v2630, %v2635
  %v2642 = vadd.f32 %v2640, %v2641
  %v2643 = vtanh.pop %v2642
  %v2644 = vmul.f32 %v2639, %v2643
  %2645 = vmatprep.subr.mxu0 %v622
  %2646 = vmatpush1.msra.mxu0 %v621
  %2647 = vmatprep.subr.mxu0 %v626
  %2648 = vmatpush1.msra.mxu0 %v625
  %2649 = vmatprep.subr.mxu0 %v630
  %2650 = vmatpush1.msra.mxu0 %v629
  %2651 = vmatprep.subr.mxu0 %v634
  %2652 = vmatpush1.msra.mxu0 %v633
  %2653 = vmatprep.subr.mxu0 %v638
  %2654 = vmatpush1.msra.mxu0 %v637
  %2655 = vmatprep.subr.mxu0 %v642
  %2656 = vmatpush1.msra.mxu0 %v641
  %2657 = vmatprep.subr.mxu0 %v646
  %2658 = vmatpush1.msra.mxu0 %v645
  %2659 = vmatprep.subr.mxu0 %v650
  %2660 = vmatpush1.msra.mxu0 %v649
  %2661 = vmatprep.subr.mxu0 %v654
  %2662 = vmatpush1.msra.mxu0 %v653
  %2663 = vmatprep.subr.mxu0 %v658
  %2664 = vmatpush1.msra.mxu0 %v657
  %2665 = vmatprep.subr.mxu0 %v662
  %2666 = vmatpush1.msra.mxu0 %v661
  %2667 = vmatprep.subr.mxu0 %v666
  %2668 = vmatpush1.msra.mxu0 %v665
  %2669 = vmatprep.subr.mxu0 %v670
  %2670 = vmatpush1.msra.mxu0 %v669
  %2671 = vmatprep.subr.mxu0 %v674
  %2672 = vmatpush1.msra.mxu0 %v673
  %2673 = vmatprep.subr.mxu0 %v678
  %2674 = vmatpush1.msra.mxu0 %v677
  %2675 = vmatprep.subr.mxu0 %v682
  %2676 = vmatpush1.msra.mxu0 %v681
  %2677 = vmatprep.subr.mxu0 0.0
  %2678 = vmatpush1.msra.mxu0 0.0
  %2679 = vmatprep.subr.mxu0 0.0
  %2680 = vmatpush1.msra.mxu0 0.0
  %2681 = vmatprep.subr.mxu0 0.0
  %2682 = vmatpush1.msra.mxu0 0.0
  %2683 = vmatprep.subr.mxu0 0.0
  %2684 = vmatpush1.msra.mxu0 0.0
  %2685 = vmatprep.subr.mxu0 0.0
  %2686 = vmatpush1.msra.mxu0 0.0
  %2687 = vmatprep.subr.mxu0 0.0
  %2688 = vmatpush1.msra.mxu0 0.0
  %2689 = vmatprep.subr.mxu0 0.0
  %2690 = vmatpush1.msra.mxu0 0.0
  %2691 = vmatprep.subr.mxu0 0.0
  %2692 = vmatpush1.msra.mxu0 0.0
  %2693 = vmatprep.subr.mxu0 0.0
  %2694 = vmatpush1.msra.mxu0 0.0
  %2695 = vmatprep.subr.mxu0 0.0
  %2696 = vmatpush1.msra.mxu0 0.0
  %2697 = vmatprep.subr.mxu0 0.0
  %2698 = vmatpush1.msra.mxu0 0.0
  %2699 = vmatprep.subr.mxu0 0.0
  %2700 = vmatpush1.msra.mxu0 0.0
  %2701 = vmatprep.subr.mxu0 0.0
  %2702 = vmatpush1.msra.mxu0 0.0
  %2703 = vmatprep.subr.mxu0 0.0
  %2704 = vmatpush1.msra.mxu0 0.0
  %2705 = vmatprep.subr.mxu0 0.0
  %2706 = vmatpush1.msra.mxu0 0.0
  %2707 = vmatprep.subr.mxu0 0.0
  %2708 = vmatpush1.msra.mxu0 0.0
  %2709 = vmatprep.mubr.f32.mxu0 0.0
  %2710 = vmatmul.mubr.f32.gmra.mrb[0].mxu0 %v2644
  %v2711 = vpop.f32.mrb[0].mxu0
  %v2712 = vadd.f32 %v372, %v2711
  %v2713 = vpop.f32.mrb[0].mxu0
  %v2714 = vadd.f32 %v376, %v2713
  %2715 = vdwg.mxu0
  %2716 = vmatprep.subr.mxu0 %v624
  %2717 = vmatpush1.msra.mxu0 %v623
  %2718 = vmatprep.subr.mxu0 %v628
  %2719 = vmatpush1.msra.mxu0 %v627
  %2720 = vmatprep.subr.mxu0 %v632
  %2721 = vmatpush1.msra.mxu0 %v631
  %2722 = vmatprep.subr.mxu0 %v636
  %2723 = vmatpush1.msra.mxu0 %v635
  %2724 = vmatprep.subr.mxu0 %v640
  %2725 = vmatpush1.msra.mxu0 %v639
  %2726 = vmatprep.subr.mxu0 %v644
  %2727 = vmatpush1.msra.mxu0 %v643
  %2728 = vmatprep.subr.mxu0 %v648
  %2729 = vmatpush1.msra.mxu0 %v647
  %2730 = vmatprep.subr.mxu0 %v652
  %2731 = vmatpush1.msra.mxu0 %v651
  %2732 = vmatprep.subr.mxu0 %v656
  %2733 = vmatpush1.msra.mxu0 %v655
  %2734 = vmatprep.subr.mxu0 %v660
  %2735 = vmatpush1.msra.mxu0 %v659
  %2736 = vmatprep.subr.mxu0 %v664
  %2737 = vmatpush1.msra.mxu0 %v663
  %2738 = vmatprep.subr.mxu0 %v668
  %2739 = vmatpush1.msra.mxu0 %v667
  %2740 = vmatprep.subr.mxu0 %v672
  %2741 = vmatpush1.msra.mxu0 %v671
  %2742 = vmatprep.subr.mxu0 %v676
  %2743 = vmatpush1.msra.mxu0 %v675
  %2744 = vmatprep.subr.mxu0 %v680
  %2745 = vmatpush1.msra.mxu0 %v679
  %2746 = vmatprep.subr.mxu0 %v684
  %2747 = vmatpush1.msra.mxu0 %v683
  %2748 = vmatprep.subr.mxu0 0.0
  %2749 = vmatpush1.msra.mxu0 0.0
  %2750 = vmatprep.subr.mxu0 0.0
  %2751 = vmatpush1.msra.mxu0 0.0
  %2752 = vmatprep.subr.mxu0 0.0
  %2753 = vmatpush1.msra.mxu0 0.0
  %2754 = vmatprep.subr.mxu0 0.0
  %2755 = vmatpush1.msra.mxu0 0.0
  %2756 = vmatprep.subr.mxu0 0.0
  %2757 = vmatpush1.msra.mxu0 0.0
  %2758 = vmatprep.subr.mxu0 0.0
  %2759 = vmatpush1.msra.mxu0 0.0
  %2760 = vmatprep.subr.mxu0 0.0
  %2761 = vmatpush1.msra.mxu0 0.0
  %2762 = vmatprep.subr.mxu0 0.0
  %2763 = vmatpush1.msra.mxu0 0.0
  %2764 = vmatprep.subr.mxu0 0.0
  %2765 = vmatpush1.msra.mxu0 0.0
  %2766 = vmatprep.subr.mxu0 0.0
  %2767 = vmatpush1.msra.mxu0 0.0
  %2768 = vmatprep.subr.mxu0 0.0
  %2769 = vmatpush1.msra.mxu0 0.0
  %2770 = vmatprep.subr.mxu0 0.0
  %2771 = vmatpush1.msra.mxu0 0.0
  %2772 = vmatprep.subr.mxu0 0.0
  %2773 = vmatpush1.msra.mxu0 0.0
  %2774 = vmatprep.subr.mxu0 0.0
  %2775 = vmatpush1.msra.mxu0 0.0
  %2776 = vmatprep.subr.mxu0 0.0
  %2777 = vmatpush1.msra.mxu0 0.0
  %2778 = vmatprep.subr.mxu0 0.0
  %2779 = vmatpush1.msra.mxu0 0.0
  %2780 = vmatprep.mubr.f32.mxu0 0.0
  %2781 = vmatmul.mubr.f32.gmra.mrb[0].mxu0 %v2644
  %v2782 = vpop.f32.mrb[0].mxu0
  %v2783 = vadd.f32 %v380, %v2782
  %v2784 = vpop.f32.mrb[0].mxu0
  %v2785 = vadd.f32 %v384, %v2784
  %2786 = vdwg.mxu0
  %2787 = vmatprep.subr.mxu0 %v828
  %2788 = vmatpush1.msra.mxu0 %v827
  %2789 = vmatprep.subr.mxu0 %v832
  %2790 = vmatpush1.msra.mxu0 %v831
  %2791 = vmatprep.subr.mxu0 %v836
  %2792 = vmatpush1.msra.mxu0 %v835
  %2793 = vmatprep.subr.mxu0 %v840
  %2794 = vmatpush1.msra.mxu0 %v839
  %2795 = vmatprep.subr.mxu0 %v844
  %2796 = vmatpush1.msra.mxu0 %v843
  %2797 = vmatprep.subr.mxu0 %v848
  %2798 = vmatpush1.msra.mxu0 %v847
  %2799 = vmatprep.subr.mxu0 %v852
  %2800 = vmatpush1.msra.mxu0 %v851
  %2801 = vmatprep.subr.mxu0 %v856
  %2802 = vmatpush1.msra.mxu0 %v855
  %2803 = vmatprep.subr.mxu0 %v860
  %2804 = vmatpush1.msra.mxu0 %v859
  %2805 = vmatprep.subr.mxu0 %v864
  %2806 = vmatpush1.msra.mxu0 %v863
  %2807 = vmatprep.subr.mxu0 %v868
  %2808 = vmatpush1.msra.mxu0 %v867
  %2809 = vmatprep.subr.mxu0 %v872
  %2810 = vmatpush1.msra.mxu0 %v871
  %2811 = vmatprep.subr.mxu0 %v876
  %2812 = vmatpush1.msra.mxu0 %v875
  %2813 = vmatprep.subr.mxu0 %v880
  %2814 = vmatpush1.msra.mxu0 %v879
  %2815 = vmatprep.subr.mxu0 %v884
  %2816 = vmatpush1.msra.mxu0 %v883
  %2817 = vmatprep.subr.mxu0 %v888
  %2818 = vmatpush1.msra.mxu0 %v887
  %2819 = vmatprep.subr.mxu0 0.0
  %2820 = vmatpush1.msra.mxu0 0.0
  %2821 = vmatprep.subr.mxu0 0.0
  %2822 = vmatpush1.msra.mxu0 0.0
  %2823 = vmatprep.subr.mxu0 0.0
  %2824 = vmatpush1.msra.mxu0 0.0
  %2825 = vmatprep.subr.mxu0 0.0
  %2826 = vmatpush1.msra.mxu0 0.0
  %2827 = vmatprep.subr.mxu0 0.0
  %2828 = vmatpush1.msra.mxu0 0.0
  %2829 = vmatprep.subr.mxu0 0.0
  %2830 = vmatpush1.msra.mxu0 0.0
  %2831 = vmatprep.subr.mxu0 0.0
  %2832 = vmatpush1.msra.mxu0 0.0
  %2833 = vmatprep.subr.mxu0 0.0
  %2834 = vmatpush1.msra.mxu0 0.0
  %2835 = vmatprep.subr.mxu0 0.0
  %2836 = vmatpush1.msra.mxu0 0.0
  %2837 = vmatprep.subr.mxu0 0.0
  %2838 = vmatpush1.msra.mxu0 0.0
  %2839 = vmatprep.subr.mxu0 0.0
  %2840 = vmatpush1.msra.mxu0 0.0
  %2841 = vmatprep.subr.mxu0 0.0
  %2842 = vmatpush1.msra.mxu0 0.0
  %2843 = vmatprep.subr.mxu0 0.0
  %2844 = vmatpush1.msra.mxu0 0.0
  %2845 = vmatprep.subr.mxu0 0.0
  %2846 = vmatpush1.msra.mxu0 0.0
  %2847 = vmatprep.subr.mxu0 0.0
  %2848 = vmatpush1.msra.mxu0 0.0
  %2849 = vmatprep.subr.mxu0 0.0
  %2850 = vmatpush1.msra.mxu0 0.0
  %2851 = vmatprep.mubr.f32.mxu0 0.0
  %2852 = vmatmul.mubr.f32.gmra.mrb[0].mxu0 %v2476
  %v2853 = vpop.f32.mrb[0].mxu0
  %v2854 = vadd.f32 0.0, %v2853
  %v2855 = vpop.f32.mrb[0].mxu0
  %v2856 = vadd.f32 0.0, %v2855
  %2857 = vdwg.mxu0
  %2858 = vmatprep.subr.mxu0 %v830
  %2859 = vmatpush1.msra.mxu0 %v829
  %2860 = vmatprep.subr.mxu0 %v834
  %2861 = vmatpush1.msra.mxu0 %v833
  %2862 = vmatprep.subr.mxu0 %v838
  %2863 = vmatpush1.msra.mxu0 %v837
  %2864 = vmatprep.subr.mxu0 %v842
  %2865 = vmatpush1.msra.mxu0 %v841
  %2866 = vmatprep.subr.mxu0 %v846
  %2867 = vmatpush1.msra.mxu0 %v845
  %2868 = vmatprep.subr.mxu0 %v850
  %2869 = vmatpush1.msra.mxu0 %v849
  %2870 = vmatprep.subr.mxu0 %v854
  %2871 = vmatpush1.msra.mxu0 %v853
  %2872 = vmatprep.subr.mxu0 %v858
  %2873 = vmatpush1.msra.mxu0 %v857
  %2874 = vmatprep.subr.mxu0 %v862
  %2875 = vmatpush1.msra.mxu0 %v861
  %2876 = vmatprep.subr.mxu0 %v866
  %2877 = vmatpush1.msra.mxu0 %v865
  %2878 = vmatprep.subr.mxu0 %v870
  %2879 = vmatpush1.msra.mxu0 %v869
  %2880 = vmatprep.subr.mxu0 %v874
  %2881 = vmatpush1.msra.mxu0 %v873
  %2882 = vmatprep.subr.mxu0 %v878
  %2883 = vmatpush1.msra.mxu0 %v877
  %2884 = vmatprep.subr.mxu0 %v882
  %2885 = vmatpush1.msra.mxu0 %v881
  %2886 = vmatprep.subr.mxu0 %v886
  %2887 = vmatpush1.msra.mxu0 %v885
  %2888 = vmatprep.subr.mxu0 %v890
  %2889 = vmatpush1.msra.mxu0 %v889
  %2890 = vmatprep.subr.mxu0 0.0
  %2891 = vmatpush1.msra.mxu0 0.0
  %2892 = vmatprep.subr.mxu0 0.0
  %2893 = vmatpush1.msra.mxu0 0.0
  %2894 = vmatprep.subr.mxu0 0.0
  %2895 = vmatpush1.msra.mxu0 0.0
  %2896 = vmatprep.subr.mxu0 0.0
  %2897 = vmatpush1.msra.mxu0 0.0
  %2898 = vmatprep.subr.mxu0 0.0
  %2899 = vmatpush1.msra.mxu0 0.0
  %2900 = vmatprep.subr.mxu0 0.0
  %2901 = vmatpush1.msra.mxu0 0.0
  %2902 = vmatprep.subr.mxu0 0.0
  %2903 = vmatpush1.msra.mxu0 0.0
  %2904 = vmatprep.subr.mxu0 0.0
  %2905 = vmatpush1.msra.mxu0 0.0
  %2906 = vmatprep.subr.mxu0 0.0
  %2907 = vmatpush1.msra.mxu0 0.0
  %2908 = vmatprep.subr.mxu0 0.0
  %2909 = vmatpush1.msra.mxu0 0.0
  %2910 = vmatprep.subr.mxu0 0.0
  %2911 = vmatpush1.msra.mxu0 0.0
  %2912 = vmatprep.subr.mxu0 0.0
  %2913 = vmatpush1.msra.mxu0 0.0
  %2914 = vmatprep.subr.mxu0 0.0
  %2915 = vmatpush1.msra.mxu0 0.0
  %2916 = vmatprep.subr.mxu0 0.0
  %2917 = vmatpush1.msra.mxu0 0.0
  %2918 = vmatprep.subr.mxu0 0.0
  %2919 = vmatpush1.msra.mxu0 0.0
  %2920 = vmatprep.subr.mxu0 0.0
  %2921 = vmatpush1.msra.mxu0 0.0
  %2922 = vmatprep.mubr.f32.mxu0 0.0
  %2923 = vmatmul.mubr.f32.gmra.mrb[0].mxu0 %v2476
  %v2924 = vpop.f32.mrb[0].mxu0
  %v2925 = vadd.f32 0.0, %v2924
  %v2926 = vpop.f32.mrb[0].mxu0
  %v2927 = vadd.f32 0.0, %v2926
  %2928 = vdwg.mxu0
  %v2929 = vadd.f32 %v2712, %v2854
  %v2930 = vadd.f32 %v2714, %v2856
  %v2931 = vadd.f32 %v2783, %v2925
  %v2932 = vadd.f32 %v2785, %v2927
  %v2933 = vmul.f32 %v2929, 0.5
  %v2934 = vtanh.pop %v2933
  %v2935 = vmul.f32 %v2934, 0.5
  %v2936 = vadd.f32 %v2935, 0.5
  %v2937 = vmul.f32 %v2930, 0.5
  %v2938 = vtanh.pop %v2937
  %v2939 = vmul.f32 %v2938, 0.5
  %v2940 = vadd.f32 %v2939, 0.5
  %v2941 = vtanh.pop %v2931
  %v2942 = vmul.f32 %v2932, 0.5
  %v2943 = vtanh.pop %v2942
  %v2944 = vmul.f32 %v2943, 0.5
  %v2945 = vadd.f32 %v2944, 0.5
  %v2946 = vmul.f32 %v2940, %v2474
  %v2947 = vmul.f32 %v2936, %v2941
  %v2948 = vadd.f32 %v2946, %v2947
  %v2949 = vtanh.pop %v2948
  %v2950 = vmul.f32 %v2945, %v2949
  %v2951 = vld [vmem:[#allocation2 + $0xa0] sm:$0xff]
  %v2952 = vld [vmem:[#allocation2 + $0xa8] sm:$0xff]
  %v2953 = vld [vmem:[#allocation2 + $0xb0] sm:$0xff]
  %v2954 = vld [vmem:[#allocation2 + $0xb8] sm:$0xff]
  %2955 = vmatprep.subr.mxu0 %v394
  %2956 = vmatpush1.msra.mxu0 %v393
  %2957 = vmatprep.subr.mxu0 %v398
  %2958 = vmatpush1.msra.mxu0 %v397
  %2959 = vmatprep.subr.mxu0 %v402
  %2960 = vmatpush1.msra.mxu0 %v401
  %2961 = vmatprep.subr.mxu0 %v406
  %2962 = vmatpush1.msra.mxu0 %v405
  %2963 = vmatprep.subr.mxu0 %v410
  %2964 = vmatpush1.msra.mxu0 %v409
  %2965 = vmatprep.subr.mxu0 %v414
  %2966 = vmatpush1.msra.mxu0 %v413
  %2967 = vmatprep.subr.mxu0 %v418
  %2968 = vmatpush1.msra.mxu0 %v417
  %2969 = vmatprep.subr.mxu0 %v422
  %2970 = vmatpush1.msra.mxu0 %v421
  %2971 = vmatprep.subr.mxu0 %v426
  %2972 = vmatpush1.msra.mxu0 %v425
  %2973 = vmatprep.subr.mxu0 %v430
  %2974 = vmatpush1.msra.mxu0 %v429
  %2975 = vmatprep.subr.mxu0 %v434
  %2976 = vmatpush1.msra.mxu0 %v433
  %2977 = vmatprep.subr.mxu0 %v438
  %2978 = vmatpush1.msra.mxu0 %v437
  %2979 = vmatprep.subr.mxu0 %v442
  %2980 = vmatpush1.msra.mxu0 %v441
  %2981 = vmatprep.subr.mxu0 %v446
  %2982 = vmatpush1.msra.mxu0 %v445
  %2983 = vmatprep.subr.mxu0 %v450
  %2984 = vmatpush1.msra.mxu0 %v449
  %2985 = vmatprep.subr.mxu0 %v454
  %2986 = vmatpush1.msra.mxu0 %v453
  %2987 = vmatprep.subr.mxu0 0.0
  %2988 = vmatpush1.msra.mxu0 0.0
  %2989 = vmatprep.subr.mxu0 0.0
  %2990 = vmatpush1.msra.mxu0 0.0
  %2991 = vmatprep.subr.mxu0 0.0
  %2992 = vmatpush1.msra.mxu0 0.0
  %2993 = vmatprep.subr.mxu0 0.0
  %2994 = vmatpush1.msra.mxu0 0.0
  %2995 = vmatprep.subr.mxu0 0.0
  %2996 = vmatpush1.msra.mxu0 0.0
  %2997 = vmatprep.subr.mxu0 0.0
  %2998 = vmatpush1.msra.mxu0 0.0
  %2999 = vmatprep.subr.mxu0 0.0
  %3000 = vmatpush1.msra.mxu0 0.0
  %3001 = vmatprep.subr.mxu0 0.0
  %3002 = vmatpush1.msra.mxu0 0.0
  %3003 = vmatprep.subr.mxu0 0.0
  %3004 = vmatpush1.msra.mxu0 0.0
  %3005 = vmatprep.subr.mxu0 0.0
  %3006 = vmatpush1.msra.mxu0 0.0
  %3007 = vmatprep.subr.mxu0 0.0
  %3008 = vmatpush1.msra.mxu0 0.0
  %3009 = vmatprep.subr.mxu0 0.0
  %3010 = vmatpush1.msra.mxu0 0.0
  %3011 = vmatprep.subr.mxu0 0.0
  %3012 = vmatpush1.msra.mxu0 0.0
  %3013 = vmatprep.subr.mxu0 0.0
  %3014 = vmatpush1.msra.mxu0 0.0
  %3015 = vmatprep.subr.mxu0 0.0
  %3016 = vmatpush1.msra.mxu0 0.0
  %3017 = vmatprep.subr.mxu0 0.0
  %3018 = vmatpush1.msra.mxu0 0.0
  %3019 = vmatprep.mubr.f32.mxu0 0.0
  %3020 = vmatmul.mubr.f32.gmra.mrb[0].mxu0 %v2644
  %v3021 = vpop.f32.mrb[0].mxu0
  %v3022 = vadd.f32 0.0, %v3021
  %v3023 = vpop.f32.mrb[0].mxu0
  %v3024 = vadd.f32 0.0, %v3023
  %3025 = vdwg.mxu0
  %3026 = vmatprep.subr.mxu0 %v396
  %3027 = vmatpush1.msra.mxu0 %v395
  %3028 = vmatprep.subr.mxu0 %v400
  %3029 = vmatpush1.msra.mxu0 %v399
  %3030 = vmatprep.subr.mxu0 %v404
  %3031 = vmatpush1.msra.mxu0 %v403
  %3032 = vmatprep.subr.mxu0 %v408
  %3033 = vmatpush1.msra.mxu0 %v407
  %3034 = vmatprep.subr.mxu0 %v412
  %3035 = vmatpush1.msra.mxu0 %v411
  %3036 = vmatprep.subr.mxu0 %v416
  %3037 = vmatpush1.msra.mxu0 %v415
  %3038 = vmatprep.subr.mxu0 %v420
  %3039 = vmatpush1.msra.mxu0 %v419
  %3040 = vmatprep.subr.mxu0 %v424
  %3041 = vmatpush1.msra.mxu0 %v423
  %3042 = vmatprep.subr.mxu0 %v428
  %3043 = vmatpush1.msra.mxu0 %v427
  %3044 = vmatprep.subr.mxu0 %v432
  %3045 = vmatpush1.msra.mxu0 %v431
  %3046 = vmatprep.subr.mxu0 %v436
  %3047 = vmatpush1.msra.mxu0 %v435
  %3048 = vmatprep.subr.mxu0 %v440
  %3049 = vmatpush1.msra.mxu0 %v439
  %3050 = vmatprep.subr.mxu0 %v444
  %3051 = vmatpush1.msra.mxu0 %v443
  %3052 = vmatprep.subr.mxu0 %v448
  %3053 = vmatpush1.msra.mxu0 %v447
  %3054 = vmatprep.subr.mxu0 %v452
  %3055 = vmatpush1.msra.mxu0 %v451
  %3056 = vmatprep.subr.mxu0 %v456
  %3057 = vmatpush1.msra.mxu0 %v455
  %3058 = vmatprep.subr.mxu0 0.0
  %3059 = vmatpush1.msra.mxu0 0.0
  %3060 = vmatprep.subr.mxu0 0.0
  %3061 = vmatpush1.msra.mxu0 0.0
  %3062 = vmatprep.subr.mxu0 0.0
  %3063 = vmatpush1.msra.mxu0 0.0
  %3064 = vmatprep.subr.mxu0 0.0
  %3065 = vmatpush1.msra.mxu0 0.0
  %3066 = vmatprep.subr.mxu0 0.0
  %3067 = vmatpush1.msra.mxu0 0.0
  %3068 = vmatprep.subr.mxu0 0.0
  %3069 = vmatpush1.msra.mxu0 0.0
  %3070 = vmatprep.subr.mxu0 0.0
  %3071 = vmatpush1.msra.mxu0 0.0
  %3072 = vmatprep.subr.mxu0 0.0
  %3073 = vmatpush1.msra.mxu0 0.0
  %3074 = vmatprep.subr.mxu0 0.0
  %3075 = vmatpush1.msra.mxu0 0.0
  %3076 = vmatprep.subr.mxu0 0.0
  %3077 = vmatpush1.msra.mxu0 0.0
  %3078 = vmatprep.subr.mxu0 0.0
  %3079 = vmatpush1.msra.mxu0 0.0
  %3080 = vmatprep.subr.mxu0 0.0
  %3081 = vmatpush1.msra.mxu0 0.0
  %3082 = vmatprep.subr.mxu0 0.0
  %3083 = vmatpush1.msra.mxu0 0.0
  %3084 = vmatprep.subr.mxu0 0.0
  %3085 = vmatpush1.msra.mxu0 0.0
  %3086 = vmatprep.subr.mxu0 0.0
  %3087 = vmatpush1.msra.mxu0 0.0
  %3088 = vmatprep.subr.mxu0 0.0
  %3089 = vmatpush1.msra.mxu0 0.0
  %3090 = vmatprep.mubr.f32.mxu0 0.0
  %3091 = vmatmul.mubr.f32.gmra.mrb[0].mxu0 %v2644
  %v3092 = vpop.f32.mrb[0].mxu0
  %v3093 = vadd.f32 0.0, %v3092
  %v3094 = vpop.f32.mrb[0].mxu0
  %v3095 = vadd.f32 0.0, %v3094
  %3096 = vdwg.mxu0
  %v3097 = vadd.f32 %v2951, %v3022
  %v3098 = vadd.f32 %v2952, %v3024
  %v3099 = vadd.f32 %v2953, %v3093
  %v3100 = vadd.f32 %v2954, %v3095
  %v3101 = vmul.f32 %v3097, 0.5
  %v3102 = vtanh.pop %v3101
  %v3103 = vmul.f32 %v3102, 0.5
  %v3104 = vadd.f32 %v3103, 0.5
  %v3105 = vmul.f32 %v3098, 0.5
  %v3106 = vtanh.pop %v3105
  %v3107 = vmul.f32 %v3106, 0.5
  %v3108 = vadd.f32 %v3107, 0.5
  %v3109 = vtanh.pop %v3099
  %v3110 = vmul.f32 %v3100, 0.5
  %v3111 = vtanh.pop %v3110
  %v3112 = vmul.f32 %v3111, 0.5
  %v3113 = vadd.f32 %v3112, 0.5
  %v3114 = vmul.f32 %v3108, %v2642
  %v3115 = vmul.f32 %v3104, %v3109
  %v3116 = vadd.f32 %v3114, %v3115
  %v3117 = vtanh.pop %v3116
  %v3118 = vmul.f32 %v3113, %v3117
  %3119 = vmatprep.subr.mxu0 %v622
  %3120 = vmatpush1.msra.mxu0 %v621
  %3121 = vmatprep.subr.mxu0 %v626
  %3122 = vmatpush1.msra.mxu0 %v625
  %3123 = vmatprep.subr.mxu0 %v630
  %3124 = vmatpush1.msra.mxu0 %v629
  %3125 = vmatprep.subr.mxu0 %v634
  %3126 = vmatpush1.msra.mxu0 %v633
  %3127 = vmatprep.subr.mxu0 %v638
  %3128 = vmatpush1.msra.mxu0 %v637
  %3129 = vmatprep.subr.mxu0 %v642
  %3130 = vmatpush1.msra.mxu0 %v641
  %3131 = vmatprep.subr.mxu0 %v646
  %3132 = vmatpush1.msra.mxu0 %v645
  %3133 = vmatprep.subr.mxu0 %v650
  %3134 = vmatpush1.msra.mxu0 %v649
  %3135 = vmatprep.subr.mxu0 %v654
  %3136 = vmatpush1.msra.mxu0 %v653
  %3137 = vmatprep.subr.mxu0 %v658
  %3138 = vmatpush1.msra.mxu0 %v657
  %3139 = vmatprep.subr.mxu0 %v662
  %3140 = vmatpush1.msra.mxu0 %v661
  %3141 = vmatprep.subr.mxu0 %v666
  %3142 = vmatpush1.msra.mxu0 %v665
  %3143 = vmatprep.subr.mxu0 %v670
  %3144 = vmatpush1.msra.mxu0 %v669
  %3145 = vmatprep.subr.mxu0 %v674
  %3146 = vmatpush1.msra.mxu0 %v673
  %3147 = vmatprep.subr.mxu0 %v678
  %3148 = vmatpush1.msra.mxu0 %v677
  %3149 = vmatprep.subr.mxu0 %v682
  %3150 = vmatpush1.msra.mxu0 %v681
  %3151 = vmatprep.subr.mxu0 0.0
  %3152 = vmatpush1.msra.mxu0 0.0
  %3153 = vmatprep.subr.mxu0 0.0
  %3154 = vmatpush1.msra.mxu0 0.0
  %3155 = vmatprep.subr.mxu0 0.0
  %3156 = vmatpush1.msra.mxu0 0.0
  %3157 = vmatprep.subr.mxu0 0.0
  %3158 = vmatpush1.msra.mxu0 0.0
  %3159 = vmatprep.subr.mxu0 0.0
  %3160 = vmatpush1.msra.mxu0 0.0
  %3161 = vmatprep.subr.mxu0 0.0
  %3162 = vmatpush1.msra.mxu0 0.0
  %3163 = vmatprep.subr.mxu0 0.0
  %3164 = vmatpush1.msra.mxu0 0.0
  %3165 = vmatprep.subr.mxu0 0.0
  %3166 = vmatpush1.msra.mxu0 0.0
  %3167 = vmatprep.subr.mxu0 0.0
  %3168 = vmatpush1.msra.mxu0 0.0
  %3169 = vmatprep.subr.mxu0 0.0
  %3170 = vmatpush1.msra.mxu0 0.0
  %3171 = vmatprep.subr.mxu0 0.0
  %3172 = vmatpush1.msra.mxu0 0.0
  %3173 = vmatprep.subr.mxu0 0.0
  %3174 = vmatpush1.msra.mxu0 0.0
  %3175 = vmatprep.subr.mxu0 0.0
  %3176 = vmatpush1.msra.mxu0 0.0
  %3177 = vmatprep.subr.mxu0 0.0
  %3178 = vmatpush1.msra.mxu0 0.0
  %3179 = vmatprep.subr.mxu0 0.0
  %3180 = vmatpush1.msra.mxu0 0.0
  %3181 = vmatprep.subr.mxu0 0.0
  %3182 = vmatpush1.msra.mxu0 0.0
  %3183 = vmatprep.mubr.f32.mxu0 0.0
  %3184 = vmatmul.mubr.f32.gmra.mrb[0].mxu0 %v3118
  %v3185 = vpop.f32.mrb[0].mxu0
  %v3186 = vadd.f32 %v372, %v3185
  %v3187 = vpop.f32.mrb[0].mxu0
  %v3188 = vadd.f32 %v376, %v3187
  %3189 = vdwg.mxu0
  %3190 = vmatprep.subr.mxu0 %v624
  %3191 = vmatpush1.msra.mxu0 %v623
  %3192 = vmatprep.subr.mxu0 %v628
  %3193 = vmatpush1.msra.mxu0 %v627
  %3194 = vmatprep.subr.mxu0 %v632
  %3195 = vmatpush1.msra.mxu0 %v631
  %3196 = vmatprep.subr.mxu0 %v636
  %3197 = vmatpush1.msra.mxu0 %v635
  %3198 = vmatprep.subr.mxu0 %v640
  %3199 = vmatpush1.msra.mxu0 %v639
  %3200 = vmatprep.subr.mxu0 %v644
  %3201 = vmatpush1.msra.mxu0 %v643
  %3202 = vmatprep.subr.mxu0 %v648
  %3203 = vmatpush1.msra.mxu0 %v647
  %3204 = vmatprep.subr.mxu0 %v652
  %3205 = vmatpush1.msra.mxu0 %v651
  %3206 = vmatprep.subr.mxu0 %v656
  %3207 = vmatpush1.msra.mxu0 %v655
  %3208 = vmatprep.subr.mxu0 %v660
  %3209 = vmatpush1.msra.mxu0 %v659
  %3210 = vmatprep.subr.mxu0 %v664
  %3211 = vmatpush1.msra.mxu0 %v663
  %3212 = vmatprep.subr.mxu0 %v668
  %3213 = vmatpush1.msra.mxu0 %v667
  %3214 = vmatprep.subr.mxu0 %v672
  %3215 = vmatpush1.msra.mxu0 %v671
  %3216 = vmatprep.subr.mxu0 %v676
  %3217 = vmatpush1.msra.mxu0 %v675
  %3218 = vmatprep.subr.mxu0 %v680
  %3219 = vmatpush1.msra.mxu0 %v679
  %3220 = vmatprep.subr.mxu0 %v684
  %3221 = vmatpush1.msra.mxu0 %v683
  %3222 = vmatprep.subr.mxu0 0.0
  %3223 = vmatpush1.msra.mxu0 0.0
  %3224 = vmatprep.subr.mxu0 0.0
  %3225 = vmatpush1.msra.mxu0 0.0
  %3226 = vmatprep.subr.mxu0 0.0
  %3227 = vmatpush1.msra.mxu0 0.0
  %3228 = vmatprep.subr.mxu0 0.0
  %3229 = vmatpush1.msra.mxu0 0.0
  %3230 = vmatprep.subr.mxu0 0.0
  %3231 = vmatpush1.msra.mxu0 0.0
  %3232 = vmatprep.subr.mxu0 0.0
  %3233 = vmatpush1.msra.mxu0 0.0
  %3234 = vmatprep.subr.mxu0 0.0
  %3235 = vmatpush1.msra.mxu0 0.0
  %3236 = vmatprep.subr.mxu0 0.0
  %3237 = vmatpush1.msra.mxu0 0.0
  %3238 = vmatprep.subr.mxu0 0.0
  %3239 = vmatpush1.msra.mxu0 0.0
  %3240 = vmatprep.subr.mxu0 0.0
  %3241 = vmatpush1.msra.mxu0 0.0
  %3242 = vmatprep.subr.mxu0 0.0
  %3243 = vmatpush1.msra.mxu0 0.0
  %3244 = vmatprep.subr.mxu0 0.0
  %3245 = vmatpush1.msra.mxu0 0.0
  %3246 = vmatprep.subr.mxu0 0.0
  %3247 = vmatpush1.msra.mxu0 0.0
  %3248 = vmatprep.subr.mxu0 0.0
  %3249 = vmatpush1.msra.mxu0 0.0
  %3250 = vmatprep.subr.mxu0 0.0
  %3251 = vmatpush1.msra.mxu0 0.0
  %3252 = vmatprep.subr.mxu0 0.0
  %3253 = vmatpush1.msra.mxu0 0.0
  %3254 = vmatprep.mubr.f32.mxu0 0.0
  %3255 = vmatmul.mubr.f32.gmra.mrb[0].mxu0 %v3118
  %v3256 = vpop.f32.mrb[0].mxu0
  %v3257 = vadd.f32 %v380, %v3256
  %v3258 = vpop.f32.mrb[0].mxu0
  %v3259 = vadd.f32 %v384, %v3258
  %3260 = vdwg.mxu0
  %3261 = vmatprep.subr.mxu0 %v828
  %3262 = vmatpush1.msra.mxu0 %v827
  %3263 = vmatprep.subr.mxu0 %v832
  %3264 = vmatpush1.msra.mxu0 %v831
  %3265 = vmatprep.subr.mxu0 %v836
  %3266 = vmatpush1.msra.mxu0 %v835
  %3267 = vmatprep.subr.mxu0 %v840
  %3268 = vmatpush1.msra.mxu0 %v839
  %3269 = vmatprep.subr.mxu0 %v844
  %3270 = vmatpush1.msra.mxu0 %v843
  %3271 = vmatprep.subr.mxu0 %v848
  %3272 = vmatpush1.msra.mxu0 %v847
  %3273 = vmatprep.subr.mxu0 %v852
  %3274 = vmatpush1.msra.mxu0 %v851
  %3275 = vmatprep.subr.mxu0 %v856
  %3276 = vmatpush1.msra.mxu0 %v855
  %3277 = vmatprep.subr.mxu0 %v860
  %3278 = vmatpush1.msra.mxu0 %v859
  %3279 = vmatprep.subr.mxu0 %v864
  %3280 = vmatpush1.msra.mxu0 %v863
  %3281 = vmatprep.subr.mxu0 %v868
  %3282 = vmatpush1.msra.mxu0 %v867
  %3283 = vmatprep.subr.mxu0 %v872
  %3284 = vmatpush1.msra.mxu0 %v871
  %3285 = vmatprep.subr.mxu0 %v876
  %3286 = vmatpush1.msra.mxu0 %v875
  %3287 = vmatprep.subr.mxu0 %v880
  %3288 = vmatpush1.msra.mxu0 %v879
  %3289 = vmatprep.subr.mxu0 %v884
  %3290 = vmatpush1.msra.mxu0 %v883
  %3291 = vmatprep.subr.mxu0 %v888
  %3292 = vmatpush1.msra.mxu0 %v887
  %3293 = vmatprep.subr.mxu0 0.0
  %3294 = vmatpush1.msra.mxu0 0.0
  %3295 = vmatprep.subr.mxu0 0.0
  %3296 = vmatpush1.msra.mxu0 0.0
  %3297 = vmatprep.subr.mxu0 0.0
  %3298 = vmatpush1.msra.mxu0 0.0
  %3299 = vmatprep.subr.mxu0 0.0
  %3300 = vmatpush1.msra.mxu0 0.0
  %3301 = vmatprep.subr.mxu0 0.0
  %3302 = vmatpush1.msra.mxu0 0.0
  %3303 = vmatprep.subr.mxu0 0.0
  %3304 = vmatpush1.msra.mxu0 0.0
  %3305 = vmatprep.subr.mxu0 0.0
  %3306 = vmatpush1.msra.mxu0 0.0
  %3307 = vmatprep.subr.mxu0 0.0
  %3308 = vmatpush1.msra.mxu0 0.0
  %3309 = vmatprep.subr.mxu0 0.0
  %3310 = vmatpush1.msra.mxu0 0.0
  %3311 = vmatprep.subr.mxu0 0.0
  %3312 = vmatpush1.msra.mxu0 0.0
  %3313 = vmatprep.subr.mxu0 0.0
  %3314 = vmatpush1.msra.mxu0 0.0
  %3315 = vmatprep.subr.mxu0 0.0
  %3316 = vmatpush1.msra.mxu0 0.0
  %3317 = vmatprep.subr.mxu0 0.0
  %3318 = vmatpush1.msra.mxu0 0.0
  %3319 = vmatprep.subr.mxu0 0.0
  %3320 = vmatpush1.msra.mxu0 0.0
  %3321 = vmatprep.subr.mxu0 0.0
  %3322 = vmatpush1.msra.mxu0 0.0
  %3323 = vmatprep.subr.mxu0 0.0
  %3324 = vmatpush1.msra.mxu0 0.0
  %3325 = vmatprep.mubr.f32.mxu0 0.0
  %3326 = vmatmul.mubr.f32.gmra.mrb[0].mxu0 %v2950
  %v3327 = vpop.f32.mrb[0].mxu0
  %v3328 = vadd.f32 0.0, %v3327
  %v3329 = vpop.f32.mrb[0].mxu0
  %v3330 = vadd.f32 0.0, %v3329
  %3331 = vdwg.mxu0
  %3332 = vmatprep.subr.mxu0 %v830
  %3333 = vmatpush1.msra.mxu0 %v829
  %3334 = vmatprep.subr.mxu0 %v834
  %3335 = vmatpush1.msra.mxu0 %v833
  %3336 = vmatprep.subr.mxu0 %v838
  %3337 = vmatpush1.msra.mxu0 %v837
  %3338 = vmatprep.subr.mxu0 %v842
  %3339 = vmatpush1.msra.mxu0 %v841
  %3340 = vmatprep.subr.mxu0 %v846
  %3341 = vmatpush1.msra.mxu0 %v845
  %3342 = vmatprep.subr.mxu0 %v850
  %3343 = vmatpush1.msra.mxu0 %v849
  %3344 = vmatprep.subr.mxu0 %v854
  %3345 = vmatpush1.msra.mxu0 %v853
  %3346 = vmatprep.subr.mxu0 %v858
  %3347 = vmatpush1.msra.mxu0 %v857
  %3348 = vmatprep.subr.mxu0 %v862
  %3349 = vmatpush1.msra.mxu0 %v861
  %3350 = vmatprep.subr.mxu0 %v866
  %3351 = vmatpush1.msra.mxu0 %v865
  %3352 = vmatprep.subr.mxu0 %v870
  %3353 = vmatpush1.msra.mxu0 %v869
  %3354 = vmatprep.subr.mxu0 %v874
  %3355 = vmatpush1.msra.mxu0 %v873
  %3356 = vmatprep.subr.mxu0 %v878
  %3357 = vmatpush1.msra.mxu0 %v877
  %3358 = vmatprep.subr.mxu0 %v882
  %3359 = vmatpush1.msra.mxu0 %v881
  %3360 = vmatprep.subr.mxu0 %v886
  %3361 = vmatpush1.msra.mxu0 %v885
  %3362 = vmatprep.subr.mxu0 %v890
  %3363 = vmatpush1.msra.mxu0 %v889
  %3364 = vmatprep.subr.mxu0 0.0
  %3365 = vmatpush1.msra.mxu0 0.0
  %3366 = vmatprep.subr.mxu0 0.0
  %3367 = vmatpush1.msra.mxu0 0.0
  %3368 = vmatprep.subr.mxu0 0.0
  %3369 = vmatpush1.msra.mxu0 0.0
  %3370 = vmatprep.subr.mxu0 0.0
  %3371 = vmatpush1.msra.mxu0 0.0
  %3372 = vmatprep.subr.mxu0 0.0
  %3373 = vmatpush1.msra.mxu0 0.0
  %3374 = vmatprep.subr.mxu0 0.0
  %3375 = vmatpush1.msra.mxu0 0.0
  %3376 = vmatprep.subr.mxu0 0.0
  %3377 = vmatpush1.msra.mxu0 0.0
  %3378 = vmatprep.subr.mxu0 0.0
  %3379 = vmatpush1.msra.mxu0 0.0
  %3380 = vmatprep.subr.mxu0 0.0
  %3381 = vmatpush1.msra.mxu0 0.0
  %3382 = vmatprep.subr.mxu0 0.0
  %3383 = vmatpush1.msra.mxu0 0.0
  %3384 = vmatprep.subr.mxu0 0.0
  %3385 = vmatpush1.msra.mxu0 0.0
  %3386 = vmatprep.subr.mxu0 0.0
  %3387 = vmatpush1.msra.mxu0 0.0
  %3388 = vmatprep.subr.mxu0 0.0
  %3389 = vmatpush1.msra.mxu0 0.0
  %3390 = vmatprep.subr.mxu0 0.0
  %3391 = vmatpush1.msra.mxu0 0.0
  %3392 = vmatprep.subr.mxu0 0.0
  %3393 = vmatpush1.msra.mxu0 0.0
  %3394 = vmatprep.subr.mxu0 0.0
  %3395 = vmatpush1.msra.mxu0 0.0
  %3396 = vmatprep.mubr.f32.mxu0 0.0
  %3397 = vmatmul.mubr.f32.gmra.mrb[0].mxu0 %v2950
  %v3398 = vpop.f32.mrb[0].mxu0
  %v3399 = vadd.f32 0.0, %v3398
  %v3400 = vpop.f32.mrb[0].mxu0
  %v3401 = vadd.f32 0.0, %v3400
  %3402 = vdwg.mxu0
  %v3403 = vadd.f32 %v3186, %v3328
  %v3404 = vadd.f32 %v3188, %v3330
  %v3405 = vadd.f32 %v3257, %v3399
  %v3406 = vadd.f32 %v3259, %v3401
  %v3407 = vmul.f32 %v3403, 0.5
  %v3408 = vtanh.pop %v3407
  %v3409 = vmul.f32 %v3408, 0.5
  %v3410 = vadd.f32 %v3409, 0.5
  %v3411 = vmul.f32 %v3404, 0.5
  %v3412 = vtanh.pop %v3411
  %v3413 = vmul.f32 %v3412, 0.5
  %v3414 = vadd.f32 %v3413, 0.5
  %v3415 = vtanh.pop %v3405
  %v3416 = vmul.f32 %v3406, 0.5
  %v3417 = vtanh.pop %v3416
  %v3418 = vmul.f32 %v3417, 0.5
  %v3419 = vadd.f32 %v3418, 0.5
  %v3420 = vmul.f32 %v3414, %v2948
  %v3421 = vmul.f32 %v3410, %v3415
  %v3422 = vadd.f32 %v3420, %v3421
  %v3423 = vtanh.pop %v3422
  %v3424 = vmul.f32 %v3419, %v3423
  %v3425 = vld [vmem:[#allocation2 + $0xc0] sm:$0xff]
  %v3426 = vld [vmem:[#allocation2 + $0xc8] sm:$0xff]
  %v3427 = vld [vmem:[#allocation2 + $0xd0] sm:$0xff]
  %v3428 = vld [vmem:[#allocation2 + $0xd8] sm:$0xff]
  %3429 = vmatprep.subr.mxu0 %v394
  %3430 = vmatpush1.msra.mxu0 %v393
  %3431 = vmatprep.subr.mxu0 %v398
  %3432 = vmatpush1.msra.mxu0 %v397
  %3433 = vmatprep.subr.mxu0 %v402
  %3434 = vmatpush1.msra.mxu0 %v401
  %3435 = vmatprep.subr.mxu0 %v406
  %3436 = vmatpush1.msra.mxu0 %v405
  %3437 = vmatprep.subr.mxu0 %v410
  %3438 = vmatpush1.msra.mxu0 %v409
  %3439 = vmatprep.subr.mxu0 %v414
  %3440 = vmatpush1.msra.mxu0 %v413
  %3441 = vmatprep.subr.mxu0 %v418
  %3442 = vmatpush1.msra.mxu0 %v417
  %3443 = vmatprep.subr.mxu0 %v422
  %3444 = vmatpush1.msra.mxu0 %v421
  %3445 = vmatprep.subr.mxu0 %v426
  %3446 = vmatpush1.msra.mxu0 %v425
  %3447 = vmatprep.subr.mxu0 %v430
  %3448 = vmatpush1.msra.mxu0 %v429
  %3449 = vmatprep.subr.mxu0 %v434
  %3450 = vmatpush1.msra.mxu0 %v433
  %3451 = vmatprep.subr.mxu0 %v438
  %3452 = vmatpush1.msra.mxu0 %v437
  %3453 = vmatprep.subr.mxu0 %v442
  %3454 = vmatpush1.msra.mxu0 %v441
  %3455 = vmatprep.subr.mxu0 %v446
  %3456 = vmatpush1.msra.mxu0 %v445
  %3457 = vmatprep.subr.mxu0 %v450
  %3458 = vmatpush1.msra.mxu0 %v449
  %3459 = vmatprep.subr.mxu0 %v454
  %3460 = vmatpush1.msra.mxu0 %v453
  %3461 = vmatprep.subr.mxu0 0.0
  %3462 = vmatpush1.msra.mxu0 0.0
  %3463 = vmatprep.subr.mxu0 0.0
  %3464 = vmatpush1.msra.mxu0 0.0
  %3465 = vmatprep.subr.mxu0 0.0
  %3466 = vmatpush1.msra.mxu0 0.0
  %3467 = vmatprep.subr.mxu0 0.0
  %3468 = vmatpush1.msra.mxu0 0.0
  %3469 = vmatprep.subr.mxu0 0.0
  %3470 = vmatpush1.msra.mxu0 0.0
  %3471 = vmatprep.subr.mxu0 0.0
  %3472 = vmatpush1.msra.mxu0 0.0
  %3473 = vmatprep.subr.mxu0 0.0
  %3474 = vmatpush1.msra.mxu0 0.0
  %3475 = vmatprep.subr.mxu0 0.0
  %3476 = vmatpush1.msra.mxu0 0.0
  %3477 = vmatprep.subr.mxu0 0.0
  %3478 = vmatpush1.msra.mxu0 0.0
  %3479 = vmatprep.subr.mxu0 0.0
  %3480 = vmatpush1.msra.mxu0 0.0
  %3481 = vmatprep.subr.mxu0 0.0
  %3482 = vmatpush1.msra.mxu0 0.0
  %3483 = vmatprep.subr.mxu0 0.0
  %3484 = vmatpush1.msra.mxu0 0.0
  %3485 = vmatprep.subr.mxu0 0.0
  %3486 = vmatpush1.msra.mxu0 0.0
  %3487 = vmatprep.subr.mxu0 0.0
  %3488 = vmatpush1.msra.mxu0 0.0
  %3489 = vmatprep.subr.mxu0 0.0
  %3490 = vmatpush1.msra.mxu0 0.0
  %3491 = vmatprep.subr.mxu0 0.0
  %3492 = vmatpush1.msra.mxu0 0.0
  %3493 = vmatprep.mubr.f32.mxu0 0.0
  %3494 = vmatmul.mubr.f32.gmra.mrb[0].mxu0 %v3118
  %v3495 = vpop.f32.mrb[0].mxu0
  %v3496 = vadd.f32 0.0, %v3495
  %v3497 = vpop.f32.mrb[0].mxu0
  %v3498 = vadd.f32 0.0, %v3497
  %3499 = vdwg.mxu0
  %3500 = vmatprep.subr.mxu0 %v396
  %3501 = vmatpush1.msra.mxu0 %v395
  %3502 = vmatprep.subr.mxu0 %v400
  %3503 = vmatpush1.msra.mxu0 %v399
  %3504 = vmatprep.subr.mxu0 %v404
  %3505 = vmatpush1.msra.mxu0 %v403
  %3506 = vmatprep.subr.mxu0 %v408
  %3507 = vmatpush1.msra.mxu0 %v407
  %3508 = vmatprep.subr.mxu0 %v412
  %3509 = vmatpush1.msra.mxu0 %v411
  %3510 = vmatprep.subr.mxu0 %v416
  %3511 = vmatpush1.msra.mxu0 %v415
  %3512 = vmatprep.subr.mxu0 %v420
  %3513 = vmatpush1.msra.mxu0 %v419
  %3514 = vmatprep.subr.mxu0 %v424
  %3515 = vmatpush1.msra.mxu0 %v423
  %3516 = vmatprep.subr.mxu0 %v428
  %3517 = vmatpush1.msra.mxu0 %v427
  %3518 = vmatprep.subr.mxu0 %v432
  %3519 = vmatpush1.msra.mxu0 %v431
  %3520 = vmatprep.subr.mxu0 %v436
  %3521 = vmatpush1.msra.mxu0 %v435
  %3522 = vmatprep.subr.mxu0 %v440
  %3523 = vmatpush1.msra.mxu0 %v439
  %3524 = vmatprep.subr.mxu0 %v444
  %3525 = vmatpush1.msra.mxu0 %v443
  %3526 = vmatprep.subr.mxu0 %v448
  %3527 = vmatpush1.msra.mxu0 %v447
  %3528 = vmatprep.subr.mxu0 %v452
  %3529 = vmatpush1.msra.mxu0 %v451
  %3530 = vmatprep.subr.mxu0 %v456
  %3531 = vmatpush1.msra.mxu0 %v455
  %3532 = vmatprep.subr.mxu0 0.0
  %3533 = vmatpush1.msra.mxu0 0.0
  %3534 = vmatprep.subr.mxu0 0.0
  %3535 = vmatpush1.msra.mxu0 0.0
  %3536 = vmatprep.subr.mxu0 0.0
  %3537 = vmatpush1.msra.mxu0 0.0
  %3538 = vmatprep.subr.mxu0 0.0
  %3539 = vmatpush1.msra.mxu0 0.0
  %3540 = vmatprep.subr.mxu0 0.0
  %3541 = vmatpush1.msra.mxu0 0.0
  %3542 = vmatprep.subr.mxu0 0.0
  %3543 = vmatpush1.msra.mxu0 0.0
  %3544 = vmatprep.subr.mxu0 0.0
  %3545 = vmatpush1.msra.mxu0 0.0
  %3546 = vmatprep.subr.mxu0 0.0
  %3547 = vmatpush1.msra.mxu0 0.0
  %3548 = vmatprep.subr.mxu0 0.0
  %3549 = vmatpush1.msra.mxu0 0.0
  %3550 = vmatprep.subr.mxu0 0.0
  %3551 = vmatpush1.msra.mxu0 0.0
  %3552 = vmatprep.subr.mxu0 0.0
  %3553 = vmatpush1.msra.mxu0 0.0
  %3554 = vmatprep.subr.mxu0 0.0
  %3555 = vmatpush1.msra.mxu0 0.0
  %3556 = vmatprep.subr.mxu0 0.0
  %3557 = vmatpush1.msra.mxu0 0.0
  %3558 = vmatprep.subr.mxu0 0.0
  %3559 = vmatpush1.msra.mxu0 0.0
  %3560 = vmatprep.subr.mxu0 0.0
  %3561 = vmatpush1.msra.mxu0 0.0
  %3562 = vmatprep.subr.mxu0 0.0
  %3563 = vmatpush1.msra.mxu0 0.0
  %3564 = vmatprep.mubr.f32.mxu0 0.0
  %3565 = vmatmul.mubr.f32.gmra.mrb[0].mxu0 %v3118
  %v3566 = vpop.f32.mrb[0].mxu0
  %v3567 = vadd.f32 0.0, %v3566
  %v3568 = vpop.f32.mrb[0].mxu0
  %v3569 = vadd.f32 0.0, %v3568
  %3570 = vdwg.mxu0
  %v3571 = vadd.f32 %v3425, %v3496
  %v3572 = vadd.f32 %v3426, %v3498
  %v3573 = vadd.f32 %v3427, %v3567
  %v3574 = vadd.f32 %v3428, %v3569
  %v3575 = vmul.f32 %v3571, 0.5
  %v3576 = vtanh.pop %v3575
  %v3577 = vmul.f32 %v3576, 0.5
  %v3578 = vadd.f32 %v3577, 0.5
  %v3579 = vmul.f32 %v3572, 0.5
  %v3580 = vtanh.pop %v3579
  %v3581 = vmul.f32 %v3580, 0.5
  %v3582 = vadd.f32 %v3581, 0.5
  %v3583 = vtanh.pop %v3573
  %v3584 = vmul.f32 %v3574, 0.5
  %v3585 = vtanh.pop %v3584
  %v3586 = vmul.f32 %v3585, 0.5
  %v3587 = vadd.f32 %v3586, 0.5
  %v3588 = vmul.f32 %v3582, %v3116
  %v3589 = vmul.f32 %v3578, %v3583
  %v3590 = vadd.f32 %v3588, %v3589
  %v3591 = vtanh.pop %v3590
  %v3592 = vmul.f32 %v3587, %v3591
  %3593 = vmatprep.subr.mxu0 %v622
  %3594 = vmatpush1.msra.mxu0 %v621
  %3595 = vmatprep.subr.mxu0 %v626
  %3596 = vmatpush1.msra.mxu0 %v625
  %3597 = vmatprep.subr.mxu0 %v630
  %3598 = vmatpush1.msra.mxu0 %v629
  %3599 = vmatprep.subr.mxu0 %v634
  %3600 = vmatpush1.msra.mxu0 %v633
  %3601 = vmatprep.subr.mxu0 %v638
  %3602 = vmatpush1.msra.mxu0 %v637
  %3603 = vmatprep.subr.mxu0 %v642
  %3604 = vmatpush1.msra.mxu0 %v641
  %3605 = vmatprep.subr.mxu0 %v646
  %3606 = vmatpush1.msra.mxu0 %v645
  %3607 = vmatprep.subr.mxu0 %v650
  %3608 = vmatpush1.msra.mxu0 %v649
  %3609 = vmatprep.subr.mxu0 %v654
  %3610 = vmatpush1.msra.mxu0 %v653
  %3611 = vmatprep.subr.mxu0 %v658
  %3612 = vmatpush1.msra.mxu0 %v657
  %3613 = vmatprep.subr.mxu0 %v662
  %3614 = vmatpush1.msra.mxu0 %v661
  %3615 = vmatprep.subr.mxu0 %v666
  %3616 = vmatpush1.msra.mxu0 %v665
  %3617 = vmatprep.subr.mxu0 %v670
  %3618 = vmatpush1.msra.mxu0 %v669
  %3619 = vmatprep.subr.mxu0 %v674
  %3620 = vmatpush1.msra.mxu0 %v673
  %3621 = vmatprep.subr.mxu0 %v678
  %3622 = vmatpush1.msra.mxu0 %v677
  %3623 = vmatprep.subr.mxu0 %v682
  %3624 = vmatpush1.msra.mxu0 %v681
  %3625 = vmatprep.subr.mxu0 0.0
  %3626 = vmatpush1.msra.mxu0 0.0
  %3627 = vmatprep.subr.mxu0 0.0
  %3628 = vmatpush1.msra.mxu0 0.0
  %3629 = vmatprep.subr.mxu0 0.0
  %3630 = vmatpush1.msra.mxu0 0.0
  %3631 = vmatprep.subr.mxu0 0.0
  %3632 = vmatpush1.msra.mxu0 0.0
  %3633 = vmatprep.subr.mxu0 0.0
  %3634 = vmatpush1.msra.mxu0 0.0
  %3635 = vmatprep.subr.mxu0 0.0
  %3636 = vmatpush1.msra.mxu0 0.0
  %3637 = vmatprep.subr.mxu0 0.0
  %3638 = vmatpush1.msra.mxu0 0.0
  %3639 = vmatprep.subr.mxu0 0.0
  %3640 = vmatpush1.msra.mxu0 0.0
  %3641 = vmatprep.subr.mxu0 0.0
  %3642 = vmatpush1.msra.mxu0 0.0
  %3643 = vmatprep.subr.mxu0 0.0
  %3644 = vmatpush1.msra.mxu0 0.0
  %3645 = vmatprep.subr.mxu0 0.0
  %3646 = vmatpush1.msra.mxu0 0.0
  %3647 = vmatprep.subr.mxu0 0.0
  %3648 = vmatpush1.msra.mxu0 0.0
  %3649 = vmatprep.subr.mxu0 0.0
  %3650 = vmatpush1.msra.mxu0 0.0
  %3651 = vmatprep.subr.mxu0 0.0
  %3652 = vmatpush1.msra.mxu0 0.0
  %3653 = vmatprep.subr.mxu0 0.0
  %3654 = vmatpush1.msra.mxu0 0.0
  %3655 = vmatprep.subr.mxu0 0.0
  %3656 = vmatpush1.msra.mxu0 0.0
  %3657 = vmatprep.mubr.f32.mxu0 0.0
  %3658 = vmatmul.mubr.f32.gmra.mrb[0].mxu0 %v3592
  %v3659 = vpop.f32.mrb[0].mxu0
  %v3660 = vadd.f32 %v372, %v3659
  %v3661 = vpop.f32.mrb[0].mxu0
  %v3662 = vadd.f32 %v376, %v3661
  %3663 = vdwg.mxu0
  %3664 = vmatprep.subr.mxu0 %v624
  %3665 = vmatpush1.msra.mxu0 %v623
  %3666 = vmatprep.subr.mxu0 %v628
  %3667 = vmatpush1.msra.mxu0 %v627
  %3668 = vmatprep.subr.mxu0 %v632
  %3669 = vmatpush1.msra.mxu0 %v631
  %3670 = vmatprep.subr.mxu0 %v636
  %3671 = vmatpush1.msra.mxu0 %v635
  %3672 = vmatprep.subr.mxu0 %v640
  %3673 = vmatpush1.msra.mxu0 %v639
  %3674 = vmatprep.subr.mxu0 %v644
  %3675 = vmatpush1.msra.mxu0 %v643
  %3676 = vmatprep.subr.mxu0 %v648
  %3677 = vmatpush1.msra.mxu0 %v647
  %3678 = vmatprep.subr.mxu0 %v652
  %3679 = vmatpush1.msra.mxu0 %v651
  %3680 = vmatprep.subr.mxu0 %v656
  %3681 = vmatpush1.msra.mxu0 %v655
  %3682 = vmatprep.subr.mxu0 %v660
  %3683 = vmatpush1.msra.mxu0 %v659
  %3684 = vmatprep.subr.mxu0 %v664
  %3685 = vmatpush1.msra.mxu0 %v663
  %3686 = vmatprep.subr.mxu0 %v668
  %3687 = vmatpush1.msra.mxu0 %v667
  %3688 = vmatprep.subr.mxu0 %v672
  %3689 = vmatpush1.msra.mxu0 %v671
  %3690 = vmatprep.subr.mxu0 %v676
  %3691 = vmatpush1.msra.mxu0 %v675
  %3692 = vmatprep.subr.mxu0 %v680
  %3693 = vmatpush1.msra.mxu0 %v679
  %3694 = vmatprep.subr.mxu0 %v684
  %3695 = vmatpush1.msra.mxu0 %v683
  %3696 = vmatprep.subr.mxu0 0.0
  %3697 = vmatpush1.msra.mxu0 0.0
  %3698 = vmatprep.subr.mxu0 0.0
  %3699 = vmatpush1.msra.mxu0 0.0
  %3700 = vmatprep.subr.mxu0 0.0
  %3701 = vmatpush1.msra.mxu0 0.0
  %3702 = vmatprep.subr.mxu0 0.0
  %3703 = vmatpush1.msra.mxu0 0.0
  %3704 = vmatprep.subr.mxu0 0.0
  %3705 = vmatpush1.msra.mxu0 0.0
  %3706 = vmatprep.subr.mxu0 0.0
  %3707 = vmatpush1.msra.mxu0 0.0
  %3708 = vmatprep.subr.mxu0 0.0
  %3709 = vmatpush1.msra.mxu0 0.0
  %3710 = vmatprep.subr.mxu0 0.0
  %3711 = vmatpush1.msra.mxu0 0.0
  %3712 = vmatprep.subr.mxu0 0.0
  %3713 = vmatpush1.msra.mxu0 0.0
  %3714 = vmatprep.subr.mxu0 0.0
  %3715 = vmatpush1.msra.mxu0 0.0
  %3716 = vmatprep.subr.mxu0 0.0
  %3717 = vmatpush1.msra.mxu0 0.0
  %3718 = vmatprep.subr.mxu0 0.0
  %3719 = vmatpush1.msra.mxu0 0.0
  %3720 = vmatprep.subr.mxu0 0.0
  %3721 = vmatpush1.msra.mxu0 0.0
  %3722 = vmatprep.subr.mxu0 0.0
  %3723 = vmatpush1.msra.mxu0 0.0
  %3724 = vmatprep.subr.mxu0 0.0
  %3725 = vmatpush1.msra.mxu0 0.0
  %3726 = vmatprep.subr.mxu0 0.0
  %3727 = vmatpush1.msra.mxu0 0.0
  %3728 = vmatprep.mubr.f32.mxu0 0.0
  %3729 = vmatmul.mubr.f32.gmra.mrb[0].mxu0 %v3592
  %v3730 = vpop.f32.mrb[0].mxu0
  %v3731 = vadd.f32 %v380, %v3730
  %v3732 = vpop.f32.mrb[0].mxu0
  %v3733 = vadd.f32 %v384, %v3732
  %3734 = vdwg.mxu0
  %3735 = vmatprep.subr.mxu0 %v828
  %3736 = vmatpush1.msra.mxu0 %v827
  %3737 = vmatprep.subr.mxu0 %v832
  %3738 = vmatpush1.msra.mxu0 %v831
  %3739 = vmatprep.subr.mxu0 %v836
  %3740 = vmatpush1.msra.mxu0 %v835
  %3741 = vmatprep.subr.mxu0 %v840
  %3742 = vmatpush1.msra.mxu0 %v839
  %3743 = vmatprep.subr.mxu0 %v844
  %3744 = vmatpush1.msra.mxu0 %v843
  %3745 = vmatprep.subr.mxu0 %v848
  %3746 = vmatpush1.msra.mxu0 %v847
  %3747 = vmatprep.subr.mxu0 %v852
  %3748 = vmatpush1.msra.mxu0 %v851
  %3749 = vmatprep.subr.mxu0 %v856
  %3750 = vmatpush1.msra.mxu0 %v855
  %3751 = vmatprep.subr.mxu0 %v860
  %3752 = vmatpush1.msra.mxu0 %v859
  %3753 = vmatprep.subr.mxu0 %v864
  %3754 = vmatpush1.msra.mxu0 %v863
  %3755 = vmatprep.subr.mxu0 %v868
  %3756 = vmatpush1.msra.mxu0 %v867
  %3757 = vmatprep.subr.mxu0 %v872
  %3758 = vmatpush1.msra.mxu0 %v871
  %3759 = vmatprep.subr.mxu0 %v876
  %3760 = vmatpush1.msra.mxu0 %v875
  %3761 = vmatprep.subr.mxu0 %v880
  %3762 = vmatpush1.msra.mxu0 %v879
  %3763 = vmatprep.subr.mxu0 %v884
  %3764 = vmatpush1.msra.mxu0 %v883
  %3765 = vmatprep.subr.mxu0 %v888
  %3766 = vmatpush1.msra.mxu0 %v887
  %3767 = vmatprep.subr.mxu0 0.0
  %3768 = vmatpush1.msra.mxu0 0.0
  %3769 = vmatprep.subr.mxu0 0.0
  %3770 = vmatpush1.msra.mxu0 0.0
  %3771 = vmatprep.subr.mxu0 0.0
  %3772 = vmatpush1.msra.mxu0 0.0
  %3773 = vmatprep.subr.mxu0 0.0
  %3774 = vmatpush1.msra.mxu0 0.0
  %3775 = vmatprep.subr.mxu0 0.0
  %3776 = vmatpush1.msra.mxu0 0.0
  %3777 = vmatprep.subr.mxu0 0.0
  %3778 = vmatpush1.msra.mxu0 0.0
  %3779 = vmatprep.subr.mxu0 0.0
  %3780 = vmatpush1.msra.mxu0 0.0
  %3781 = vmatprep.subr.mxu0 0.0
  %3782 = vmatpush1.msra.mxu0 0.0
  %3783 = vmatprep.subr.mxu0 0.0
  %3784 = vmatpush1.msra.mxu0 0.0
  %3785 = vmatprep.subr.mxu0 0.0
  %3786 = vmatpush1.msra.mxu0 0.0
  %3787 = vmatprep.subr.mxu0 0.0
  %3788 = vmatpush1.msra.mxu0 0.0
  %3789 = vmatprep.subr.mxu0 0.0
  %3790 = vmatpush1.msra.mxu0 0.0
  %3791 = vmatprep.subr.mxu0 0.0
  %3792 = vmatpush1.msra.mxu0 0.0
  %3793 = vmatprep.subr.mxu0 0.0
  %3794 = vmatpush1.msra.mxu0 0.0
  %3795 = vmatprep.subr.mxu0 0.0
  %3796 = vmatpush1.msra.mxu0 0.0
  %3797 = vmatprep.subr.mxu0 0.0
  %3798 = vmatpush1.msra.mxu0 0.0
  %3799 = vmatprep.mubr.f32.mxu0 0.0
  %3800 = vmatmul.mubr.f32.gmra.mrb[0].mxu0 %v3424
  %v3801 = vpop.f32.mrb[0].mxu0
  %v3802 = vadd.f32 0.0, %v3801
  %v3803 = vpop.f32.mrb[0].mxu0
  %v3804 = vadd.f32 0.0, %v3803
  %3805 = vdwg.mxu0
  %3806 = vmatprep.subr.mxu0 %v830
  %3807 = vmatpush1.msra.mxu0 %v829
  %3808 = vmatprep.subr.mxu0 %v834
  %3809 = vmatpush1.msra.mxu0 %v833
  %3810 = vmatprep.subr.mxu0 %v838
  %3811 = vmatpush1.msra.mxu0 %v837
  %3812 = vmatprep.subr.mxu0 %v842
  %3813 = vmatpush1.msra.mxu0 %v841
  %3814 = vmatprep.subr.mxu0 %v846
  %3815 = vmatpush1.msra.mxu0 %v845
  %3816 = vmatprep.subr.mxu0 %v850
  %3817 = vmatpush1.msra.mxu0 %v849
  %3818 = vmatprep.subr.mxu0 %v854
  %3819 = vmatpush1.msra.mxu0 %v853
  %3820 = vmatprep.subr.mxu0 %v858
  %3821 = vmatpush1.msra.mxu0 %v857
  %3822 = vmatprep.subr.mxu0 %v862
  %3823 = vmatpush1.msra.mxu0 %v861
  %3824 = vmatprep.subr.mxu0 %v866
  %3825 = vmatpush1.msra.mxu0 %v865
  %3826 = vmatprep.subr.mxu0 %v870
  %3827 = vmatpush1.msra.mxu0 %v869
  %3828 = vmatprep.subr.mxu0 %v874
  %3829 = vmatpush1.msra.mxu0 %v873
  %3830 = vmatprep.subr.mxu0 %v878
  %3831 = vmatpush1.msra.mxu0 %v877
  %3832 = vmatprep.subr.mxu0 %v882
  %3833 = vmatpush1.msra.mxu0 %v881
  %3834 = vmatprep.subr.mxu0 %v886
  %3835 = vmatpush1.msra.mxu0 %v885
  %3836 = vmatprep.subr.mxu0 %v890
  %3837 = vmatpush1.msra.mxu0 %v889
  %3838 = vmatprep.subr.mxu0 0.0
  %3839 = vmatpush1.msra.mxu0 0.0
  %3840 = vmatprep.subr.mxu0 0.0
  %3841 = vmatpush1.msra.mxu0 0.0
  %3842 = vmatprep.subr.mxu0 0.0
  %3843 = vmatpush1.msra.mxu0 0.0
  %3844 = vmatprep.subr.mxu0 0.0
  %3845 = vmatpush1.msra.mxu0 0.0
  %3846 = vmatprep.subr.mxu0 0.0
  %3847 = vmatpush1.msra.mxu0 0.0
  %3848 = vmatprep.subr.mxu0 0.0
  %3849 = vmatpush1.msra.mxu0 0.0
  %3850 = vmatprep.subr.mxu0 0.0
  %3851 = vmatpush1.msra.mxu0 0.0
  %3852 = vmatprep.subr.mxu0 0.0
  %3853 = vmatpush1.msra.mxu0 0.0
  %3854 = vmatprep.subr.mxu0 0.0
  %3855 = vmatpush1.msra.mxu0 0.0
  %3856 = vmatprep.subr.mxu0 0.0
  %3857 = vmatpush1.msra.mxu0 0.0
  %3858 = vmatprep.subr.mxu0 0.0
  %3859 = vmatpush1.msra.mxu0 0.0
  %3860 = vmatprep.subr.mxu0 0.0
  %3861 = vmatpush1.msra.mxu0 0.0
  %3862 = vmatprep.subr.mxu0 0.0
  %3863 = vmatpush1.msra.mxu0 0.0
  %3864 = vmatprep.subr.mxu0 0.0
  %3865 = vmatpush1.msra.mxu0 0.0
  %3866 = vmatprep.subr.mxu0 0.0
  %3867 = vmatpush1.msra.mxu0 0.0
  %3868 = vmatprep.subr.mxu0 0.0
  %3869 = vmatpush1.msra.mxu0 0.0
  %3870 = vmatprep.mubr.f32.mxu0 0.0
  %3871 = vmatmul.mubr.f32.gmra.mrb[0].mxu0 %v3424
  %v3872 = vpop.f32.mrb[0].mxu0
  %v3873 = vadd.f32 0.0, %v3872
  %v3874 = vpop.f32.mrb[0].mxu0
  %v3875 = vadd.f32 0.0, %v3874
  %3876 = vdwg.mxu0
  %v3877 = vadd.f32 %v3660, %v3802
  %v3878 = vadd.f32 %v3662, %v3804
  %v3879 = vadd.f32 %v3731, %v3873
  %v3880 = vadd.f32 %v3733, %v3875
  %v3881 = vmul.f32 %v3877, 0.5
  %v3882 = vtanh.pop %v3881
  %v3883 = vmul.f32 %v3882, 0.5
  %v3884 = vadd.f32 %v3883, 0.5
  %v3885 = vmul.f32 %v3878, 0.5
  %v3886 = vtanh.pop %v3885
  %v3887 = vmul.f32 %v3886, 0.5
  %v3888 = vadd.f32 %v3887, 0.5
  %v3889 = vtanh.pop %v3879
  %v3890 = vmul.f32 %v3880, 0.5
  %v3891 = vtanh.pop %v3890
  %v3892 = vmul.f32 %v3891, 0.5
  %v3893 = vadd.f32 %v3892, 0.5
  %v3894 = vmul.f32 %v3888, %v3422
  %v3895 = vmul.f32 %v3884, %v3889
  %v3896 = vadd.f32 %v3894, %v3895
  %v3897 = vtanh.pop %v3896
  %v3898 = vmul.f32 %v3893, %v3897
  %v3899 = vld [vmem:[#allocation2 + $0xe0] sm:$0xff]
  %v3900 = vld [vmem:[#allocation2 + $0xe8] sm:$0xff]
  %v3901 = vld [vmem:[#allocation2 + $0xf0] sm:$0xff]
  %v3902 = vld [vmem:[#allocation2 + $0xf8] sm:$0xff]
  %3903 = vmatprep.subr.mxu0 %v394
  %3904 = vmatpush1.msra.mxu0 %v393
  %3905 = vmatprep.subr.mxu0 %v398
  %3906 = vmatpush1.msra.mxu0 %v397
  %3907 = vmatprep.subr.mxu0 %v402
  %3908 = vmatpush1.msra.mxu0 %v401
  %3909 = vmatprep.subr.mxu0 %v406
  %3910 = vmatpush1.msra.mxu0 %v405
  %3911 = vmatprep.subr.mxu0 %v410
  %3912 = vmatpush1.msra.mxu0 %v409
  %3913 = vmatprep.subr.mxu0 %v414
  %3914 = vmatpush1.msra.mxu0 %v413
  %3915 = vmatprep.subr.mxu0 %v418
  %3916 = vmatpush1.msra.mxu0 %v417
  %3917 = vmatprep.subr.mxu0 %v422
  %3918 = vmatpush1.msra.mxu0 %v421
  %3919 = vmatprep.subr.mxu0 %v426
  %3920 = vmatpush1.msra.mxu0 %v425
  %3921 = vmatprep.subr.mxu0 %v430
  %3922 = vmatpush1.msra.mxu0 %v429
  %3923 = vmatprep.subr.mxu0 %v434
  %3924 = vmatpush1.msra.mxu0 %v433
  %3925 = vmatprep.subr.mxu0 %v438
  %3926 = vmatpush1.msra.mxu0 %v437
  %3927 = vmatprep.subr.mxu0 %v442
  %3928 = vmatpush1.msra.mxu0 %v441
  %3929 = vmatprep.subr.mxu0 %v446
  %3930 = vmatpush1.msra.mxu0 %v445
  %3931 = vmatprep.subr.mxu0 %v450
  %3932 = vmatpush1.msra.mxu0 %v449
  %3933 = vmatprep.subr.mxu0 %v454
  %3934 = vmatpush1.msra.mxu0 %v453
  %3935 = vmatprep.subr.mxu0 0.0
  %3936 = vmatpush1.msra.mxu0 0.0
  %3937 = vmatprep.subr.mxu0 0.0
  %3938 = vmatpush1.msra.mxu0 0.0
  %3939 = vmatprep.subr.mxu0 0.0
  %3940 = vmatpush1.msra.mxu0 0.0
  %3941 = vmatprep.subr.mxu0 0.0
  %3942 = vmatpush1.msra.mxu0 0.0
  %3943 = vmatprep.subr.mxu0 0.0
  %3944 = vmatpush1.msra.mxu0 0.0
  %3945 = vmatprep.subr.mxu0 0.0
  %3946 = vmatpush1.msra.mxu0 0.0
  %3947 = vmatprep.subr.mxu0 0.0
  %3948 = vmatpush1.msra.mxu0 0.0
  %3949 = vmatprep.subr.mxu0 0.0
  %3950 = vmatpush1.msra.mxu0 0.0
  %3951 = vmatprep.subr.mxu0 0.0
  %3952 = vmatpush1.msra.mxu0 0.0
  %3953 = vmatprep.subr.mxu0 0.0
  %3954 = vmatpush1.msra.mxu0 0.0
  %3955 = vmatprep.subr.mxu0 0.0
  %3956 = vmatpush1.msra.mxu0 0.0
  %3957 = vmatprep.subr.mxu0 0.0
  %3958 = vmatpush1.msra.mxu0 0.0
  %3959 = vmatprep.subr.mxu0 0.0
  %3960 = vmatpush1.msra.mxu0 0.0
  %3961 = vmatprep.subr.mxu0 0.0
  %3962 = vmatpush1.msra.mxu0 0.0
  %3963 = vmatprep.subr.mxu0 0.0
  %3964 = vmatpush1.msra.mxu0 0.0
  %3965 = vmatprep.subr.mxu0 0.0
  %3966 = vmatpush1.msra.mxu0 0.0
  %3967 = vmatprep.mubr.f32.mxu0 0.0
  %3968 = vmatmul.mubr.f32.gmra.mrb[0].mxu0 %v3592
  %v3969 = vpop.f32.mrb[0].mxu0
  %v3970 = vadd.f32 0.0, %v3969
  %v3971 = vpop.f32.mrb[0].mxu0
  %v3972 = vadd.f32 0.0, %v3971
  %3973 = vdwg.mxu0
  %3974 = vmatprep.subr.mxu0 %v396
  %3975 = vmatpush1.msra.mxu0 %v395
  %3976 = vmatprep.subr.mxu0 %v400
  %3977 = vmatpush1.msra.mxu0 %v399
  %3978 = vmatprep.subr.mxu0 %v404
  %3979 = vmatpush1.msra.mxu0 %v403
  %3980 = vmatprep.subr.mxu0 %v408
  %3981 = vmatpush1.msra.mxu0 %v407
  %3982 = vmatprep.subr.mxu0 %v412
  %3983 = vmatpush1.msra.mxu0 %v411
  %3984 = vmatprep.subr.mxu0 %v416
  %3985 = vmatpush1.msra.mxu0 %v415
  %3986 = vmatprep.subr.mxu0 %v420
  %3987 = vmatpush1.msra.mxu0 %v419
  %3988 = vmatprep.subr.mxu0 %v424
  %3989 = vmatpush1.msra.mxu0 %v423
  %3990 = vmatprep.subr.mxu0 %v428
  %3991 = vmatpush1.msra.mxu0 %v427
  %3992 = vmatprep.subr.mxu0 %v432
  %3993 = vmatpush1.msra.mxu0 %v431
  %3994 = vmatprep.subr.mxu0 %v436
  %3995 = vmatpush1.msra.mxu0 %v435
  %3996 = vmatprep.subr.mxu0 %v440
  %3997 = vmatpush1.msra.mxu0 %v439
  %3998 = vmatprep.subr.mxu0 %v444
  %3999 = vmatpush1.msra.mxu0 %v443
  %4000 = vmatprep.subr.mxu0 %v448
  %4001 = vmatpush1.msra.mxu0 %v447
  %4002 = vmatprep.subr.mxu0 %v452
  %4003 = vmatpush1.msra.mxu0 %v451
  %4004 = vmatprep.subr.mxu0 %v456
  %4005 = vmatpush1.msra.mxu0 %v455
  %4006 = vmatprep.subr.mxu0 0.0
  %4007 = vmatpush1.msra.mxu0 0.0
  %4008 = vmatprep.subr.mxu0 0.0
  %4009 = vmatpush1.msra.mxu0 0.0
  %4010 = vmatprep.subr.mxu0 0.0
  %4011 = vmatpush1.msra.mxu0 0.0
  %4012 = vmatprep.subr.mxu0 0.0
  %4013 = vmatpush1.msra.mxu0 0.0
  %4014 = vmatprep.subr.mxu0 0.0
  %4015 = vmatpush1.msra.mxu0 0.0
  %4016 = vmatprep.subr.mxu0 0.0
  %4017 = vmatpush1.msra.mxu0 0.0
  %4018 = vmatprep.subr.mxu0 0.0
  %4019 = vmatpush1.msra.mxu0 0.0
  %4020 = vmatprep.subr.mxu0 0.0
  %4021 = vmatpush1.msra.mxu0 0.0
  %4022 = vmatprep.subr.mxu0 0.0
  %4023 = vmatpush1.msra.mxu0 0.0
  %4024 = vmatprep.subr.mxu0 0.0
  %4025 = vmatpush1.msra.mxu0 0.0
  %4026 = vmatprep.subr.mxu0 0.0
  %4027 = vmatpush1.msra.mxu0 0.0
  %4028 = vmatprep.subr.mxu0 0.0
  %4029 = vmatpush1.msra.mxu0 0.0
  %4030 = vmatprep.subr.mxu0 0.0
  %4031 = vmatpush1.msra.mxu0 0.0
  %4032 = vmatprep.subr.mxu0 0.0
  %4033 = vmatpush1.msra.mxu0 0.0
  %4034 = vmatprep.subr.mxu0 0.0
  %4035 = vmatpush1.msra.mxu0 0.0
  %4036 = vmatprep.subr.mxu0 0.0
  %4037 = vmatpush1.msra.mxu0 0.0
  %4038 = vmatprep.mubr.f32.mxu0 0.0
  %4039 = vmatmul.mubr.f32.gmra.mrb[0].mxu0 %v3592
  %v4040 = vpop.f32.mrb[0].mxu0
  %v4041 = vadd.f32 0.0, %v4040
  %v4042 = vpop.f32.mrb[0].mxu0
  %v4043 = vadd.f32 0.0, %v4042
  %4044 = vdwg.mxu0
  %v4045 = vadd.f32 %v3899, %v3970
  %v4046 = vadd.f32 %v3900, %v3972
  %v4047 = vadd.f32 %v3901, %v4041
  %v4048 = vadd.f32 %v3902, %v4043
  %v4049 = vmul.f32 %v4045, 0.5
  %v4050 = vtanh.pop %v4049
  %v4051 = vmul.f32 %v4050, 0.5
  %v4052 = vadd.f32 %v4051, 0.5
  %v4053 = vmul.f32 %v4046, 0.5
  %v4054 = vtanh.pop %v4053
  %v4055 = vmul.f32 %v4054, 0.5
  %v4056 = vadd.f32 %v4055, 0.5
  %v4057 = vtanh.pop %v4047
  %v4058 = vmul.f32 %v4048, 0.5
  %v4059 = vtanh.pop %v4058
  %v4060 = vmul.f32 %v4059, 0.5
  %v4061 = vadd.f32 %v4060, 0.5
  %v4062 = vmul.f32 %v4056, %v3590
  %v4063 = vmul.f32 %v4052, %v4057
  %v4064 = vadd.f32 %v4062, %v4063
  %v4065 = vtanh.pop %v4064
  %v4066 = vmul.f32 %v4061, %v4065
  %4067 = vmatprep.subr.mxu0 %v622
  %4068 = vmatpush1.msra.mxu0 %v621
  %4069 = vmatprep.subr.mxu0 %v626
  %4070 = vmatpush1.msra.mxu0 %v625
  %4071 = vmatprep.subr.mxu0 %v630
  %4072 = vmatpush1.msra.mxu0 %v629
  %4073 = vmatprep.subr.mxu0 %v634
  %4074 = vmatpush1.msra.mxu0 %v633
  %4075 = vmatprep.subr.mxu0 %v638
  %4076 = vmatpush1.msra.mxu0 %v637
  %4077 = vmatprep.subr.mxu0 %v642
  %4078 = vmatpush1.msra.mxu0 %v641
  %4079 = vmatprep.subr.mxu0 %v646
  %4080 = vmatpush1.msra.mxu0 %v645
  %4081 = vmatprep.subr.mxu0 %v650
  %4082 = vmatpush1.msra.mxu0 %v649
  %4083 = vmatprep.subr.mxu0 %v654
  %4084 = vmatpush1.msra.mxu0 %v653
  %4085 = vmatprep.subr.mxu0 %v658
  %4086 = vmatpush1.msra.mxu0 %v657
  %4087 = vmatprep.subr.mxu0 %v662
  %4088 = vmatpush1.msra.mxu0 %v661
  %4089 = vmatprep.subr.mxu0 %v666
  %4090 = vmatpush1.msra.mxu0 %v665
  %4091 = vmatprep.subr.mxu0 %v670
  %4092 = vmatpush1.msra.mxu0 %v669
  %4093 = vmatprep.subr.mxu0 %v674
  %4094 = vmatpush1.msra.mxu0 %v673
  %4095 = vmatprep.subr.mxu0 %v678
  %4096 = vmatpush1.msra.mxu0 %v677
  %4097 = vmatprep.subr.mxu0 %v682
  %4098 = vmatpush1.msra.mxu0 %v681
  %4099 = vmatprep.subr.mxu0 0.0
  %4100 = vmatpush1.msra.mxu0 0.0
  %4101 = vmatprep.subr.mxu0 0.0
  %4102 = vmatpush1.msra.mxu0 0.0
  %4103 = vmatprep.subr.mxu0 0.0
  %4104 = vmatpush1.msra.mxu0 0.0
  %4105 = vmatprep.subr.mxu0 0.0
  %4106 = vmatpush1.msra.mxu0 0.0
  %4107 = vmatprep.subr.mxu0 0.0
  %4108 = vmatpush1.msra.mxu0 0.0
  %4109 = vmatprep.subr.mxu0 0.0
  %4110 = vmatpush1.msra.mxu0 0.0
  %4111 = vmatprep.subr.mxu0 0.0
  %4112 = vmatpush1.msra.mxu0 0.0
  %4113 = vmatprep.subr.mxu0 0.0
  %4114 = vmatpush1.msra.mxu0 0.0
  %4115 = vmatprep.subr.mxu0 0.0
  %4116 = vmatpush1.msra.mxu0 0.0
  %4117 = vmatprep.subr.mxu0 0.0
  %4118 = vmatpush1.msra.mxu0 0.0
  %4119 = vmatprep.subr.mxu0 0.0
  %4120 = vmatpush1.msra.mxu0 0.0
  %4121 = vmatprep.subr.mxu0 0.0
  %4122 = vmatpush1.msra.mxu0 0.0
  %4123 = vmatprep.subr.mxu0 0.0
  %4124 = vmatpush1.msra.mxu0 0.0
  %4125 = vmatprep.subr.mxu0 0.0
  %4126 = vmatpush1.msra.mxu0 0.0
  %4127 = vmatprep.subr.mxu0 0.0
  %4128 = vmatpush1.msra.mxu0 0.0
  %4129 = vmatprep.subr.mxu0 0.0
  %4130 = vmatpush1.msra.mxu0 0.0
  %4131 = vmatprep.mubr.f32.mxu0 0.0
  %4132 = vmatmul.mubr.f32.gmra.mrb[0].mxu0 %v4066
  %v4133 = vpop.f32.mrb[0].mxu0
  %v4134 = vadd.f32 %v372, %v4133
  %v4135 = vpop.f32.mrb[0].mxu0
  %v4136 = vadd.f32 %v376, %v4135
  %4137 = vdwg.mxu0
  %4138 = vmatprep.subr.mxu0 %v624
  %4139 = vmatpush1.msra.mxu0 %v623
  %4140 = vmatprep.subr.mxu0 %v628
  %4141 = vmatpush1.msra.mxu0 %v627
  %4142 = vmatprep.subr.mxu0 %v632
  %4143 = vmatpush1.msra.mxu0 %v631
  %4144 = vmatprep.subr.mxu0 %v636
  %4145 = vmatpush1.msra.mxu0 %v635
  %4146 = vmatprep.subr.mxu0 %v640
  %4147 = vmatpush1.msra.mxu0 %v639
  %4148 = vmatprep.subr.mxu0 %v644
  %4149 = vmatpush1.msra.mxu0 %v643
  %4150 = vmatprep.subr.mxu0 %v648
  %4151 = vmatpush1.msra.mxu0 %v647
  %4152 = vmatprep.subr.mxu0 %v652
  %4153 = vmatpush1.msra.mxu0 %v651
  %4154 = vmatprep.subr.mxu0 %v656
  %4155 = vmatpush1.msra.mxu0 %v655
  %4156 = vmatprep.subr.mxu0 %v660
  %4157 = vmatpush1.msra.mxu0 %v659
  %4158 = vmatprep.subr.mxu0 %v664
  %4159 = vmatpush1.msra.mxu0 %v663
  %4160 = vmatprep.subr.mxu0 %v668
  %4161 = vmatpush1.msra.mxu0 %v667
  %4162 = vmatprep.subr.mxu0 %v672
  %4163 = vmatpush1.msra.mxu0 %v671
  %4164 = vmatprep.subr.mxu0 %v676
  %4165 = vmatpush1.msra.mxu0 %v675
  %4166 = vmatprep.subr.mxu0 %v680
  %4167 = vmatpush1.msra.mxu0 %v679
  %4168 = vmatprep.subr.mxu0 %v684
  %4169 = vmatpush1.msra.mxu0 %v683
  %4170 = vmatprep.subr.mxu0 0.0
  %4171 = vmatpush1.msra.mxu0 0.0
  %4172 = vmatprep.subr.mxu0 0.0
  %4173 = vmatpush1.msra.mxu0 0.0
  %4174 = vmatprep.subr.mxu0 0.0
  %4175 = vmatpush1.msra.mxu0 0.0
  %4176 = vmatprep.subr.mxu0 0.0
  %4177 = vmatpush1.msra.mxu0 0.0
  %4178 = vmatprep.subr.mxu0 0.0
  %4179 = vmatpush1.msra.mxu0 0.0
  %4180 = vmatprep.subr.mxu0 0.0
  %4181 = vmatpush1.msra.mxu0 0.0
  %4182 = vmatprep.subr.mxu0 0.0
  %4183 = vmatpush1.msra.mxu0 0.0
  %4184 = vmatprep.subr.mxu0 0.0
  %4185 = vmatpush1.msra.mxu0 0.0
  %4186 = vmatprep.subr.mxu0 0.0
  %4187 = vmatpush1.msra.mxu0 0.0
  %4188 = vmatprep.subr.mxu0 0.0
  %4189 = vmatpush1.msra.mxu0 0.0
  %4190 = vmatprep.subr.mxu0 0.0
  %4191 = vmatpush1.msra.mxu0 0.0
  %4192 = vmatprep.subr.mxu0 0.0
  %4193 = vmatpush1.msra.mxu0 0.0
  %4194 = vmatprep.subr.mxu0 0.0
  %4195 = vmatpush1.msra.mxu0 0.0
  %4196 = vmatprep.subr.mxu0 0.0
  %4197 = vmatpush1.msra.mxu0 0.0
  %4198 = vmatprep.subr.mxu0 0.0
  %4199 = vmatpush1.msra.mxu0 0.0
  %4200 = vmatprep.subr.mxu0 0.0
  %4201 = vmatpush1.msra.mxu0 0.0
  %4202 = vmatprep.mubr.f32.mxu0 0.0
  %4203 = vmatmul.mubr.f32.gmra.mrb[0].mxu0 %v4066
  %v4204 = vpop.f32.mrb[0].mxu0
  %v4205 = vadd.f32 %v380, %v4204
  %v4206 = vpop.f32.mrb[0].mxu0
  %v4207 = vadd.f32 %v384, %v4206
  %4208 = vdwg.mxu0
  %4209 = vmatprep.subr.mxu0 %v828
  %4210 = vmatpush1.msra.mxu0 %v827
  %4211 = vmatprep.subr.mxu0 %v832
  %4212 = vmatpush1.msra.mxu0 %v831
  %4213 = vmatprep.subr.mxu0 %v836
  %4214 = vmatpush1.msra.mxu0 %v835
  %4215 = vmatprep.subr.mxu0 %v840
  %4216 = vmatpush1.msra.mxu0 %v839
  %4217 = vmatprep.subr.mxu0 %v844
  %4218 = vmatpush1.msra.mxu0 %v843
  %4219 = vmatprep.subr.mxu0 %v848
  %4220 = vmatpush1.msra.mxu0 %v847
  %4221 = vmatprep.subr.mxu0 %v852
  %4222 = vmatpush1.msra.mxu0 %v851
  %4223 = vmatprep.subr.mxu0 %v856
  %4224 = vmatpush1.msra.mxu0 %v855
  %4225 = vmatprep.subr.mxu0 %v860
  %4226 = vmatpush1.msra.mxu0 %v859
  %4227 = vmatprep.subr.mxu0 %v864
  %4228 = vmatpush1.msra.mxu0 %v863
  %4229 = vmatprep.subr.mxu0 %v868
  %4230 = vmatpush1.msra.mxu0 %v867
  %4231 = vmatprep.subr.mxu0 %v872
  %4232 = vmatpush1.msra.mxu0 %v871
  %4233 = vmatprep.subr.mxu0 %v876
  %4234 = vmatpush1.msra.mxu0 %v875
  %4235 = vmatprep.subr.mxu0 %v880
  %4236 = vmatpush1.msra.mxu0 %v879
  %4237 = vmatprep.subr.mxu0 %v884
  %4238 = vmatpush1.msra.mxu0 %v883
  %4239 = vmatprep.subr.mxu0 %v888
  %4240 = vmatpush1.msra.mxu0 %v887
  %4241 = vmatprep.subr.mxu0 0.0
  %4242 = vmatpush1.msra.mxu0 0.0
  %4243 = vmatprep.subr.mxu0 0.0
  %4244 = vmatpush1.msra.mxu0 0.0
  %4245 = vmatprep.subr.mxu0 0.0
  %4246 = vmatpush1.msra.mxu0 0.0
  %4247 = vmatprep.subr.mxu0 0.0
  %4248 = vmatpush1.msra.mxu0 0.0
  %4249 = vmatprep.subr.mxu0 0.0
  %4250 = vmatpush1.msra.mxu0 0.0
  %4251 = vmatprep.subr.mxu0 0.0
  %4252 = vmatpush1.msra.mxu0 0.0
  %4253 = vmatprep.subr.mxu0 0.0
  %4254 = vmatpush1.msra.mxu0 0.0
  %4255 = vmatprep.subr.mxu0 0.0
  %4256 = vmatpush1.msra.mxu0 0.0
  %4257 = vmatprep.subr.mxu0 0.0
  %4258 = vmatpush1.msra.mxu0 0.0
  %4259 = vmatprep.subr.mxu0 0.0
  %4260 = vmatpush1.msra.mxu0 0.0
  %4261 = vmatprep.subr.mxu0 0.0
  %4262 = vmatpush1.msra.mxu0 0.0
  %4263 = vmatprep.subr.mxu0 0.0
  %4264 = vmatpush1.msra.mxu0 0.0
  %4265 = vmatprep.subr.mxu0 0.0
  %4266 = vmatpush1.msra.mxu0 0.0
  %4267 = vmatprep.subr.mxu0 0.0
  %4268 = vmatpush1.msra.mxu0 0.0
  %4269 = vmatprep.subr.mxu0 0.0
  %4270 = vmatpush1.msra.mxu0 0.0
  %4271 = vmatprep.subr.mxu0 0.0
  %4272 = vmatpush1.msra.mxu0 0.0
  %4273 = vmatprep.mubr.f32.mxu0 0.0
  %4274 = vmatmul.mubr.f32.gmra.mrb[0].mxu0 %v3898
  %v4275 = vpop.f32.mrb[0].mxu0
  %v4276 = vadd.f32 0.0, %v4275
  %v4277 = vpop.f32.mrb[0].mxu0
  %v4278 = vadd.f32 0.0, %v4277
  %4279 = vdwg.mxu0
  %4280 = vmatprep.subr.mxu0 %v830
  %4281 = vmatpush1.msra.mxu0 %v829
  %4282 = vmatprep.subr.mxu0 %v834
  %4283 = vmatpush1.msra.mxu0 %v833
  %4284 = vmatprep.subr.mxu0 %v838
  %4285 = vmatpush1.msra.mxu0 %v837
  %4286 = vmatprep.subr.mxu0 %v842
  %4287 = vmatpush1.msra.mxu0 %v841
  %4288 = vmatprep.subr.mxu0 %v846
  %4289 = vmatpush1.msra.mxu0 %v845
  %4290 = vmatprep.subr.mxu0 %v850
  %4291 = vmatpush1.msra.mxu0 %v849
  %4292 = vmatprep.subr.mxu0 %v854
  %4293 = vmatpush1.msra.mxu0 %v853
  %4294 = vmatprep.subr.mxu0 %v858
  %4295 = vmatpush1.msra.mxu0 %v857
  %4296 = vmatprep.subr.mxu0 %v862
  %4297 = vmatpush1.msra.mxu0 %v861
  %4298 = vmatprep.subr.mxu0 %v866
  %4299 = vmatpush1.msra.mxu0 %v865
  %4300 = vmatprep.subr.mxu0 %v870
  %4301 = vmatpush1.msra.mxu0 %v869
  %4302 = vmatprep.subr.mxu0 %v874
  %4303 = vmatpush1.msra.mxu0 %v873
  %4304 = vmatprep.subr.mxu0 %v878
  %4305 = vmatpush1.msra.mxu0 %v877
  %4306 = vmatprep.subr.mxu0 %v882
  %4307 = vmatpush1.msra.mxu0 %v881
  %4308 = vmatprep.subr.mxu0 %v886
  %4309 = vmatpush1.msra.mxu0 %v885
  %4310 = vmatprep.subr.mxu0 %v890
  %4311 = vmatpush1.msra.mxu0 %v889
  %4312 = vmatprep.subr.mxu0 0.0
  %4313 = vmatpush1.msra.mxu0 0.0
  %4314 = vmatprep.subr.mxu0 0.0
  %4315 = vmatpush1.msra.mxu0 0.0
  %4316 = vmatprep.subr.mxu0 0.0
  %4317 = vmatpush1.msra.mxu0 0.0
  %4318 = vmatprep.subr.mxu0 0.0
  %4319 = vmatpush1.msra.mxu0 0.0
  %4320 = vmatprep.subr.mxu0 0.0
  %4321 = vmatpush1.msra.mxu0 0.0
  %4322 = vmatprep.subr.mxu0 0.0
  %4323 = vmatpush1.msra.mxu0 0.0
  %4324 = vmatprep.subr.mxu0 0.0
  %4325 = vmatpush1.msra.mxu0 0.0
  %4326 = vmatprep.subr.mxu0 0.0
  %4327 = vmatpush1.msra.mxu0 0.0
  %4328 = vmatprep.subr.mxu0 0.0
  %4329 = vmatpush1.msra.mxu0 0.0
  %4330 = vmatprep.subr.mxu0 0.0
  %4331 = vmatpush1.msra.mxu0 0.0
  %4332 = vmatprep.subr.mxu0 0.0
  %4333 = vmatpush1.msra.mxu0 0.0
  %4334 = vmatprep.subr.mxu0 0.0
  %4335 = vmatpush1.msra.mxu0 0.0
  %4336 = vmatprep.subr.mxu0 0.0
  %4337 = vmatpush1.msra.mxu0 0.0
  %4338 = vmatprep.subr.mxu0 0.0
  %4339 = vmatpush1.msra.mxu0 0.0
  %4340 = vmatprep.subr.mxu0 0.0
  %4341 = vmatpush1.msra.mxu0 0.0
  %4342 = vmatprep.subr.mxu0 0.0
  %4343 = vmatpush1.msra.mxu0 0.0
  %4344 = vmatprep.mubr.f32.mxu0 0.0
  %4345 = vmatmul.mubr.f32.gmra.mrb[0].mxu0 %v3898
  %v4346 = vpop.f32.mrb[0].mxu0
  %v4347 = vadd.f32 0.0, %v4346
  %v4348 = vpop.f32.mrb[0].mxu0
  %v4349 = vadd.f32 0.0, %v4348
  %4350 = vdwg.mxu0
  %v4351 = vadd.f32 %v4134, %v4276
  %v4352 = vadd.f32 %v4136, %v4278
  %v4353 = vadd.f32 %v4205, %v4347
  %v4354 = vadd.f32 %v4207, %v4349
  %v4355 = vmul.f32 %v4351, 0.5
  %v4356 = vtanh.pop %v4355
  %v4357 = vmul.f32 %v4356, 0.5
  %v4358 = vadd.f32 %v4357, 0.5
  %v4359 = vmul.f32 %v4352, 0.5
  %v4360 = vtanh.pop %v4359
  %v4361 = vmul.f32 %v4360, 0.5
  %v4362 = vadd.f32 %v4361, 0.5
  %v4363 = vtanh.pop %v4353
  %v4364 = vmul.f32 %v4354, 0.5
  %v4365 = vtanh.pop %v4364
  %v4366 = vmul.f32 %v4365, 0.5
  %v4367 = vadd.f32 %v4366, 0.5
  %v4368 = vmul.f32 %v4362, %v3896
  %v4369 = vmul.f32 %v4358, %v4363
  %v4370 = vadd.f32 %v4368, %v4369
  %v4371 = vtanh.pop %v4370
  %v4372 = vmul.f32 %v4367, %v4371
  %v4373 = vld [vmem:[%s6] sm:$0xff]
  %v4374 = vld [vmem:[%s6 + $0x8] sm:$0xff]
  %v4375 = vld [vmem:[%s6 + $0x10] sm:$0xff]
  %v4376 = vld [vmem:[%s6 + $0x18] sm:$0xff]
  %v4377 = vld [vmem:[%s6 + $0x20] sm:$0xff]
  %v4378 = vld [vmem:[%s6 + $0x28] sm:$0xff]
  %v4379 = vld [vmem:[%s6 + $0x30] sm:$0xff]
  %v4380 = vld [vmem:[%s6 + $0x38] sm:$0xff]
  %v4381 = vld [vmem:[%s6 + $0x40] sm:$0xff]
  %v4382 = vld [vmem:[%s6 + $0x48] sm:$0xff]
  %v4383 = vld [vmem:[%s6 + $0x50] sm:$0xff]
  %v4384 = vld [vmem:[%s6 + $0x58] sm:$0xff]
  %v4385 = vld [vmem:[%s6 + $0x60] sm:$0xff]
  %v4386 = vld [vmem:[%s6 + $0x68] sm:$0xff]
  %v4387 = vld [vmem:[%s6 + $0x70] sm:$0xff]
  %v4388 = vld [vmem:[%s6 + $0x78] sm:$0xff]
  %v4389 = vld [vmem:[%s7] sm:$0x1]
  %v4391 = vlaneseq
  %v4392 = vshrl.u32 %v4391, 7
  %v4393 = vsub.s32 0, %v4392
  %v4394 = vrot.slane %v4389, %v4393
  %4396 = vmatprep.subr.mxu0 0.0
  %4397 = vmatpush1.msra.mxu0 %v4373
  %4398 = vmatprep.subr.mxu0 0.0
  %4399 = vmatpush1.msra.mxu0 %v4374
  %4400 = vmatprep.subr.mxu0 0.0
  %4401 = vmatpush1.msra.mxu0 %v4375
  %4402 = vmatprep.subr.mxu0 0.0
  %4403 = vmatpush1.msra.mxu0 %v4376
  %4404 = vmatprep.subr.mxu0 0.0
  %4405 = vmatpush1.msra.mxu0 %v4377
  %4406 = vmatprep.subr.mxu0 0.0
  %4407 = vmatpush1.msra.mxu0 %v4378
  %4408 = vmatprep.subr.mxu0 0.0
  %4409 = vmatpush1.msra.mxu0 %v4379
  %4410 = vmatprep.subr.mxu0 0.0
  %4411 = vmatpush1.msra.mxu0 %v4380
  %4412 = vmatprep.subr.mxu0 0.0
  %4413 = vmatpush1.msra.mxu0 %v4381
  %4414 = vmatprep.subr.mxu0 0.0
  %4415 = vmatpush1.msra.mxu0 %v4382
  %4416 = vmatprep.subr.mxu0 0.0
  %4417 = vmatpush1.msra.mxu0 %v4383
  %4418 = vmatprep.subr.mxu0 0.0
  %4419 = vmatpush1.msra.mxu0 %v4384
  %4420 = vmatprep.subr.mxu0 0.0
  %4421 = vmatpush1.msra.mxu0 %v4385
  %4422 = vmatprep.subr.mxu0 0.0
  %4423 = vmatpush1.msra.mxu0 %v4386
  %4424 = vmatprep.subr.mxu0 0.0
  %4425 = vmatpush1.msra.mxu0 %v4387
  %4426 = vmatprep.subr.mxu0 0.0
  %4427 = vmatpush1.msra.mxu0 %v4388
  %4428 = vmatprep.subr.mxu0 0.0
  %4429 = vmatpush1.msra.mxu0 0.0
  %4430 = vmatprep.subr.mxu0 0.0
  %4431 = vmatpush1.msra.mxu0 0.0
  %4432 = vmatprep.subr.mxu0 0.0
  %4433 = vmatpush1.msra.mxu0 0.0
  %4434 = vmatprep.subr.mxu0 0.0
  %4435 = vmatpush1.msra.mxu0 0.0
  %4436 = vmatprep.subr.mxu0 0.0
  %4437 = vmatpush1.msra.mxu0 0.0
  %4438 = vmatprep.subr.mxu0 0.0
  %4439 = vmatpush1.msra.mxu0 0.0
  %4440 = vmatprep.subr.mxu0 0.0
  %4441 = vmatpush1.msra.mxu0 0.0
  %4442 = vmatprep.subr.mxu0 0.0
  %4443 = vmatpush1.msra.mxu0 0.0
  %4444 = vmatprep.subr.mxu0 0.0
  %4445 = vmatpush1.msra.mxu0 0.0
  %4446 = vmatprep.subr.mxu0 0.0
  %4447 = vmatpush1.msra.mxu0 0.0
  %4448 = vmatprep.subr.mxu0 0.0
  %4449 = vmatpush1.msra.mxu0 0.0
  %4450 = vmatprep.subr.mxu0 0.0
  %4451 = vmatpush1.msra.mxu0 0.0
  %4452 = vmatprep.subr.mxu0 0.0
  %4453 = vmatpush1.msra.mxu0 0.0
  %4454 = vmatprep.subr.mxu0 0.0
  %4455 = vmatpush1.msra.mxu0 0.0
  %4456 = vmatprep.subr.mxu0 0.0
  %4457 = vmatpush1.msra.mxu0 0.0
  %4458 = vmatprep.subr.mxu0 0.0
  %4459 = vmatpush1.msra.mxu0 0.0
  %4460 = vmatprep.mubr.f32.mxu0 0.0
  %4461 = vmatmul.mubr.f32.gmra.mrb[0].mxu0 %v4372
  %v4462 = vpop.f32.mrb[0].mxu0
  %v4463 = vadd.f32 %v4394, %v4462
  %v4464 = vpop.f32.mrb[0].mxu0
  %4465 = vdwg.mxu0
  %v4466 = vmax.f32 %v4463, 0.0
  %v4467 = vld [vmem:[%s8] sm:$0x1]
  %v4469 = vlaneseq
  %v4470 = vshrl.u32 %v4469, 7
  %v4471 = vsub.s32 0, %v4470
  %v4472 = vrot.slane %v4467, %v4471
  %v4474 = vmul.f32 %v4466, %v4472
  %4475 = vadd.xlane.f32.xlu0 %v4474
  %v4476 = vpop.xlane.xlu0 %4475
  %v4477 = vld [vmem:[#allocation3] sm:$0x1]
  %v4479 = vlaneseq
  %v4480 = vshrl.u32 %v4479, 7
  %v4481 = vsub.s32 0, %v4480
  %v4482 = vrot.slane %v4477, %v4481
  %v4484 = vadd.f32 %v4476, %v4482
  %vm4485 = vcmask 7168
  %4486 = vst.msk [vmem:[%s10] sm:$0xff] %vm4485, %v4484
  // Predicated region
  $region42: #{single_lstm_forward.1} parent=0 // pred_check
    _
  $region43: #{single_lstm_forward.1} parent=0 // pred_check_branch
    %4488 = sbr.rel (0) target = $region45
  $region44: #{single_lstm_forward.1} parent=0 // pred_region
    _
  $region45: #{single_lstm_forward.1} parent=0 // pred_fallthru
    _
  // Predicated region
  $region46: #{single_lstm_forward.1} parent=0 // pred_check
    _
  $region47: #{single_lstm_forward.1} parent=0 // pred_check_branch
    %4490 = sbr.rel (0) target = $region49
  $region48: #{single_lstm_forward.1} parent=0 // pred_region
    _
  $region49: #{single_lstm_forward.1} parent=0 // pred_fallthru
    _

</llo_original>
